<compile_context>
chip_gen: v6e
topology: v6e:2x2x1
jax: 0.10.0
libtpu: 0.0.40
codegen_flags: <defaults>
</compile_context>

<pallas_src>
import functools

import jax
import jax.numpy as jnp
from jax import lax
from jax.experimental import pallas as pl
from jax.experimental.pallas import tpu as pltpu


# ----------------------------------------------------------------------------
# Fused kernel: per batch -> QKV projection + (content+pos) logits + softmax
#               + value matmul for ALL heads, lane-dense output.
# ----------------------------------------------------------------------------
def _mhsa_kernel(heads, dim_head, scale, compute_dtype,
                 x_ref, w_ref, emb_ref, o_ref):
    # x_ref:   (1, L, C)          activation tile for this batch
    # w_ref:   (C, 3*heads*D)     1x1-conv weight, resident across grid steps
    # emb_ref: (L, D)             absolute positional embedding (h + w), shared
    # o_ref:   (1, L, heads*D)    lane-dense output block
    out_c = heads * dim_head

    x = x_ref[0]                                   # (L, C)
    w = w_ref[...]                                 # (C, 3*out_c)

    # Fused QKV 1x1 conv: one matmul, f32 accumulation.
    qkv = jnp.dot(x.astype(compute_dtype), w.astype(compute_dtype),
                  preferred_element_type=jnp.float32)        # (L, 3*out_c) f32

    emb = emb_ref[...]                             # (L, D) f32

    head_outs = []
    for n in range(heads):                         # heads is small & static
        lo = n * dim_head
        q = qkv[:, lo:lo + dim_head]                           # (L, D)
        k = qkv[:, out_c + lo:out_c + lo + dim_head]           # (L, D)
        v = qkv[:, 2 * out_c + lo:2 * out_c + lo + dim_head]   # (L, D)

        # (q*scale)@k^T + (q*scale)@emb^T == q @ ((k+emb)*scale)^T
        kk = (k + emb) * scale                                 # f32 VPU, free

        # Single logits matmul, D contracted directly (no transpose).
        logits = lax.dot_general(
            q.astype(compute_dtype), kk.astype(compute_dtype),
            dimension_numbers=(((1,), (1,)), ((), ())),
            preferred_element_type=jnp.float32)                # (L, L) f32

        # Numerically-stable softmax, kept in f32; normalize AFTER p@v so the
        # divide is a (L, D) scale with an EUP reciprocal instead of (L, L).
        m = jnp.max(logits, axis=-1, keepdims=True)
        p = jnp.exp(logits - m)                                # (L, L) f32
        rowsum = jnp.sum(p, axis=-1, keepdims=True)            # (L, 1)

        o = jnp.dot(p.astype(compute_dtype), v.astype(compute_dtype),
                    preferred_element_type=jnp.float32)        # (L, D) f32
        o = o * pl.reciprocal(rowsum, approx=(compute_dtype != jnp.float32))
        head_outs.append(o)

    # One unmasked, lane-dense store: channel index == n*D + d, which is
    # exactly the 'b (n d) h w' ordering the module returns.
    o_ref[0] = jnp.concatenate(head_outs, axis=-1).astype(o_ref.dtype)


def fused_mhsa(x, w_qkv, emb, *, heads, dim_head, scale,
               compute_dtype=jnp.bfloat16):
    # x: (B, L, C); w_qkv: (C, 3*heads*D); emb: (L, D) -> (B, L, heads*D)
    B, L, C = x.shape
    D = dim_head
    out_c = heads * D
    kernel = functools.partial(_mhsa_kernel, heads, D, scale, compute_dtype)
    return pl.pallas_call(
        kernel,
        out_shape=jax.ShapeDtypeStruct((B, L, out_c), jnp.float32),
        grid_spec=pltpu.PrefetchScalarGridSpec(
            num_scalar_prefetch=0,
            grid=(B,),
            in_specs=[
                pl.BlockSpec((1, L, C), lambda b: (b, 0, 0)),
                pl.BlockSpec((C, 3 * out_c), lambda b: (0, 0)),
                pl.BlockSpec((L, D), lambda b: (0, 0)),
            ],
            out_specs=pl.BlockSpec((1, L, out_c), lambda b: (b, 0, 0)),
        ),
        compiler_params=pltpu.CompilerParams(
            dimension_semantics=("parallel",),
        ),
    )(x, w_qkv, emb)


# ----------------------------------------------------------------------------
# MHSA forward (wrapper glue: layout plumbing only)
# ----------------------------------------------------------------------------
def mhsa_forward(featuremap, w_qkv, pos_h, pos_w, *, heads, dim_head,
                 compute_dtype=jnp.bfloat16):
    """featuremap: (B, C, H, W) NCHW float32 (PyTorch convention).
    w_qkv: (C, 3*heads*dim_head) -- the 1x1 conv weight as a matrix.
    pos_h: (H, dim_head), pos_w: (W, dim_head) -- AbsPosEmb parameters.
    Returns: (B, heads*dim_head, H, W)."""
    B, C, H, W = featuremap.shape
    L = H * W
    D = dim_head
    scale = D ** (-0.5)

    # NCHW -> (B, L, C)
    x = jnp.transpose(featuremap, (0, 2, 3, 1)).reshape(B, L, C)

    # AbsPosEmb: emb[h, w, d] = pos_h[h, d] + pos_w[w, d]  -> (L, D)
    emb = (pos_h[:, None, :] + pos_w[None, :, :]).reshape(L, D)

    out = fused_mhsa(x, w_qkv, emb, heads=heads, dim_head=D, scale=scale,
                     compute_dtype=compute_dtype)          # (B, L, heads*D)

    # (B, H*W, heads*D) with channel = n*D + d  ->  'b (n d) h w'
    out = out.reshape(B, H, W, heads * D)
    return jnp.transpose(out, (0, 3, 1, 2))


# ----------------------------------------------------------------------------
# Pure-JAX reference (for a correctness check)
# ----------------------------------------------------------------------------
def mhsa_reference(featuremap, w_qkv, pos_h, pos_w, *, heads, dim_head):
    B, C, H, W = featuremap.shape
    L = H * W
    D = dim_head
    scale = D ** (-0.5)
    x2d = jnp.transpose(featuremap, (0, 2, 3, 1)).reshape(B, L, C)
    qkv = jnp.einsum("blc,co->blo", x2d, w_qkv)
    q, k, v = jnp.split(qkv, 3, axis=-1)
    rs = lambda t: jnp.transpose(t.reshape(B, L, heads, D), (0, 2, 1, 3))
    q, k, v = rs(q) * scale, rs(k), rs(v)
    emb = (pos_h[:, None, :] + pos_w[None, :, :]).reshape(L, D)
    logits = jnp.einsum("bnxd,bnyd->bnxy", q, k) + jnp.einsum("bnxd,yd->bnxy", q, emb)
    weights = jax.nn.softmax(logits, axis=-1)
    attn = jnp.einsum("bnxy,bnyd->bnxd", weights, v)
    out = attn.reshape(B, heads, H, W, D)
    return jnp.transpose(out, (0, 1, 4, 2, 3)).reshape(B, heads * D, H, W)


if __name__ == "__main__":
    # Small shapes consistent with the module:
    # MHSA(in_channels=4, fmap_size=(16, 16), heads=4, dim_head=32)
    B, C, H, W = 2, 4, 16, 16
    heads, dim_head = 4, 32
    out_c = heads * dim_head
    scale = dim_head ** (-0.5)

    key = jax.random.PRNGKey(0)
    k_x, k_w, k_h, k_wd = jax.random.split(key, 4)

    featuremap = jax.random.normal(k_x, (B, C, H, W), dtype=jnp.float32)
    # 1x1 conv weight (no bias)
    w_qkv = jax.random.normal(k_w, (C, 3 * out_c), dtype=jnp.float32) * 0.1
    # AbsPosEmb params: randn * dim_head**-0.5 (as in the module __init__)
    pos_h = jax.random.normal(k_h, (H, dim_head), dtype=jnp.float32) * scale
    pos_w = jax.random.normal(k_wd, (W, dim_head), dtype=jnp.float32) * scale

    ref = mhsa_reference(featuremap, w_qkv, pos_h, pos_w,
                         heads=heads, dim_head=dim_head)

    # 1) exact-semantics path (f32 matmul operands) -- tight tolerance
    out_f32 = mhsa_forward(featuremap, w_qkv, pos_h, pos_w,
                           heads=heads, dim_head=dim_head,
                           compute_dtype=jnp.float32)
    out_f32 = jax.block_until_ready(out_f32)
    assert out_f32.shape == (B, heads * dim_head, H, W)
    assert jnp.allclose(out_f32, ref, atol=1e-3, rtol=1e-3)

    # 2) fast path (bf16 MXU operands, f32 accumulation & softmax)
    out_bf16 = mhsa_forward(featuremap, w_qkv, pos_h, pos_w,
                            heads=heads, dim_head=dim_head,
                            compute_dtype=jnp.bfloat16)
    out_bf16 = jax.block_until_ready(out_bf16)
    assert out_bf16.shape == (B, heads * dim_head, H, W)
    assert jnp.allclose(out_bf16, ref, atol=3e-2, rtol=3e-2)

    print("KERNEL_OK")
</pallas_src>

<mosaic_0001>
module attributes {stable_mosaic.version = 11 : i64} {
  func.func @_mhsa_kernel(%arg0: i32, %arg1: memref<1x256x4xf32, #tpu.memory_space<vmem>>, %arg2: memref<4x384xf32, #tpu.memory_space<vmem>>, %arg3: memref<256x32xf32, #tpu.memory_space<vmem>>, %arg4: memref<1x256x128xf32, #tpu.memory_space<vmem>>) attributes {dimension_semantics = [#tpu.dimension_semantics<parallel>], iteration_bounds = array<i64: 2>, scalar_prefetch = 0 : i64, scratch_operands = 0 : i64, tpu.core_type = #tpu.core_type<tc>, window_params = [{transform_indices = @transform_0, window_bounds = array<i64: 1, 256, 4>}, {pipeline_mode = #tpu.pipeline_mode<synchronous>, transform_indices = @transform_1, window_bounds = array<i64: 4, 384>}, {pipeline_mode = #tpu.pipeline_mode<synchronous>, transform_indices = @transform_2, window_bounds = array<i64: 256, 32>}, {transform_indices = @transform_3, window_bounds = array<i64: 1, 256, 128>}]} {
    %c0 = arith.constant 0 : index
    %c0_0 = arith.constant 0 : index
    %c0_1 = arith.constant 0 : index
    %0 = vector.load %arg1[%c0, %c0_0, %c0_1] : memref<1x256x4xf32, #tpu.memory_space<vmem>>, vector<1x256x4xf32>
    %1 = vector.shape_cast %0 : vector<1x256x4xf32> to vector<256x4xf32>
    %c0_2 = arith.constant 0 : index
    %c0_3 = arith.constant 0 : index
    %2 = vector.load %arg2[%c0_2, %c0_3] : memref<4x384xf32, #tpu.memory_space<vmem>>, vector<4x384xf32>
    %cst = arith.constant dense<0.000000e+00> : vector<256x384xf32>
    %3 = tpu.matmul %1, %2, %cst {dimension_numbers = #tpu.dot_dimension_numbers<[1], [0], [0], [1], [0, 0, 1, 1], [], []>} : vector<256x4xf32>, vector<4x384xf32>, vector<256x384xf32> -> vector<256x384xf32>
    %c0_4 = arith.constant 0 : index
    %c0_5 = arith.constant 0 : index
    %4 = vector.load %arg3[%c0_4, %c0_5] : memref<256x32xf32, #tpu.memory_space<vmem>>, vector<256x32xf32>
    %5 = vector.extract_strided_slice %3 {offsets = [0, 0], sizes = [256, 32], strides = [1, 1]} : vector<256x384xf32> to vector<256x32xf32>
    %6 = vector.extract_strided_slice %3 {offsets = [0, 128], sizes = [256, 32], strides = [1, 1]} : vector<256x384xf32> to vector<256x32xf32>
    %7 = vector.extract_strided_slice %3 {offsets = [0, 256], sizes = [256, 32], strides = [1, 1]} : vector<256x384xf32> to vector<256x32xf32>
    %8 = arith.addf %6, %4 : vector<256x32xf32>
    %cst_6 = arith.constant 0.176776692 : f32
    %9 = vector.broadcast %cst_6 : f32 to vector<256x32xf32>
    %10 = arith.mulf %8, %9 : vector<256x32xf32>
    %cst_7 = arith.constant dense<0.000000e+00> : vector<256x256xf32>
    %11 = tpu.matmul %5, %10, %cst_7 {dimension_numbers = #tpu.dot_dimension_numbers<[1], [1], [0], [0], [0, 0, 1, 0], [], []>} : vector<256x32xf32>, vector<256x32xf32>, vector<256x256xf32> -> vector<256x256xf32>
    %cst_8 = arith.constant dense<0xFF800000> : vector<256xf32>
    %12 = vector.multi_reduction <maximumf>, %11, %cst_8 [1] : vector<256x256xf32> to vector<256xf32>
    %13 = vector.shape_cast %12 : vector<256xf32> to vector<256x1xf32>
    %14 = vector.broadcast %13 : vector<256x1xf32> to vector<256x256xf32>
    %15 = arith.subf %11, %14 : vector<256x256xf32>
    %16 = math.exp %15 : vector<256x256xf32>
    %cst_9 = arith.constant dense<0.000000e+00> : vector<256xf32>
    %17 = vector.multi_reduction <add>, %16, %cst_9 [1] : vector<256x256xf32> to vector<256xf32>
    %18 = vector.shape_cast %17 : vector<256xf32> to vector<256x1xf32>
    %cst_10 = arith.constant dense<0.000000e+00> : vector<256x32xf32>
    %19 = tpu.matmul %16, %7, %cst_10 {dimension_numbers = #tpu.dot_dimension_numbers<[1], [0], [0], [1], [0, 0, 1, 1], [], []>} : vector<256x256xf32>, vector<256x32xf32>, vector<256x32xf32> -> vector<256x32xf32>
    %20 = tpu.reciprocal %18 : vector<256x1xf32> -> vector<256x1xf32>
    %21 = vector.broadcast %20 : vector<256x1xf32> to vector<256x32xf32>
    %22 = arith.mulf %19, %21 : vector<256x32xf32>
    %23 = vector.extract_strided_slice %3 {offsets = [0, 32], sizes = [256, 32], strides = [1, 1]} : vector<256x384xf32> to vector<256x32xf32>
    %24 = vector.extract_strided_slice %3 {offsets = [0, 160], sizes = [256, 32], strides = [1, 1]} : vector<256x384xf32> to vector<256x32xf32>
    %25 = vector.extract_strided_slice %3 {offsets = [0, 288], sizes = [256, 32], strides = [1, 1]} : vector<256x384xf32> to vector<256x32xf32>
    %26 = arith.addf %24, %4 : vector<256x32xf32>
    %cst_11 = arith.constant 0.176776692 : f32
    %27 = vector.broadcast %cst_11 : f32 to vector<256x32xf32>
    %28 = arith.mulf %26, %27 : vector<256x32xf32>
    %cst_12 = arith.constant dense<0.000000e+00> : vector<256x256xf32>
    %29 = tpu.matmul %23, %28, %cst_12 {dimension_numbers = #tpu.dot_dimension_numbers<[1], [1], [0], [0], [0, 0, 1, 0], [], []>} : vector<256x32xf32>, vector<256x32xf32>, vector<256x256xf32> -> vector<256x256xf32>
    %cst_13 = arith.constant dense<0xFF800000> : vector<256xf32>
    %30 = vector.multi_reduction <maximumf>, %29, %cst_13 [1] : vector<256x256xf32> to vector<256xf32>
    %31 = vector.shape_cast %30 : vector<256xf32> to vector<256x1xf32>
    %32 = vector.broadcast %31 : vector<256x1xf32> to vector<256x256xf32>
    %33 = arith.subf %29, %32 : vector<256x256xf32>
    %34 = math.exp %33 : vector<256x256xf32>
    %cst_14 = arith.constant dense<0.000000e+00> : vector<256xf32>
    %35 = vector.multi_reduction <add>, %34, %cst_14 [1] : vector<256x256xf32> to vector<256xf32>
    %36 = vector.shape_cast %35 : vector<256xf32> to vector<256x1xf32>
    %cst_15 = arith.constant dense<0.000000e+00> : vector<256x32xf32>
    %37 = tpu.matmul %34, %25, %cst_15 {dimension_numbers = #tpu.dot_dimension_numbers<[1], [0], [0], [1], [0, 0, 1, 1], [], []>} : vector<256x256xf32>, vector<256x32xf32>, vector<256x32xf32> -> vector<256x32xf32>
    %38 = tpu.reciprocal %36 : vector<256x1xf32> -> vector<256x1xf32>
    %39 = vector.broadcast %38 : vector<256x1xf32> to vector<256x32xf32>
    %40 = arith.mulf %37, %39 : vector<256x32xf32>
    %41 = vector.extract_strided_slice %3 {offsets = [0, 64], sizes = [256, 32], strides = [1, 1]} : vector<256x384xf32> to vector<256x32xf32>
    %42 = vector.extract_strided_slice %3 {offsets = [0, 192], sizes = [256, 32], strides = [1, 1]} : vector<256x384xf32> to vector<256x32xf32>
    %43 = vector.extract_strided_slice %3 {offsets = [0, 320], sizes = [256, 32], strides = [1, 1]} : vector<256x384xf32> to vector<256x32xf32>
    %44 = arith.addf %42, %4 : vector<256x32xf32>
    %cst_16 = arith.constant 0.176776692 : f32
    %45 = vector.broadcast %cst_16 : f32 to vector<256x32xf32>
    %46 = arith.mulf %44, %45 : vector<256x32xf32>
    %cst_17 = arith.constant dense<0.000000e+00> : vector<256x256xf32>
    %47 = tpu.matmul %41, %46, %cst_17 {dimension_numbers = #tpu.dot_dimension_numbers<[1], [1], [0], [0], [0, 0, 1, 0], [], []>} : vector<256x32xf32>, vector<256x32xf32>, vector<256x256xf32> -> vector<256x256xf32>
    %cst_18 = arith.constant dense<0xFF800000> : vector<256xf32>
    %48 = vector.multi_reduction <maximumf>, %47, %cst_18 [1] : vector<256x256xf32> to vector<256xf32>
    %49 = vector.shape_cast %48 : vector<256xf32> to vector<256x1xf32>
    %50 = vector.broadcast %49 : vector<256x1xf32> to vector<256x256xf32>
    %51 = arith.subf %47, %50 : vector<256x256xf32>
    %52 = math.exp %51 : vector<256x256xf32>
    %cst_19 = arith.constant dense<0.000000e+00> : vector<256xf32>
    %53 = vector.multi_reduction <add>, %52, %cst_19 [1] : vector<256x256xf32> to vector<256xf32>
    %54 = vector.shape_cast %53 : vector<256xf32> to vector<256x1xf32>
    %cst_20 = arith.constant dense<0.000000e+00> : vector<256x32xf32>
    %55 = tpu.matmul %52, %43, %cst_20 {dimension_numbers = #tpu.dot_dimension_numbers<[1], [0], [0], [1], [0, 0, 1, 1], [], []>} : vector<256x256xf32>, vector<256x32xf32>, vector<256x32xf32> -> vector<256x32xf32>
    %56 = tpu.reciprocal %54 : vector<256x1xf32> -> vector<256x1xf32>
    %57 = vector.broadcast %56 : vector<256x1xf32> to vector<256x32xf32>
    %58 = arith.mulf %55, %57 : vector<256x32xf32>
    %59 = vector.extract_strided_slice %3 {offsets = [0, 96], sizes = [256, 32], strides = [1, 1]} : vector<256x384xf32> to vector<256x32xf32>
    %60 = vector.extract_strided_slice %3 {offsets = [0, 224], sizes = [256, 32], strides = [1, 1]} : vector<256x384xf32> to vector<256x32xf32>
    %61 = vector.extract_strided_slice %3 {offsets = [0, 352], sizes = [256, 32], strides = [1, 1]} : vector<256x384xf32> to vector<256x32xf32>
    %62 = arith.addf %60, %4 : vector<256x32xf32>
    %cst_21 = arith.constant 0.176776692 : f32
    %63 = vector.broadcast %cst_21 : f32 to vector<256x32xf32>
    %64 = arith.mulf %62, %63 : vector<256x32xf32>
    %cst_22 = arith.constant dense<0.000000e+00> : vector<256x256xf32>
    %65 = tpu.matmul %59, %64, %cst_22 {dimension_numbers = #tpu.dot_dimension_numbers<[1], [1], [0], [0], [0, 0, 1, 0], [], []>} : vector<256x32xf32>, vector<256x32xf32>, vector<256x256xf32> -> vector<256x256xf32>
    %cst_23 = arith.constant dense<0xFF800000> : vector<256xf32>
    %66 = vector.multi_reduction <maximumf>, %65, %cst_23 [1] : vector<256x256xf32> to vector<256xf32>
    %67 = vector.shape_cast %66 : vector<256xf32> to vector<256x1xf32>
    %68 = vector.broadcast %67 : vector<256x1xf32> to vector<256x256xf32>
    %69 = arith.subf %65, %68 : vector<256x256xf32>
    %70 = math.exp %69 : vector<256x256xf32>
    %cst_24 = arith.constant dense<0.000000e+00> : vector<256xf32>
    %71 = vector.multi_reduction <add>, %70, %cst_24 [1] : vector<256x256xf32> to vector<256xf32>
    %72 = vector.shape_cast %71 : vector<256xf32> to vector<256x1xf32>
    %cst_25 = arith.constant dense<0.000000e+00> : vector<256x32xf32>
    %73 = tpu.matmul %70, %61, %cst_25 {dimension_numbers = #tpu.dot_dimension_numbers<[1], [0], [0], [1], [0, 0, 1, 1], [], []>} : vector<256x256xf32>, vector<256x32xf32>, vector<256x32xf32> -> vector<256x32xf32>
    %74 = tpu.reciprocal %72 : vector<256x1xf32> -> vector<256x1xf32>
    %75 = vector.broadcast %74 : vector<256x1xf32> to vector<256x32xf32>
    %76 = arith.mulf %73, %75 : vector<256x32xf32>
    %77 = tpu.concatenate %22, %40, %58, %76 in 1 : vector<256x32xf32>, vector<256x32xf32>, vector<256x32xf32>, vector<256x32xf32> -> vector<256x128xf32>
    %c0_26 = arith.constant 0 : index
    %c0_27 = arith.constant 0 : index
    %c0_28 = arith.constant 0 : index
    %78 = vector.load %arg4[%c0_26, %c0_27, %c0_28] : memref<1x256x128xf32, #tpu.memory_space<vmem>>, vector<1x256x128xf32>
    %79 = vector.shape_cast %78 : vector<1x256x128xf32> to vector<256x128xf32>
    %80 = vector.shape_cast %77 : vector<256x128xf32> to vector<1x256x128xf32>
    tpu.vector_store %arg4[%c0_26, %c0_27, %c0_28], %80 {strides = array<i32>} : memref<1x256x128xf32, #tpu.memory_space<vmem>>, vector<1x256x128xf32>,
    return
  }
  func.func @transform_0(%arg0: i32) -> (i32, i32, i32) {
    %c0_i32 = arith.constant 0 : i32
    %c0_i32_0 = arith.constant 0 : i32
    %c0_i32_1 = arith.constant 0 : i32
    return %arg0, %c0_i32, %c0_i32_0 : i32, i32, i32
  }
  func.func @transform_1(%arg0: i32) -> (i32, i32) {
    %c0_i32 = arith.constant 0 : i32
    %c0_i32_0 = arith.constant 0 : i32
    %c0_i32_1 = arith.constant 0 : i32
    return %c0_i32, %c0_i32_0 : i32, i32
  }
  func.func @transform_2(%arg0: i32) -> (i32, i32) {
    %c0_i32 = arith.constant 0 : i32
    %c0_i32_0 = arith.constant 0 : i32
    %c0_i32_1 = arith.constant 0 : i32
    return %c0_i32, %c0_i32_0 : i32, i32
  }
  func.func @transform_3(%arg0: i32) -> (i32, i32, i32) {
    %c0_i32 = arith.constant 0 : i32
    %c0_i32_0 = arith.constant 0 : i32
    %c0_i32_1 = arith.constant 0 : i32
    return %arg0, %c0_i32, %c0_i32_0 : i32, i32, i32
  }
}

</mosaic_0001>

<llo_original>
// kernel: tpu_custom_call.1
$region0: #{tpu_custom_call.1}
  #allocation0 [shape = 'u32[]', space=smem, size = 0x4, offset = 0x4, fixed_abs, tag = 'smem constant byte address 0x4 - core index']
  #allocation1 [shape = 'u32[144,128]{1,0:T(1,128)}', space=vmem, size = 0x12000, scoped, tag = 'internal scratch']
  %s0 = inlined_call_operand.vmem [shape: f32[2,256,4], index: 0, kind: input, shape index: {}]
  %s1 = inlined_call_operand.vmem [shape: f32[4,384], index: 1, kind: input, shape index: {}]
  %s2 = inlined_call_operand.vmem [shape: f32[256,32], index: 2, kind: input, shape index: {}]
  %s3 = inlined_call_operand.hbm [shape: f32[2,256,128], index: 3, kind: output, shape index: {}]
  %s4 = sld [smem:[#allocation0]]
  $region45: #{tpu_custom_call.1} parent=0
    _
  %s6 = ssub.s32 1, %s4
  %s7 = scalar_select 0, %s6, %s4
  $region1: #{tpu_custom_call.1} parent=0
    #allocation2 [shape = 'u8[262144]{0}', space=vmem, size = 0x40000, scoped, tag = 'output window, operand 0']
    #allocation3 [shape = 's32[2]{0}', space=sflag, size = 0x8, scoped, tag = 'scoped memory for tpu_custom_call.1']
    %8 = vsyncpa [#allocation3], 0
    %s9 = scalar_lea.sflag [#allocation3], 1
    %10 = vsyncpa %s9, 0
    loop: start=0, step=1, limit=4
    $region2: #{tpu_custom_call.1} parent=1 // loop_pre_header
      _
    $region3: #{tpu_custom_call.1} parent=1 // loop_header
      %s12 = sphi 0, %s16
      %p13 = scmp.ge.s32.totalorder %s12, 4
      %s22 = sphi 0, %s24
      %s25 = sphi 0, %s22
      %s26 = sphi 0, %s25
      %s42 = sphi 0, %s26
      %s46 = sphi 0, %s46
      %s48 = sphi 0, %s46
      %s49 = sphi 0, %s48
      %s63 = sphi 0, %s49
      %s67 = sphi 0, %s67
      %s69 = sphi 0, %s67
      %s70 = sphi 0, %s69
      %s84 = sphi 0, %s70
      %s90 = sphi 0, %s92
      %s93 = sphi 0, %s90
      %s94 = sphi 0, %s93
      %s110 = sphi 0, %s94
    $region4: #{tpu_custom_call.1} parent=1 // loop_header_branch
      %15 = sbr.rel (%p13) target = $region8
    $region5: #{tpu_custom_call.1} parent=1 // loop_body
      %s17 = ssub.s32 %s12, 1
      %s18 = ssub.s32 %s12, 2
      %s19 = sadd.s32 %s12, 1
      %s20 = ssub.s32 %s12, %s19
      %p21 = scmp.eq.s32.totalorder %s20, 0
      %s23 = sadd.s32 %s22, 1
      %s24 = scalar_select %p21, %s22, %s23
      %p27 = pneg %p21
      %p28 = scmp.eq.s32.totalorder %s12, 1
      %p29 = por %p27, %p28
      %p30 = scmp.ne.s32.totalorder %s22, %s25
      %p31 = scmp.eq.s32.totalorder %s12, 0
      %p32 = por %p30, %p31
      %p33 = scmp.ne.s32.totalorder %s22, %s25
      %p34 = scmp.eq.s32.totalorder %s17, 1
      %p35 = por %p33, %p34
      %p36 = scmp.ne.s32.totalorder %s25, %s26
      %p37 = scmp.eq.s32.totalorder %s17, 0
      %p38 = por %p36, %p37
      %p39 = scmp.ne.s32.totalorder %s25, %s26
      %p40 = scmp.eq.s32.totalorder %s18, 1
      %p41 = por %p39, %p40
      %p43 = scmp.ne.s32.totalorder %s26, %s42
      %p44 = scmp.eq.s32.totalorder %s18, 0
      %p45 = por %p43, %p44
      %s47 = sadd.s32 %s46, 1
      %p50 = scmp.eq.s32.totalorder %s12, 1
      %p51 = scmp.ne.s32.totalorder %s46, %s48
      %p52 = scmp.eq.s32.totalorder %s12, 0
      %p53 = por %p51, %p52
      %p54 = scmp.ne.s32.totalorder %s46, %s48
      %p55 = scmp.eq.s32.totalorder %s17, 1
      %p56 = por %p54, %p55
      %p57 = scmp.ne.s32.totalorder %s48, %s49
      %p58 = scmp.eq.s32.totalorder %s17, 0
      %p59 = por %p57, %p58
      %p60 = scmp.ne.s32.totalorder %s48, %s49
      %p61 = scmp.eq.s32.totalorder %s18, 1
      %p62 = por %p60, %p61
      %p64 = scmp.ne.s32.totalorder %s49, %s63
      %p65 = scmp.eq.s32.totalorder %s18, 0
      %p66 = por %p64, %p65
      %s68 = sadd.s32 %s67, 1
      %p71 = scmp.eq.s32.totalorder %s12, 1
      %p72 = scmp.ne.s32.totalorder %s67, %s69
      %p73 = scmp.eq.s32.totalorder %s12, 0
      %p74 = por %p72, %p73
      %p75 = scmp.ne.s32.totalorder %s67, %s69
      %p76 = scmp.eq.s32.totalorder %s17, 1
      %p77 = por %p75, %p76
      %p78 = scmp.ne.s32.totalorder %s69, %s70
      %p79 = scmp.eq.s32.totalorder %s17, 0
      %p80 = por %p78, %p79
      %p81 = scmp.ne.s32.totalorder %s69, %s70
      %p82 = scmp.eq.s32.totalorder %s18, 1
      %p83 = por %p81, %p82
      %p85 = scmp.ne.s32.totalorder %s70, %s84
      %p86 = scmp.eq.s32.totalorder %s18, 0
      %p87 = por %p85, %p86
      %s88 = ssub.s32 %s12, %s19
      %p89 = scmp.eq.s32.totalorder %s88, 0
      %s91 = sadd.s32 %s90, 1
      %s92 = scalar_select %p89, %s90, %s91
      %p95 = pneg %p89
      %p96 = scmp.eq.s32.totalorder %s12, 1
      %p97 = por %p95, %p96
      %p98 = scmp.ne.s32.totalorder %s90, %s93
      %p99 = scmp.eq.s32.totalorder %s12, 0
      %p100 = por %p98, %p99
      %p101 = scmp.ne.s32.totalorder %s90, %s93
      %p102 = scmp.eq.s32.totalorder %s17, 1
      %p103 = por %p101, %p102
      %p104 = scmp.ne.s32.totalorder %s93, %s94
      %p105 = scmp.eq.s32.totalorder %s17, 0
      %p106 = por %p104, %p105
      %p107 = scmp.ne.s32.totalorder %s93, %s94
      %p108 = scmp.eq.s32.totalorder %s18, 1
      %p109 = por %p107, %p108
      %p111 = scmp.ne.s32.totalorder %s94, %s110
      %p112 = scmp.eq.s32.totalorder %s18, 0
      %p113 = por %p111, %p112
      %p114 = scmp.le.s32.totalorder 1, %s12
      %p115 = scmp.lt.s32.totalorder %s12, 3
      %p116 = pnand %p114, %p115
      %p117 = pneg %p116
      // Predicated region
      $region9: #{tpu_custom_call.1} parent=5 // pred_check
        _
      $region10: #{tpu_custom_call.1} parent=5 // pred_check_branch
        %119 = sbr.rel (%p116) target = $region12
      $region11: #{tpu_custom_call.1} parent=5 // pred_region
        %s120 = ssub.s32 %s12, 1
        // Predicated region
        $region13: #{tpu_custom_call.1} parent=11 // pred_check
          %p121 = pneg %p59
        $region14: #{tpu_custom_call.1} parent=11 // pred_check_branch
          %123 = sbr.rel (%p121) target = $region16
        $region15: #{tpu_custom_call.1} parent=11 // pred_region
          _
        $region16: #{tpu_custom_call.1} parent=11 // pred_fallthru
          _
        // Predicated region
        $region17: #{tpu_custom_call.1} parent=11 // pred_check
          %p124 = pneg %p80
        $region18: #{tpu_custom_call.1} parent=11 // pred_check_branch
          %126 = sbr.rel (%p124) target = $region20
        $region19: #{tpu_custom_call.1} parent=11 // pred_region
          _
        $region20: #{tpu_custom_call.1} parent=11 // pred_fallthru
          _
      $region12: #{tpu_custom_call.1} parent=5 // pred_fallthru
        _
      %p127 = scmp.lt.s32.totalorder %s12, 2
      // Predicated region
      $region21: #{tpu_custom_call.1} parent=5 // pred_check
        %p128 = pneg %p127
      $region22: #{tpu_custom_call.1} parent=5 // pred_check_branch
        %130 = sbr.rel (%p128) target = $region24
      $region23: #{tpu_custom_call.1} parent=5 // pred_region
        // Predicated region
        $region25: #{tpu_custom_call.1} parent=23 // pred_check
          %p131 = pneg %p32
        $region26: #{tpu_custom_call.1} parent=23 // pred_check_branch
          %133 = sbr.rel (%p131) target = $region28
        $region27: #{tpu_custom_call.1} parent=23 // pred_region
          %p134 = scmp.lt.s32.totalorder %s12, 1
          %s135 = scalar_select %p134, %s12, 1
          %s136 = smul.addr %s135, 32
          %s137 = smul.addr %s136, 8
          %s138 = scalar_lea.vmem %s0, %s137
        $region28: #{tpu_custom_call.1} parent=23 // pred_fallthru
          _
      $region24: #{tpu_custom_call.1} parent=5 // pred_fallthru
        _
      %p139 = scmp.le.s32.totalorder 1, %s12
      %p140 = scmp.lt.s32.totalorder %s12, 3
      %p141 = pnand %p139, %p140
      %p142 = pneg %p141
      // Predicated region
      $region29: #{tpu_custom_call.1} parent=5 // pred_check
        _
      $region30: #{tpu_custom_call.1} parent=5 // pred_check_branch
        %144 = sbr.rel (%p141) target = $region32
      $region31: #{tpu_custom_call.1} parent=5 // pred_region
        %s145 = ssub.s32 %s12, 1
        %p146 = scmp.lt.s32.totalorder %s17, 1
        %s147 = scalar_select %p146, %s17, 1
        %s148 = smul.addr %s147, 32
        %s149 = smul.addr %s148, 8
        %s150 = scalar_lea.vmem %s0, %s149
        %p151 = pneg %p38
        %p152 = pneg %p35
        %p153 = pneg %p59
        %p154 = pneg %p56
        %p155 = pneg %p80
        %p156 = pneg %p77
        %p157 = pneg %p106
        %p158 = pneg %p103
        %s159 = sand.u32 %s93, 1
        %s160 = scalar_lea.sflag [#allocation3], %s159
        %s161 = sand.u32 %s93, 1
        %s162 = smul.addr %s161, 256
        %s163 = scalar_lea.vmem [#allocation2], %s162
        %p164 = scmp.lt.s32.totalorder %s17, 1
        %s165 = scalar_select %p164, %s17, 1
        %s166 = smul.addr %s165, 32
        %s167 = smul.addr %s166, 8
        %s168 = scalar_lea.vmem %s0, %s167
        %v169 = vld [vmem:[%s168] sm:$0xff]
        %v170 = vld [vmem:[%s168 + $0x8] sm:$0xff]
        %v171 = vld [vmem:[%s168 + $0x10] sm:$0xff]
        %v172 = vld [vmem:[%s168 + $0x18] sm:$0xff]
        %v173 = vld [vmem:[%s168 + $0x20] sm:$0xff]
        %v174 = vld [vmem:[%s168 + $0x28] sm:$0xff]
        %v175 = vld [vmem:[%s168 + $0x30] sm:$0xff]
        %v176 = vld [vmem:[%s168 + $0x38] sm:$0xff]
        %v177 = vld [vmem:[%s168 + $0x40] sm:$0xff]
        %v178 = vld [vmem:[%s168 + $0x48] sm:$0xff]
        %v179 = vld [vmem:[%s168 + $0x50] sm:$0xff]
        %v180 = vld [vmem:[%s168 + $0x58] sm:$0xff]
        %v181 = vld [vmem:[%s168 + $0x60] sm:$0xff]
        %v182 = vld [vmem:[%s168 + $0x68] sm:$0xff]
        %v183 = vld [vmem:[%s168 + $0x70] sm:$0xff]
        %v184 = vld [vmem:[%s168 + $0x78] sm:$0xff]
        %v185 = vld [vmem:[%s168 + $0x80] sm:$0xff]
        %v186 = vld [vmem:[%s168 + $0x88] sm:$0xff]
        %v187 = vld [vmem:[%s168 + $0x90] sm:$0xff]
        %v188 = vld [vmem:[%s168 + $0x98] sm:$0xff]
        %v189 = vld [vmem:[%s168 + $0xa0] sm:$0xff]
        %v190 = vld [vmem:[%s168 + $0xa8] sm:$0xff]
        %v191 = vld [vmem:[%s168 + $0xb0] sm:$0xff]
        %v192 = vld [vmem:[%s168 + $0xb8] sm:$0xff]
        %v193 = vld [vmem:[%s168 + $0xc0] sm:$0xff]
        %v194 = vld [vmem:[%s168 + $0xc8] sm:$0xff]
        %v195 = vld [vmem:[%s168 + $0xd0] sm:$0xff]
        %v196 = vld [vmem:[%s168 + $0xd8] sm:$0xff]
        %v197 = vld [vmem:[%s168 + $0xe0] sm:$0xff]
        %v198 = vld [vmem:[%s168 + $0xe8] sm:$0xff]
        %v199 = vld [vmem:[%s168 + $0xf0] sm:$0xff]
        %v200 = vld [vmem:[%s168 + $0xf8] sm:$0xff]
        %v201 = vld [vmem:[%s1] sm:$0xff]
        %v202 = vld [vmem:[%s1 + $0x8] sm:$0xf]
        %v205 = vcombine.high %v201, %v201
        %vm206 = vcmask 31744
        %v208 = vsel %vm206, %v169, 0
        %v211 = vsel %vm206, %v170, 0
        %v214 = vsel %vm206, %v171, 0
        %v217 = vsel %vm206, %v172, 0
        %v220 = vsel %vm206, %v173, 0
        %v223 = vsel %vm206, %v174, 0
        %v226 = vsel %vm206, %v175, 0
        %v229 = vsel %vm206, %v176, 0
        %v232 = vsel %vm206, %v177, 0
        %v235 = vsel %vm206, %v178, 0
        %v238 = vsel %vm206, %v179, 0
        %v241 = vsel %vm206, %v180, 0
        %v244 = vsel %vm206, %v181, 0
        %v247 = vsel %vm206, %v182, 0
        %v250 = vsel %vm206, %v183, 0
        %v253 = vsel %vm206, %v184, 0
        %v256 = vsel %vm206, %v185, 0
        %v259 = vsel %vm206, %v186, 0
        %v262 = vsel %vm206, %v187, 0
        %v265 = vsel %vm206, %v188, 0
        %v268 = vsel %vm206, %v189, 0
        %v271 = vsel %vm206, %v190, 0
        %v274 = vsel %vm206, %v191, 0
        %v277 = vsel %vm206, %v192, 0
        %v280 = vsel %vm206, %v193, 0
        %v283 = vsel %vm206, %v194, 0
        %v286 = vsel %vm206, %v195, 0
        %v289 = vsel %vm206, %v196, 0
        %v292 = vsel %vm206, %v197, 0
        %v295 = vsel %vm206, %v198, 0
        %v298 = vsel %vm206, %v199, 0
        %v301 = vsel %vm206, %v200, 0
        %vm303 = vcmask 1043456
        %v304 = vsel %vm303, %v201, 0
        %v306 = vsel %vm303, %v205, 0
        %v308 = vsel %vm303, %v202, 0
        %310 = vmatprep.subr.mxu0 0.0
        %311 = vmatpush1.msra.mxu0 0.0
        %312 = vmatprep.subr.mxu0 0.0
        %313 = vmatpush1.msra.mxu0 0.0
        %314 = vmatprep.subr.mxu0 0.0
        %315 = vmatpush1.msra.mxu0 0.0
        %316 = vmatprep.subr.mxu0 0.0
        %317 = vmatpush1.msra.mxu0 0.0
        %318 = vmatprep.subr.mxu0 0.0
        %319 = vmatpush1.msra.mxu0 0.0
        %320 = vmatprep.subr.mxu0 0.0
        %321 = vmatpush1.msra.mxu0 0.0
        %322 = vmatprep.subr.mxu0 0.0
        %323 = vmatpush1.msra.mxu0 0.0
        %324 = vmatprep.subr.mxu0 0.0
        %325 = vmatpush1.msra.mxu0 0.0
        %326 = vmatprep.subr.mxu0 0.0
        %327 = vmatpush1.msra.mxu0 0.0
        %328 = vmatprep.subr.mxu0 0.0
        %329 = vmatpush1.msra.mxu0 0.0
        %330 = vmatprep.subr.mxu0 0.0
        %331 = vmatpush1.msra.mxu0 0.0
        %332 = vmatprep.subr.mxu0 0.0
        %333 = vmatpush1.msra.mxu0 0.0
        %334 = vmatprep.subr.mxu0 0.0
        %335 = vmatpush1.msra.mxu0 0.0
        %336 = vmatprep.subr.mxu0 0.0
        %337 = vmatpush1.msra.mxu0 0.0
        %338 = vmatprep.subr.mxu0 0.0
        %339 = vmatpush1.msra.mxu0 0.0
        %340 = vmatprep.subr.mxu0 %v306
        %341 = vmatpush1.msra.mxu0 %v304
        %342 = vmatprep.subr.mxu0 0.0
        %343 = vmatpush2.msra.mxu0 0.0
        %344 = vmatprep.subr.mxu0 0.0
        %345 = vmatpush2.msra.mxu0 0.0
        %346 = vmatprep.subr.mxu0 0.0
        %347 = vmatpush2.msra.mxu0 0.0
        %348 = vmatprep.subr.mxu0 0.0
        %349 = vmatpush2.msra.mxu0 0.0
        %350 = vmatprep.subr.mxu0 0.0
        %351 = vmatpush2.msra.mxu0 0.0
        %352 = vmatprep.subr.mxu0 0.0
        %353 = vmatpush2.msra.mxu0 0.0
        %354 = vmatprep.subr.mxu0 0.0
        %355 = vmatpush2.msra.mxu0 0.0
        %356 = vmatprep.subr.mxu0 0.0
        %357 = vmatpush2.msra.mxu0 0.0
        %358 = vmatprep.subr.mxu0 0.0
        %359 = vmatpush2.msra.mxu0 0.0
        %360 = vmatprep.subr.mxu0 0.0
        %361 = vmatpush2.msra.mxu0 0.0
        %362 = vmatprep.subr.mxu0 0.0
        %363 = vmatpush2.msra.mxu0 0.0
        %364 = vmatprep.subr.mxu0 0.0
        %365 = vmatpush2.msra.mxu0 0.0
        %366 = vmatprep.subr.mxu0 0.0
        %367 = vmatpush2.msra.mxu0 0.0
        %368 = vmatprep.subr.mxu0 0.0
        %369 = vmatpush2.msra.mxu0 0.0
        %370 = vmatprep.subr.mxu0 0.0
        %371 = vmatpush2.msra.mxu0 0.0
        %372 = vmatprep.subr.mxu0 0.0
        %373 = vmatpush2.msra.mxu0 0.0
        %374 = vmatprep.mubr.f32.mxu0 0.0
        %375 = vmatmul.mubr.f32.gmra.mxu0 %v208
        %v376 = vpop.f32.mrf.mxu0
        %v377 = vadd.f32 0.0, %v376
        %v378 = vpop.f32.mrf.mxu0
        %v379 = vadd.f32 0.0, %v378
        %380 = vmatprep.mubr.f32.mxu0 0.0
        %381 = vmatmul.mubr.f32.gmra.mxu0 %v211
        %v382 = vpop.f32.mrf.mxu0
        %v383 = vadd.f32 0.0, %v382
        %v384 = vpop.f32.mrf.mxu0
        %v385 = vadd.f32 0.0, %v384
        %386 = vmatprep.mubr.f32.mxu0 0.0
        %387 = vmatmul.mubr.f32.gmra.mxu0 %v214
        %v388 = vpop.f32.mrf.mxu0
        %v389 = vadd.f32 0.0, %v388
        %v390 = vpop.f32.mrf.mxu0
        %v391 = vadd.f32 0.0, %v390
        %392 = vmatprep.mubr.f32.mxu0 0.0
        %393 = vmatmul.mubr.f32.gmra.mxu0 %v217
        %v394 = vpop.f32.mrf.mxu0
        %v395 = vadd.f32 0.0, %v394
        %v396 = vpop.f32.mrf.mxu0
        %v397 = vadd.f32 0.0, %v396
        %398 = vmatprep.mubr.f32.mxu0 0.0
        %399 = vmatmul.mubr.f32.gmra.mxu0 %v220
        %v400 = vpop.f32.mrf.mxu0
        %v401 = vadd.f32 0.0, %v400
        %v402 = vpop.f32.mrf.mxu0
        %v403 = vadd.f32 0.0, %v402
        %404 = vmatprep.mubr.f32.mxu0 0.0
        %405 = vmatmul.mubr.f32.gmra.mxu0 %v223
        %v406 = vpop.f32.mrf.mxu0
        %v407 = vadd.f32 0.0, %v406
        %v408 = vpop.f32.mrf.mxu0
        %v409 = vadd.f32 0.0, %v408
        %410 = vmatprep.mubr.f32.mxu0 0.0
        %411 = vmatmul.mubr.f32.gmra.mxu0 %v226
        %v412 = vpop.f32.mrf.mxu0
        %v413 = vadd.f32 0.0, %v412
        %v414 = vpop.f32.mrf.mxu0
        %v415 = vadd.f32 0.0, %v414
        %416 = vmatprep.mubr.f32.mxu0 0.0
        %417 = vmatmul.mubr.f32.gmra.mxu0 %v229
        %v418 = vpop.f32.mrf.mxu0
        %v419 = vadd.f32 0.0, %v418
        %v420 = vpop.f32.mrf.mxu0
        %v421 = vadd.f32 0.0, %v420
        %422 = vmatprep.mubr.f32.mxu0 0.0
        %423 = vmatmul.mubr.f32.gmra.mxu0 %v232
        %v424 = vpop.f32.mrf.mxu0
        %v425 = vadd.f32 0.0, %v424
        %v426 = vpop.f32.mrf.mxu0
        %v427 = vadd.f32 0.0, %v426
        %428 = vmatprep.mubr.f32.mxu0 0.0
        %429 = vmatmul.mubr.f32.gmra.mxu0 %v235
        %v430 = vpop.f32.mrf.mxu0
        %v431 = vadd.f32 0.0, %v430
        %v432 = vpop.f32.mrf.mxu0
        %v433 = vadd.f32 0.0, %v432
        %434 = vmatprep.mubr.f32.mxu0 0.0
        %435 = vmatmul.mubr.f32.gmra.mxu0 %v238
        %v436 = vpop.f32.mrf.mxu0
        %v437 = vadd.f32 0.0, %v436
        %v438 = vpop.f32.mrf.mxu0
        %v439 = vadd.f32 0.0, %v438
        %440 = vmatprep.mubr.f32.mxu0 0.0
        %441 = vmatmul.mubr.f32.gmra.mxu0 %v241
        %v442 = vpop.f32.mrf.mxu0
        %v443 = vadd.f32 0.0, %v442
        %v444 = vpop.f32.mrf.mxu0
        %v445 = vadd.f32 0.0, %v444
        %446 = vmatprep.mubr.f32.mxu0 0.0
        %447 = vmatmul.mubr.f32.gmra.mxu0 %v244
        %v448 = vpop.f32.mrf.mxu0
        %v449 = vadd.f32 0.0, %v448
        %v450 = vpop.f32.mrf.mxu0
        %v451 = vadd.f32 0.0, %v450
        %452 = vmatprep.mubr.f32.mxu0 0.0
        %453 = vmatmul.mubr.f32.gmra.mxu0 %v247
        %v454 = vpop.f32.mrf.mxu0
        %v455 = vadd.f32 0.0, %v454
        %v456 = vpop.f32.mrf.mxu0
        %v457 = vadd.f32 0.0, %v456
        %458 = vmatprep.mubr.f32.mxu0 0.0
        %459 = vmatmul.mubr.f32.gmra.mxu0 %v250
        %v460 = vpop.f32.mrf.mxu0
        %v461 = vadd.f32 0.0, %v460
        %v462 = vpop.f32.mrf.mxu0
        %v463 = vadd.f32 0.0, %v462
        %464 = vmatprep.mubr.f32.mxu0 0.0
        %465 = vmatmul.mubr.f32.gmra.mxu0 %v253
        %v466 = vpop.f32.mrf.mxu0
        %v467 = vadd.f32 0.0, %v466
        %v468 = vpop.f32.mrf.mxu0
        %v469 = vadd.f32 0.0, %v468
        %470 = vmatprep.mubr.f32.mxu0 0.0
        %471 = vmatmul.mubr.f32.gmra.mxu0 %v256
        %v472 = vpop.f32.mrf.mxu0
        %v473 = vadd.f32 0.0, %v472
        %v474 = vpop.f32.mrf.mxu0
        %v475 = vadd.f32 0.0, %v474
        %476 = vmatprep.mubr.f32.mxu0 0.0
        %477 = vmatmul.mubr.f32.gmra.mxu0 %v259
        %v478 = vpop.f32.mrf.mxu0
        %v479 = vadd.f32 0.0, %v478
        %v480 = vpop.f32.mrf.mxu0
        %v481 = vadd.f32 0.0, %v480
        %482 = vmatprep.mubr.f32.mxu0 0.0
        %483 = vmatmul.mubr.f32.gmra.mxu0 %v262
        %v484 = vpop.f32.mrf.mxu0
        %v485 = vadd.f32 0.0, %v484
        %v486 = vpop.f32.mrf.mxu0
        %v487 = vadd.f32 0.0, %v486
        %488 = vmatprep.mubr.f32.mxu0 0.0
        %489 = vmatmul.mubr.f32.gmra.mxu0 %v265
        %v490 = vpop.f32.mrf.mxu0
        %v491 = vadd.f32 0.0, %v490
        %v492 = vpop.f32.mrf.mxu0
        %v493 = vadd.f32 0.0, %v492
        %494 = vmatprep.mubr.f32.mxu0 0.0
        %495 = vmatmul.mubr.f32.gmra.mxu0 %v268
        %v496 = vpop.f32.mrf.mxu0
        %v497 = vadd.f32 0.0, %v496
        %v498 = vpop.f32.mrf.mxu0
        %v499 = vadd.f32 0.0, %v498
        %500 = vmatprep.mubr.f32.mxu0 0.0
        %501 = vmatmul.mubr.f32.gmra.mxu0 %v271
        %v502 = vpop.f32.mrf.mxu0
        %v503 = vadd.f32 0.0, %v502
        %v504 = vpop.f32.mrf.mxu0
        %v505 = vadd.f32 0.0, %v504
        %506 = vmatprep.mubr.f32.mxu0 0.0
        %507 = vmatmul.mubr.f32.gmra.mxu0 %v274
        %v508 = vpop.f32.mrf.mxu0
        %v509 = vadd.f32 0.0, %v508
        %v510 = vpop.f32.mrf.mxu0
        %v511 = vadd.f32 0.0, %v510
        %512 = vmatprep.mubr.f32.mxu0 0.0
        %513 = vmatmul.mubr.f32.gmra.mxu0 %v277
        %v514 = vpop.f32.mrf.mxu0
        %v515 = vadd.f32 0.0, %v514
        %v516 = vpop.f32.mrf.mxu0
        %v517 = vadd.f32 0.0, %v516
        %518 = vmatprep.mubr.f32.mxu0 0.0
        %519 = vmatmul.mubr.f32.gmra.mxu0 %v280
        %v520 = vpop.f32.mrf.mxu0
        %v521 = vadd.f32 0.0, %v520
        %v522 = vpop.f32.mrf.mxu0
        %v523 = vadd.f32 0.0, %v522
        %524 = vmatprep.mubr.f32.mxu0 0.0
        %525 = vmatmul.mubr.f32.gmra.mxu0 %v283
        %v526 = vpop.f32.mrf.mxu0
        %v527 = vadd.f32 0.0, %v526
        %v528 = vpop.f32.mrf.mxu0
        %v529 = vadd.f32 0.0, %v528
        %530 = vmatprep.mubr.f32.mxu0 0.0
        %531 = vmatmul.mubr.f32.gmra.mxu0 %v286
        %v532 = vpop.f32.mrf.mxu0
        %v533 = vadd.f32 0.0, %v532
        %v534 = vpop.f32.mrf.mxu0
        %v535 = vadd.f32 0.0, %v534
        %536 = vmatprep.mubr.f32.mxu0 0.0
        %537 = vmatmul.mubr.f32.gmra.mxu0 %v289
        %v538 = vpop.f32.mrf.mxu0
        %v539 = vadd.f32 0.0, %v538
        %v540 = vpop.f32.mrf.mxu0
        %v541 = vadd.f32 0.0, %v540
        %542 = vmatprep.mubr.f32.mxu0 0.0
        %543 = vmatmul.mubr.f32.gmra.mxu0 %v292
        %v544 = vpop.f32.mrf.mxu0
        %v545 = vadd.f32 0.0, %v544
        %v546 = vpop.f32.mrf.mxu0
        %v547 = vadd.f32 0.0, %v546
        %548 = vmatprep.mubr.f32.mxu0 0.0
        %549 = vmatmul.mubr.f32.gmra.mxu0 %v295
        %v550 = vpop.f32.mrf.mxu0
        %v551 = vadd.f32 0.0, %v550
        %v552 = vpop.f32.mrf.mxu0
        %v553 = vadd.f32 0.0, %v552
        %554 = vmatprep.mubr.f32.mxu0 0.0
        %555 = vmatmul.mubr.f32.gmra.mxu0 %v298
        %v556 = vpop.f32.mrf.mxu0
        %v557 = vadd.f32 0.0, %v556
        %v558 = vpop.f32.mrf.mxu0
        %v559 = vadd.f32 0.0, %v558
        %560 = vmatprep.mubr.f32.mxu0 0.0
        %561 = vmatmul.mubr.f32.gmra.mxu0 %v301
        %v562 = vpop.f32.mrf.mxu0
        %v563 = vadd.f32 0.0, %v562
        %v564 = vpop.f32.mrf.mxu0
        %v565 = vadd.f32 0.0, %v564
        %566 = vdwg.mxu0
        %567 = vmatprep.subr.mxu0 0.0
        %568 = vmatpush1.msra.mxu0 0.0
        %569 = vmatprep.subr.mxu0 0.0
        %570 = vmatpush1.msra.mxu0 0.0
        %571 = vmatprep.subr.mxu0 0.0
        %572 = vmatpush1.msra.mxu0 0.0
        %573 = vmatprep.subr.mxu0 0.0
        %574 = vmatpush1.msra.mxu0 0.0
        %575 = vmatprep.subr.mxu0 0.0
        %576 = vmatpush1.msra.mxu0 0.0
        %577 = vmatprep.subr.mxu0 0.0
        %578 = vmatpush1.msra.mxu0 0.0
        %579 = vmatprep.subr.mxu0 0.0
        %580 = vmatpush1.msra.mxu0 0.0
        %581 = vmatprep.subr.mxu0 0.0
        %582 = vmatpush1.msra.mxu0 0.0
        %583 = vmatprep.subr.mxu0 0.0
        %584 = vmatpush1.msra.mxu0 0.0
        %585 = vmatprep.subr.mxu0 0.0
        %586 = vmatpush1.msra.mxu0 0.0
        %587 = vmatprep.subr.mxu0 0.0
        %588 = vmatpush1.msra.mxu0 0.0
        %589 = vmatprep.subr.mxu0 0.0
        %590 = vmatpush1.msra.mxu0 0.0
        %591 = vmatprep.subr.mxu0 0.0
        %592 = vmatpush1.msra.mxu0 0.0
        %593 = vmatprep.subr.mxu0 0.0
        %594 = vmatpush1.msra.mxu0 0.0
        %595 = vmatprep.subr.mxu0 0.0
        %596 = vmatpush1.msra.mxu0 0.0
        %597 = vmatprep.subr.mxu0 0.0
        %598 = vmatpush1.msra.mxu0 %v308
        %599 = vmatprep.subr.mxu0 0.0
        %600 = vmatpush2.msra.mxu0 0.0
        %601 = vmatprep.subr.mxu0 0.0
        %602 = vmatpush2.msra.mxu0 0.0
        %603 = vmatprep.subr.mxu0 0.0
        %604 = vmatpush2.msra.mxu0 0.0
        %605 = vmatprep.subr.mxu0 0.0
        %606 = vmatpush2.msra.mxu0 0.0
        %607 = vmatprep.subr.mxu0 0.0
        %608 = vmatpush2.msra.mxu0 0.0
        %609 = vmatprep.subr.mxu0 0.0
        %610 = vmatpush2.msra.mxu0 0.0
        %611 = vmatprep.subr.mxu0 0.0
        %612 = vmatpush2.msra.mxu0 0.0
        %613 = vmatprep.subr.mxu0 0.0
        %614 = vmatpush2.msra.mxu0 0.0
        %615 = vmatprep.subr.mxu0 0.0
        %616 = vmatpush2.msra.mxu0 0.0
        %617 = vmatprep.subr.mxu0 0.0
        %618 = vmatpush2.msra.mxu0 0.0
        %619 = vmatprep.subr.mxu0 0.0
        %620 = vmatpush2.msra.mxu0 0.0
        %621 = vmatprep.subr.mxu0 0.0
        %622 = vmatpush2.msra.mxu0 0.0
        %623 = vmatprep.subr.mxu0 0.0
        %624 = vmatpush2.msra.mxu0 0.0
        %625 = vmatprep.subr.mxu0 0.0
        %626 = vmatpush2.msra.mxu0 0.0
        %627 = vmatprep.subr.mxu0 0.0
        %628 = vmatpush2.msra.mxu0 0.0
        %629 = vmatprep.subr.mxu0 0.0
        %630 = vmatpush2.msra.mxu0 0.0
        %631 = vmatprep.mubr.f32.mxu0 0.0
        %632 = vmatmul.mubr.f32.gmra.mxu0 %v208
        %v633 = vpop.f32.mrf.mxu0
        %v634 = vadd.f32 0.0, %v633
        %v635 = vpop.f32.mrf.mxu0
        %636 = vmatprep.mubr.f32.mxu0 0.0
        %637 = vmatmul.mubr.f32.gmra.mxu0 %v211
        %v638 = vpop.f32.mrf.mxu0
        %v639 = vadd.f32 0.0, %v638
        %v640 = vpop.f32.mrf.mxu0
        %641 = vmatprep.mubr.f32.mxu0 0.0
        %642 = vmatmul.mubr.f32.gmra.mxu0 %v214
        %v643 = vpop.f32.mrf.mxu0
        %v644 = vadd.f32 0.0, %v643
        %v645 = vpop.f32.mrf.mxu0
        %646 = vmatprep.mubr.f32.mxu0 0.0
        %647 = vmatmul.mubr.f32.gmra.mxu0 %v217
        %v648 = vpop.f32.mrf.mxu0
        %v649 = vadd.f32 0.0, %v648
        %v650 = vpop.f32.mrf.mxu0
        %651 = vmatprep.mubr.f32.mxu0 0.0
        %652 = vmatmul.mubr.f32.gmra.mxu0 %v220
        %v653 = vpop.f32.mrf.mxu0
        %v654 = vadd.f32 0.0, %v653
        %v655 = vpop.f32.mrf.mxu0
        %656 = vmatprep.mubr.f32.mxu0 0.0
        %657 = vmatmul.mubr.f32.gmra.mxu0 %v223
        %v658 = vpop.f32.mrf.mxu0
        %v659 = vadd.f32 0.0, %v658
        %v660 = vpop.f32.mrf.mxu0
        %661 = vmatprep.mubr.f32.mxu0 0.0
        %662 = vmatmul.mubr.f32.gmra.mxu0 %v226
        %v663 = vpop.f32.mrf.mxu0
        %v664 = vadd.f32 0.0, %v663
        %v665 = vpop.f32.mrf.mxu0
        %666 = vmatprep.mubr.f32.mxu0 0.0
        %667 = vmatmul.mubr.f32.gmra.mxu0 %v229
        %v668 = vpop.f32.mrf.mxu0
        %v669 = vadd.f32 0.0, %v668
        %v670 = vpop.f32.mrf.mxu0
        %671 = vmatprep.mubr.f32.mxu0 0.0
        %672 = vmatmul.mubr.f32.gmra.mxu0 %v232
        %v673 = vpop.f32.mrf.mxu0
        %v674 = vadd.f32 0.0, %v673
        %v675 = vpop.f32.mrf.mxu0
        %676 = vmatprep.mubr.f32.mxu0 0.0
        %677 = vmatmul.mubr.f32.gmra.mxu0 %v235
        %v678 = vpop.f32.mrf.mxu0
        %v679 = vadd.f32 0.0, %v678
        %v680 = vpop.f32.mrf.mxu0
        %681 = vmatprep.mubr.f32.mxu0 0.0
        %682 = vmatmul.mubr.f32.gmra.mxu0 %v238
        %v683 = vpop.f32.mrf.mxu0
        %v684 = vadd.f32 0.0, %v683
        %v685 = vpop.f32.mrf.mxu0
        %686 = vmatprep.mubr.f32.mxu0 0.0
        %687 = vmatmul.mubr.f32.gmra.mxu0 %v241
        %v688 = vpop.f32.mrf.mxu0
        %v689 = vadd.f32 0.0, %v688
        %v690 = vpop.f32.mrf.mxu0
        %691 = vmatprep.mubr.f32.mxu0 0.0
        %692 = vmatmul.mubr.f32.gmra.mxu0 %v244
        %v693 = vpop.f32.mrf.mxu0
        %v694 = vadd.f32 0.0, %v693
        %v695 = vpop.f32.mrf.mxu0
        %696 = vmatprep.mubr.f32.mxu0 0.0
        %697 = vmatmul.mubr.f32.gmra.mxu0 %v247
        %v698 = vpop.f32.mrf.mxu0
        %v699 = vadd.f32 0.0, %v698
        %v700 = vpop.f32.mrf.mxu0
        %701 = vmatprep.mubr.f32.mxu0 0.0
        %702 = vmatmul.mubr.f32.gmra.mxu0 %v250
        %v703 = vpop.f32.mrf.mxu0
        %v704 = vadd.f32 0.0, %v703
        %v705 = vpop.f32.mrf.mxu0
        %706 = vmatprep.mubr.f32.mxu0 0.0
        %707 = vmatmul.mubr.f32.gmra.mxu0 %v253
        %v708 = vpop.f32.mrf.mxu0
        %v709 = vadd.f32 0.0, %v708
        %v710 = vpop.f32.mrf.mxu0
        %711 = vmatprep.mubr.f32.mxu0 0.0
        %712 = vmatmul.mubr.f32.gmra.mxu0 %v256
        %v713 = vpop.f32.mrf.mxu0
        %v714 = vadd.f32 0.0, %v713
        %v715 = vpop.f32.mrf.mxu0
        %716 = vmatprep.mubr.f32.mxu0 0.0
        %717 = vmatmul.mubr.f32.gmra.mxu0 %v259
        %v718 = vpop.f32.mrf.mxu0
        %v719 = vadd.f32 0.0, %v718
        %v720 = vpop.f32.mrf.mxu0
        %721 = vmatprep.mubr.f32.mxu0 0.0
        %722 = vmatmul.mubr.f32.gmra.mxu0 %v262
        %v723 = vpop.f32.mrf.mxu0
        %v724 = vadd.f32 0.0, %v723
        %v725 = vpop.f32.mrf.mxu0
        %726 = vmatprep.mubr.f32.mxu0 0.0
        %727 = vmatmul.mubr.f32.gmra.mxu0 %v265
        %v728 = vpop.f32.mrf.mxu0
        %v729 = vadd.f32 0.0, %v728
        %v730 = vpop.f32.mrf.mxu0
        %731 = vmatprep.mubr.f32.mxu0 0.0
        %732 = vmatmul.mubr.f32.gmra.mxu0 %v268
        %v733 = vpop.f32.mrf.mxu0
        %v734 = vadd.f32 0.0, %v733
        %v735 = vpop.f32.mrf.mxu0
        %736 = vmatprep.mubr.f32.mxu0 0.0
        %737 = vmatmul.mubr.f32.gmra.mxu0 %v271
        %v738 = vpop.f32.mrf.mxu0
        %v739 = vadd.f32 0.0, %v738
        %v740 = vpop.f32.mrf.mxu0
        %741 = vmatprep.mubr.f32.mxu0 0.0
        %742 = vmatmul.mubr.f32.gmra.mxu0 %v274
        %v743 = vpop.f32.mrf.mxu0
        %v744 = vadd.f32 0.0, %v743
        %v745 = vpop.f32.mrf.mxu0
        %746 = vmatprep.mubr.f32.mxu0 0.0
        %747 = vmatmul.mubr.f32.gmra.mxu0 %v277
        %v748 = vpop.f32.mrf.mxu0
        %v749 = vadd.f32 0.0, %v748
        %v750 = vpop.f32.mrf.mxu0
        %751 = vmatprep.mubr.f32.mxu0 0.0
        %752 = vmatmul.mubr.f32.gmra.mxu0 %v280
        %v753 = vpop.f32.mrf.mxu0
        %v754 = vadd.f32 0.0, %v753
        %v755 = vpop.f32.mrf.mxu0
        %756 = vmatprep.mubr.f32.mxu0 0.0
        %757 = vmatmul.mubr.f32.gmra.mxu0 %v283
        %v758 = vpop.f32.mrf.mxu0
        %v759 = vadd.f32 0.0, %v758
        %v760 = vpop.f32.mrf.mxu0
        %761 = vmatprep.mubr.f32.mxu0 0.0
        %762 = vmatmul.mubr.f32.gmra.mxu0 %v286
        %v763 = vpop.f32.mrf.mxu0
        %v764 = vadd.f32 0.0, %v763
        %v765 = vpop.f32.mrf.mxu0
        %766 = vmatprep.mubr.f32.mxu0 0.0
        %767 = vmatmul.mubr.f32.gmra.mxu0 %v289
        %v768 = vpop.f32.mrf.mxu0
        %v769 = vadd.f32 0.0, %v768
        %v770 = vpop.f32.mrf.mxu0
        %771 = vmatprep.mubr.f32.mxu0 0.0
        %772 = vmatmul.mubr.f32.gmra.mxu0 %v292
        %v773 = vpop.f32.mrf.mxu0
        %v774 = vadd.f32 0.0, %v773
        %v775 = vpop.f32.mrf.mxu0
        %776 = vmatprep.mubr.f32.mxu0 0.0
        %777 = vmatmul.mubr.f32.gmra.mxu0 %v295
        %v778 = vpop.f32.mrf.mxu0
        %v779 = vadd.f32 0.0, %v778
        %v780 = vpop.f32.mrf.mxu0
        %781 = vmatprep.mubr.f32.mxu0 0.0
        %782 = vmatmul.mubr.f32.gmra.mxu0 %v298
        %v783 = vpop.f32.mrf.mxu0
        %v784 = vadd.f32 0.0, %v783
        %v785 = vpop.f32.mrf.mxu0
        %786 = vmatprep.mubr.f32.mxu0 0.0
        %787 = vmatmul.mubr.f32.gmra.mxu0 %v301
        %v788 = vpop.f32.mrf.mxu0
        %v789 = vadd.f32 0.0, %v788
        %v790 = vpop.f32.mrf.mxu0
        %791 = vdwg.mxu0
        %v792 = vld [vmem:[%s2] sm:$0xff]
        %v793 = vld [vmem:[%s2 + $0x8] sm:$0xff]
        %v794 = vld [vmem:[%s2 + $0x10] sm:$0xff]
        %v795 = vld [vmem:[%s2 + $0x18] sm:$0xff]
        %v796 = vld [vmem:[%s2 + $0x20] sm:$0xff]
        %v797 = vld [vmem:[%s2 + $0x28] sm:$0xff]
        %v798 = vld [vmem:[%s2 + $0x30] sm:$0xff]
        %v799 = vld [vmem:[%s2 + $0x38] sm:$0xff]
        %v800 = vld [vmem:[%s2 + $0x40] sm:$0xff]
        %v801 = vld [vmem:[%s2 + $0x48] sm:$0xff]
        %v802 = vld [vmem:[%s2 + $0x50] sm:$0xff]
        %v803 = vld [vmem:[%s2 + $0x58] sm:$0xff]
        %v804 = vld [vmem:[%s2 + $0x60] sm:$0xff]
        %v805 = vld [vmem:[%s2 + $0x68] sm:$0xff]
        %v806 = vld [vmem:[%s2 + $0x70] sm:$0xff]
        %v807 = vld [vmem:[%s2 + $0x78] sm:$0xff]
        %v808 = vld [vmem:[%s2 + $0x80] sm:$0xff]
        %v809 = vld [vmem:[%s2 + $0x88] sm:$0xff]
        %v810 = vld [vmem:[%s2 + $0x90] sm:$0xff]
        %v811 = vld [vmem:[%s2 + $0x98] sm:$0xff]
        %v812 = vld [vmem:[%s2 + $0xa0] sm:$0xff]
        %v813 = vld [vmem:[%s2 + $0xa8] sm:$0xff]
        %v814 = vld [vmem:[%s2 + $0xb0] sm:$0xff]
        %v815 = vld [vmem:[%s2 + $0xb8] sm:$0xff]
        %v816 = vld [vmem:[%s2 + $0xc0] sm:$0xff]
        %v817 = vld [vmem:[%s2 + $0xc8] sm:$0xff]
        %v818 = vld [vmem:[%s2 + $0xd0] sm:$0xff]
        %v819 = vld [vmem:[%s2 + $0xd8] sm:$0xff]
        %v820 = vld [vmem:[%s2 + $0xe0] sm:$0xff]
        %v821 = vld [vmem:[%s2 + $0xe8] sm:$0xff]
        %v822 = vld [vmem:[%s2 + $0xf0] sm:$0xff]
        %v823 = vld [vmem:[%s2 + $0xf8] sm:$0xff]
        %v824 = vadd.f32 %v379, %v792
        %v825 = vadd.f32 %v385, %v793
        %v826 = vadd.f32 %v391, %v794
        %v827 = vadd.f32 %v397, %v795
        %v828 = vadd.f32 %v403, %v796
        %v829 = vadd.f32 %v409, %v797
        %v830 = vadd.f32 %v415, %v798
        %v831 = vadd.f32 %v421, %v799
        %v832 = vadd.f32 %v427, %v800
        %v833 = vadd.f32 %v433, %v801
        %v834 = vadd.f32 %v439, %v802
        %v835 = vadd.f32 %v445, %v803
        %v836 = vadd.f32 %v451, %v804
        %v837 = vadd.f32 %v457, %v805
        %v838 = vadd.f32 %v463, %v806
        %v839 = vadd.f32 %v469, %v807
        %v840 = vadd.f32 %v475, %v808
        %v841 = vadd.f32 %v481, %v809
        %v842 = vadd.f32 %v487, %v810
        %v843 = vadd.f32 %v493, %v811
        %v844 = vadd.f32 %v499, %v812
        %v845 = vadd.f32 %v505, %v813
        %v846 = vadd.f32 %v511, %v814
        %v847 = vadd.f32 %v517, %v815
        %v848 = vadd.f32 %v523, %v816
        %v849 = vadd.f32 %v529, %v817
        %v850 = vadd.f32 %v535, %v818
        %v851 = vadd.f32 %v541, %v819
        %v852 = vadd.f32 %v547, %v820
        %v853 = vadd.f32 %v553, %v821
        %v854 = vadd.f32 %v559, %v822
        %v855 = vadd.f32 %v565, %v823
        %v856 = vmul.f32 %v824, 0.17677669
        %v857 = vmul.f32 %v825, 0.17677669
        %v858 = vmul.f32 %v826, 0.17677669
        %v859 = vmul.f32 %v827, 0.17677669
        %v860 = vmul.f32 %v828, 0.17677669
        %v861 = vmul.f32 %v829, 0.17677669
        %v862 = vmul.f32 %v830, 0.17677669
        %v863 = vmul.f32 %v831, 0.17677669
        %v864 = vmul.f32 %v832, 0.17677669
        %v865 = vmul.f32 %v833, 0.17677669
        %v866 = vmul.f32 %v834, 0.17677669
        %v867 = vmul.f32 %v835, 0.17677669
        %v868 = vmul.f32 %v836, 0.17677669
        %v869 = vmul.f32 %v837, 0.17677669
        %v870 = vmul.f32 %v838, 0.17677669
        %v871 = vmul.f32 %v839, 0.17677669
        %v872 = vmul.f32 %v840, 0.17677669
        %v873 = vmul.f32 %v841, 0.17677669
        %v874 = vmul.f32 %v842, 0.17677669
        %v875 = vmul.f32 %v843, 0.17677669
        %v876 = vmul.f32 %v844, 0.17677669
        %v877 = vmul.f32 %v845, 0.17677669
        %v878 = vmul.f32 %v846, 0.17677669
        %v879 = vmul.f32 %v847, 0.17677669
        %v880 = vmul.f32 %v848, 0.17677669
        %v881 = vmul.f32 %v849, 0.17677669
        %v882 = vmul.f32 %v850, 0.17677669
        %v883 = vmul.f32 %v851, 0.17677669
        %v884 = vmul.f32 %v852, 0.17677669
        %v885 = vmul.f32 %v853, 0.17677669
        %v886 = vmul.f32 %v854, 0.17677669
        %v887 = vmul.f32 %v855, 0.17677669
        %vm888 = vcmask 261120
        %v890 = vsel %vm888, %v377, 0
        %v893 = vsel %vm888, %v383, 0
        %v896 = vsel %vm888, %v389, 0
        %v899 = vsel %vm888, %v395, 0
        %v902 = vsel %vm888, %v401, 0
        %v905 = vsel %vm888, %v407, 0
        %v908 = vsel %vm888, %v413, 0
        %v911 = vsel %vm888, %v419, 0
        %v914 = vsel %vm888, %v425, 0
        %v917 = vsel %vm888, %v431, 0
        %v920 = vsel %vm888, %v437, 0
        %v923 = vsel %vm888, %v443, 0
        %v926 = vsel %vm888, %v449, 0
        %v929 = vsel %vm888, %v455, 0
        %v932 = vsel %vm888, %v461, 0
        %v935 = vsel %vm888, %v467, 0
        %v938 = vsel %vm888, %v473, 0
        %v941 = vsel %vm888, %v479, 0
        %v944 = vsel %vm888, %v485, 0
        %v947 = vsel %vm888, %v491, 0
        %v950 = vsel %vm888, %v497, 0
        %v953 = vsel %vm888, %v503, 0
        %v956 = vsel %vm888, %v509, 0
        %v959 = vsel %vm888, %v515, 0
        %v962 = vsel %vm888, %v521, 0
        %v965 = vsel %vm888, %v527, 0
        %v968 = vsel %vm888, %v533, 0
        %v971 = vsel %vm888, %v539, 0
        %v974 = vsel %vm888, %v545, 0
        %v977 = vsel %vm888, %v551, 0
        %v980 = vsel %vm888, %v557, 0
        %v983 = vsel %vm888, %v563, 0
        %v986 = vsel %vm888, %v856, 0
        %v989 = vsel %vm888, %v857, 0
        %v992 = vsel %vm888, %v858, 0
        %v995 = vsel %vm888, %v859, 0
        %v998 = vsel %vm888, %v860, 0
        %v1001 = vsel %vm888, %v861, 0
        %v1004 = vsel %vm888, %v862, 0
        %v1007 = vsel %vm888, %v863, 0
        %v1010 = vsel %vm888, %v864, 0
        %v1013 = vsel %vm888, %v865, 0
        %v1016 = vsel %vm888, %v866, 0
        %v1019 = vsel %vm888, %v867, 0
        %v1022 = vsel %vm888, %v868, 0
        %v1025 = vsel %vm888, %v869, 0
        %v1028 = vsel %vm888, %v870, 0
        %v1031 = vsel %vm888, %v871, 0
        %v1034 = vsel %vm888, %v872, 0
        %v1037 = vsel %vm888, %v873, 0
        %v1040 = vsel %vm888, %v874, 0
        %v1043 = vsel %vm888, %v875, 0
        %v1046 = vsel %vm888, %v876, 0
        %v1049 = vsel %vm888, %v877, 0
        %v1052 = vsel %vm888, %v878, 0
        %v1055 = vsel %vm888, %v879, 0
        %v1058 = vsel %vm888, %v880, 0
        %v1061 = vsel %vm888, %v881, 0
        %v1064 = vsel %vm888, %v882, 0
        %v1067 = vsel %vm888, %v883, 0
        %v1070 = vsel %vm888, %v884, 0
        %v1073 = vsel %vm888, %v885, 0
        %v1076 = vsel %vm888, %v886, 0
        %v1079 = vsel %vm888, %v887, 0
        %1081 = vmatprep.subr.mxu0 0.0
        %1082 = vmatpush1.xpose.msra.mxu0 %v1031
        %1083 = vmatprep.subr.mxu0 0.0
        %1084 = vmatpush1.xpose.msra.mxu0 %v1028
        %1085 = vmatprep.subr.mxu0 0.0
        %1086 = vmatpush1.xpose.msra.mxu0 %v1025
        %1087 = vmatprep.subr.mxu0 0.0
        %1088 = vmatpush1.xpose.msra.mxu0 %v1022
        %1089 = vmatprep.subr.mxu0 0.0
        %1090 = vmatpush1.xpose.msra.mxu0 %v1019
        %1091 = vmatprep.subr.mxu0 0.0
        %1092 = vmatpush1.xpose.msra.mxu0 %v1016
        %1093 = vmatprep.subr.mxu0 0.0
        %1094 = vmatpush1.xpose.msra.mxu0 %v1013
        %1095 = vmatprep.subr.mxu0 0.0
        %1096 = vmatpush1.xpose.msra.mxu0 %v1010
        %1097 = vmatprep.subr.mxu0 0.0
        %1098 = vmatpush1.xpose.msra.mxu0 %v1007
        %1099 = vmatprep.subr.mxu0 0.0
        %1100 = vmatpush1.xpose.msra.mxu0 %v1004
        %1101 = vmatprep.subr.mxu0 0.0
        %1102 = vmatpush1.xpose.msra.mxu0 %v1001
        %1103 = vmatprep.subr.mxu0 0.0
        %1104 = vmatpush1.xpose.msra.mxu0 %v998
        %1105 = vmatprep.subr.mxu0 0.0
        %1106 = vmatpush1.xpose.msra.mxu0 %v995
        %1107 = vmatprep.subr.mxu0 0.0
        %1108 = vmatpush1.xpose.msra.mxu0 %v992
        %1109 = vmatprep.subr.mxu0 0.0
        %1110 = vmatpush1.xpose.msra.mxu0 %v989
        %1111 = vmatprep.subr.mxu0 0.0
        %1112 = vmatpush1.xpose.msra.mxu0 %v986
        %1113 = vmatprep.subr.mxu0 0.0
        %1114 = vmatpush2.xpose.msra.mxu0 %v1079
        %1115 = vmatprep.subr.mxu0 0.0
        %1116 = vmatpush2.xpose.msra.mxu0 %v1076
        %1117 = vmatprep.subr.mxu0 0.0
        %1118 = vmatpush2.xpose.msra.mxu0 %v1073
        %1119 = vmatprep.subr.mxu0 0.0
        %1120 = vmatpush2.xpose.msra.mxu0 %v1070
        %1121 = vmatprep.subr.mxu0 0.0
        %1122 = vmatpush2.xpose.msra.mxu0 %v1067
        %1123 = vmatprep.subr.mxu0 0.0
        %1124 = vmatpush2.xpose.msra.mxu0 %v1064
        %1125 = vmatprep.subr.mxu0 0.0
        %1126 = vmatpush2.xpose.msra.mxu0 %v1061
        %1127 = vmatprep.subr.mxu0 0.0
        %1128 = vmatpush2.xpose.msra.mxu0 %v1058
        %1129 = vmatprep.subr.mxu0 0.0
        %1130 = vmatpush2.xpose.msra.mxu0 %v1055
        %1131 = vmatprep.subr.mxu0 0.0
        %1132 = vmatpush2.xpose.msra.mxu0 %v1052
        %1133 = vmatprep.subr.mxu0 0.0
        %1134 = vmatpush2.xpose.msra.mxu0 %v1049
        %1135 = vmatprep.subr.mxu0 0.0
        %1136 = vmatpush2.xpose.msra.mxu0 %v1046
        %1137 = vmatprep.subr.mxu0 0.0
        %1138 = vmatpush2.xpose.msra.mxu0 %v1043
        %1139 = vmatprep.subr.mxu0 0.0
        %1140 = vmatpush2.xpose.msra.mxu0 %v1040
        %1141 = vmatprep.subr.mxu0 0.0
        %1142 = vmatpush2.xpose.msra.mxu0 %v1037
        %1143 = vmatprep.subr.mxu0 0.0
        %1144 = vmatpush2.xpose.msra.mxu0 %v1034
        %1145 = vmatprep.mubr.f32.mxu0 0.0
        %1146 = vmatmul.mubr.f32.gmra.mxu0 %v890
        %v1147 = vpop.f32.mrf.mxu0
        %v1148 = vadd.f32 0.0, %v1147
        %v1149 = vpop.f32.mrf.mxu0
        %v1150 = vadd.f32 0.0, %v1149
        %1151 = vmatprep.mubr.f32.mxu0 0.0
        %1152 = vmatmul.mubr.f32.gmra.mxu0 %v893
        %v1153 = vpop.f32.mrf.mxu0
        %v1154 = vadd.f32 0.0, %v1153
        %v1155 = vpop.f32.mrf.mxu0
        %v1156 = vadd.f32 0.0, %v1155
        %1157 = vmatprep.mubr.f32.mxu0 0.0
        %1158 = vmatmul.mubr.f32.gmra.mxu0 %v896
        %v1159 = vpop.f32.mrf.mxu0
        %v1160 = vadd.f32 0.0, %v1159
        %v1161 = vpop.f32.mrf.mxu0
        %v1162 = vadd.f32 0.0, %v1161
        %1163 = vmatprep.mubr.f32.mxu0 0.0
        %1164 = vmatmul.mubr.f32.gmra.mxu0 %v899
        %v1165 = vpop.f32.mrf.mxu0
        %v1166 = vadd.f32 0.0, %v1165
        %v1167 = vpop.f32.mrf.mxu0
        %v1168 = vadd.f32 0.0, %v1167
        %1169 = vmatprep.mubr.f32.mxu0 0.0
        %1170 = vmatmul.mubr.f32.gmra.mxu0 %v902
        %v1171 = vpop.f32.mrf.mxu0
        %v1172 = vadd.f32 0.0, %v1171
        %v1173 = vpop.f32.mrf.mxu0
        %v1174 = vadd.f32 0.0, %v1173
        %1175 = vmatprep.mubr.f32.mxu0 0.0
        %1176 = vmatmul.mubr.f32.gmra.mxu0 %v905
        %v1177 = vpop.f32.mrf.mxu0
        %v1178 = vadd.f32 0.0, %v1177
        %v1179 = vpop.f32.mrf.mxu0
        %v1180 = vadd.f32 0.0, %v1179
        %1181 = vmatprep.mubr.f32.mxu0 0.0
        %1182 = vmatmul.mubr.f32.gmra.mxu0 %v908
        %v1183 = vpop.f32.mrf.mxu0
        %v1184 = vadd.f32 0.0, %v1183
        %v1185 = vpop.f32.mrf.mxu0
        %v1186 = vadd.f32 0.0, %v1185
        %1187 = vmatprep.mubr.f32.mxu0 0.0
        %1188 = vmatmul.mubr.f32.gmra.mxu0 %v911
        %v1189 = vpop.f32.mrf.mxu0
        %v1190 = vadd.f32 0.0, %v1189
        %v1191 = vpop.f32.mrf.mxu0
        %v1192 = vadd.f32 0.0, %v1191
        %1193 = vmatprep.mubr.f32.mxu0 0.0
        %1194 = vmatmul.mubr.f32.gmra.mxu0 %v914
        %v1195 = vpop.f32.mrf.mxu0
        %v1196 = vadd.f32 0.0, %v1195
        %v1197 = vpop.f32.mrf.mxu0
        %v1198 = vadd.f32 0.0, %v1197
        %1199 = vmatprep.mubr.f32.mxu0 0.0
        %1200 = vmatmul.mubr.f32.gmra.mxu0 %v917
        %v1201 = vpop.f32.mrf.mxu0
        %v1202 = vadd.f32 0.0, %v1201
        %v1203 = vpop.f32.mrf.mxu0
        %v1204 = vadd.f32 0.0, %v1203
        %1205 = vmatprep.mubr.f32.mxu0 0.0
        %1206 = vmatmul.mubr.f32.gmra.mxu0 %v920
        %v1207 = vpop.f32.mrf.mxu0
        %v1208 = vadd.f32 0.0, %v1207
        %v1209 = vpop.f32.mrf.mxu0
        %v1210 = vadd.f32 0.0, %v1209
        %1211 = vmatprep.mubr.f32.mxu0 0.0
        %1212 = vmatmul.mubr.f32.gmra.mxu0 %v923
        %v1213 = vpop.f32.mrf.mxu0
        %v1214 = vadd.f32 0.0, %v1213
        %v1215 = vpop.f32.mrf.mxu0
        %v1216 = vadd.f32 0.0, %v1215
        %1217 = vmatprep.mubr.f32.mxu0 0.0
        %1218 = vmatmul.mubr.f32.gmra.mxu0 %v926
        %v1219 = vpop.f32.mrf.mxu0
        %v1220 = vadd.f32 0.0, %v1219
        %v1221 = vpop.f32.mrf.mxu0
        %v1222 = vadd.f32 0.0, %v1221
        %1223 = vmatprep.mubr.f32.mxu0 0.0
        %1224 = vmatmul.mubr.f32.gmra.mxu0 %v929
        %v1225 = vpop.f32.mrf.mxu0
        %v1226 = vadd.f32 0.0, %v1225
        %v1227 = vpop.f32.mrf.mxu0
        %v1228 = vadd.f32 0.0, %v1227
        %1229 = vmatprep.mubr.f32.mxu0 0.0
        %1230 = vmatmul.mubr.f32.gmra.mxu0 %v932
        %v1231 = vpop.f32.mrf.mxu0
        %v1232 = vadd.f32 0.0, %v1231
        %v1233 = vpop.f32.mrf.mxu0
        %v1234 = vadd.f32 0.0, %v1233
        %1235 = vmatprep.mubr.f32.mxu0 0.0
        %1236 = vmatmul.mubr.f32.gmra.mxu0 %v935
        %v1237 = vpop.f32.mrf.mxu0
        %v1238 = vadd.f32 0.0, %v1237
        %v1239 = vpop.f32.mrf.mxu0
        %v1240 = vadd.f32 0.0, %v1239
        %1241 = vmatprep.mubr.f32.mxu0 0.0
        %1242 = vmatmul.mubr.f32.gmra.mxu0 %v938
        %v1243 = vpop.f32.mrf.mxu0
        %v1244 = vadd.f32 0.0, %v1243
        %v1245 = vpop.f32.mrf.mxu0
        %v1246 = vadd.f32 0.0, %v1245
        %1247 = vmatprep.mubr.f32.mxu0 0.0
        %1248 = vmatmul.mubr.f32.gmra.mxu0 %v941
        %v1249 = vpop.f32.mrf.mxu0
        %v1250 = vadd.f32 0.0, %v1249
        %v1251 = vpop.f32.mrf.mxu0
        %v1252 = vadd.f32 0.0, %v1251
        %1253 = vmatprep.mubr.f32.mxu0 0.0
        %1254 = vmatmul.mubr.f32.gmra.mxu0 %v944
        %v1255 = vpop.f32.mrf.mxu0
        %v1256 = vadd.f32 0.0, %v1255
        %v1257 = vpop.f32.mrf.mxu0
        %v1258 = vadd.f32 0.0, %v1257
        %1259 = vmatprep.mubr.f32.mxu0 0.0
        %1260 = vmatmul.mubr.f32.gmra.mxu0 %v947
        %v1261 = vpop.f32.mrf.mxu0
        %v1262 = vadd.f32 0.0, %v1261
        %v1263 = vpop.f32.mrf.mxu0
        %v1264 = vadd.f32 0.0, %v1263
        %1265 = vmatprep.mubr.f32.mxu0 0.0
        %1266 = vmatmul.mubr.f32.gmra.mxu0 %v950
        %v1267 = vpop.f32.mrf.mxu0
        %v1268 = vadd.f32 0.0, %v1267
        %v1269 = vpop.f32.mrf.mxu0
        %v1270 = vadd.f32 0.0, %v1269
        %1271 = vmatprep.mubr.f32.mxu0 0.0
        %1272 = vmatmul.mubr.f32.gmra.mxu0 %v953
        %v1273 = vpop.f32.mrf.mxu0
        %v1274 = vadd.f32 0.0, %v1273
        %v1275 = vpop.f32.mrf.mxu0
        %v1276 = vadd.f32 0.0, %v1275
        %1277 = vmatprep.mubr.f32.mxu0 0.0
        %1278 = vmatmul.mubr.f32.gmra.mxu0 %v956
        %v1279 = vpop.f32.mrf.mxu0
        %v1280 = vadd.f32 0.0, %v1279
        %v1281 = vpop.f32.mrf.mxu0
        %v1282 = vadd.f32 0.0, %v1281
        %1283 = vmatprep.mubr.f32.mxu0 0.0
        %1284 = vmatmul.mubr.f32.gmra.mxu0 %v959
        %v1285 = vpop.f32.mrf.mxu0
        %v1286 = vadd.f32 0.0, %v1285
        %v1287 = vpop.f32.mrf.mxu0
        %v1288 = vadd.f32 0.0, %v1287
        %1289 = vmatprep.mubr.f32.mxu0 0.0
        %1290 = vmatmul.mubr.f32.gmra.mxu0 %v962
        %v1291 = vpop.f32.mrf.mxu0
        %v1292 = vadd.f32 0.0, %v1291
        %v1293 = vpop.f32.mrf.mxu0
        %v1294 = vadd.f32 0.0, %v1293
        %1295 = vmatprep.mubr.f32.mxu0 0.0
        %1296 = vmatmul.mubr.f32.gmra.mxu0 %v965
        %v1297 = vpop.f32.mrf.mxu0
        %v1298 = vadd.f32 0.0, %v1297
        %v1299 = vpop.f32.mrf.mxu0
        %v1300 = vadd.f32 0.0, %v1299
        %1301 = vmatprep.mubr.f32.mxu0 0.0
        %1302 = vmatmul.mubr.f32.gmra.mxu0 %v968
        %v1303 = vpop.f32.mrf.mxu0
        %v1304 = vadd.f32 0.0, %v1303
        %v1305 = vpop.f32.mrf.mxu0
        %v1306 = vadd.f32 0.0, %v1305
        %1307 = vmatprep.mubr.f32.mxu0 0.0
        %1308 = vmatmul.mubr.f32.gmra.mxu0 %v971
        %v1309 = vpop.f32.mrf.mxu0
        %v1310 = vadd.f32 0.0, %v1309
        %v1311 = vpop.f32.mrf.mxu0
        %v1312 = vadd.f32 0.0, %v1311
        %1313 = vmatprep.mubr.f32.mxu0 0.0
        %1314 = vmatmul.mubr.f32.gmra.mxu0 %v974
        %v1315 = vpop.f32.mrf.mxu0
        %v1316 = vadd.f32 0.0, %v1315
        %v1317 = vpop.f32.mrf.mxu0
        %v1318 = vadd.f32 0.0, %v1317
        %1319 = vmatprep.mubr.f32.mxu0 0.0
        %1320 = vmatmul.mubr.f32.gmra.mxu0 %v977
        %v1321 = vpop.f32.mrf.mxu0
        %v1322 = vadd.f32 0.0, %v1321
        %v1323 = vpop.f32.mrf.mxu0
        %v1324 = vadd.f32 0.0, %v1323
        %1325 = vmatprep.mubr.f32.mxu0 0.0
        %1326 = vmatmul.mubr.f32.gmra.mxu0 %v980
        %v1327 = vpop.f32.mrf.mxu0
        %v1328 = vadd.f32 0.0, %v1327
        %v1329 = vpop.f32.mrf.mxu0
        %v1330 = vadd.f32 0.0, %v1329
        %1331 = vmatprep.mubr.f32.mxu0 0.0
        %1332 = vmatmul.mubr.f32.gmra.mxu0 %v983
        %v1333 = vpop.f32.mrf.mxu0
        %v1334 = vadd.f32 0.0, %v1333
        %v1335 = vpop.f32.mrf.mxu0
        %v1336 = vadd.f32 0.0, %v1335
        %1337 = vdwg.mxu0
        %v1338 = vmax.f32 %v1148, %v1150
        %1339 = vmax.xlane.f32.xlu0 %v1338
        %v1340 = vpop.xlane.xlu0 %1339
        %v1341 = vmax.f32 %v1154, %v1156
        %1342 = vmax.xlane.f32.xlu0 %v1341
        %v1343 = vpop.xlane.xlu0 %1342
        %v1344 = vmax.f32 %v1160, %v1162
        %1345 = vmax.xlane.f32.xlu0 %v1344
        %v1346 = vpop.xlane.xlu0 %1345
        %v1347 = vmax.f32 %v1166, %v1168
        %1348 = vmax.xlane.f32.xlu0 %v1347
        %v1349 = vpop.xlane.xlu0 %1348
        %v1350 = vmax.f32 %v1172, %v1174
        %1351 = vmax.xlane.f32.xlu0 %v1350
        %v1352 = vpop.xlane.xlu0 %1351
        %v1353 = vmax.f32 %v1178, %v1180
        %1354 = vmax.xlane.f32.xlu0 %v1353
        %v1355 = vpop.xlane.xlu0 %1354
        %v1356 = vmax.f32 %v1184, %v1186
        %1357 = vmax.xlane.f32.xlu0 %v1356
        %v1358 = vpop.xlane.xlu0 %1357
        %v1359 = vmax.f32 %v1190, %v1192
        %1360 = vmax.xlane.f32.xlu0 %v1359
        %v1361 = vpop.xlane.xlu0 %1360
        %v1362 = vmax.f32 %v1196, %v1198
        %1363 = vmax.xlane.f32.xlu0 %v1362
        %v1364 = vpop.xlane.xlu0 %1363
        %v1365 = vmax.f32 %v1202, %v1204
        %1366 = vmax.xlane.f32.xlu0 %v1365
        %v1367 = vpop.xlane.xlu0 %1366
        %v1368 = vmax.f32 %v1208, %v1210
        %1369 = vmax.xlane.f32.xlu0 %v1368
        %v1370 = vpop.xlane.xlu0 %1369
        %v1371 = vmax.f32 %v1214, %v1216
        %1372 = vmax.xlane.f32.xlu0 %v1371
        %v1373 = vpop.xlane.xlu0 %1372
        %v1374 = vmax.f32 %v1220, %v1222
        %1375 = vmax.xlane.f32.xlu0 %v1374
        %v1376 = vpop.xlane.xlu0 %1375
        %v1377 = vmax.f32 %v1226, %v1228
        %1378 = vmax.xlane.f32.xlu0 %v1377
        %v1379 = vpop.xlane.xlu0 %1378
        %v1380 = vmax.f32 %v1232, %v1234
        %1381 = vmax.xlane.f32.xlu0 %v1380
        %v1382 = vpop.xlane.xlu0 %1381
        %v1383 = vmax.f32 %v1238, %v1240
        %1384 = vmax.xlane.f32.xlu0 %v1383
        %v1385 = vpop.xlane.xlu0 %1384
        %v1386 = vmax.f32 %v1244, %v1246
        %1387 = vmax.xlane.f32.xlu0 %v1386
        %v1388 = vpop.xlane.xlu0 %1387
        %v1389 = vmax.f32 %v1250, %v1252
        %1390 = vmax.xlane.f32.xlu0 %v1389
        %v1391 = vpop.xlane.xlu0 %1390
        %v1392 = vmax.f32 %v1256, %v1258
        %1393 = vmax.xlane.f32.xlu0 %v1392
        %v1394 = vpop.xlane.xlu0 %1393
        %v1395 = vmax.f32 %v1262, %v1264
        %1396 = vmax.xlane.f32.xlu0 %v1395
        %v1397 = vpop.xlane.xlu0 %1396
        %v1398 = vmax.f32 %v1268, %v1270
        %1399 = vmax.xlane.f32.xlu0 %v1398
        %v1400 = vpop.xlane.xlu0 %1399
        %v1401 = vmax.f32 %v1274, %v1276
        %1402 = vmax.xlane.f32.xlu0 %v1401
        %v1403 = vpop.xlane.xlu0 %1402
        %v1404 = vmax.f32 %v1280, %v1282
        %1405 = vmax.xlane.f32.xlu0 %v1404
        %v1406 = vpop.xlane.xlu0 %1405
        %v1407 = vmax.f32 %v1286, %v1288
        %1408 = vmax.xlane.f32.xlu0 %v1407
        %v1409 = vpop.xlane.xlu0 %1408
        %v1410 = vmax.f32 %v1292, %v1294
        %1411 = vmax.xlane.f32.xlu0 %v1410
        %v1412 = vpop.xlane.xlu0 %1411
        %v1413 = vmax.f32 %v1298, %v1300
        %1414 = vmax.xlane.f32.xlu0 %v1413
        %v1415 = vpop.xlane.xlu0 %1414
        %v1416 = vmax.f32 %v1304, %v1306
        %1417 = vmax.xlane.f32.xlu0 %v1416
        %v1418 = vpop.xlane.xlu0 %1417
        %v1419 = vmax.f32 %v1310, %v1312
        %1420 = vmax.xlane.f32.xlu0 %v1419
        %v1421 = vpop.xlane.xlu0 %1420
        %v1422 = vmax.f32 %v1316, %v1318
        %1423 = vmax.xlane.f32.xlu0 %v1422
        %v1424 = vpop.xlane.xlu0 %1423
        %v1425 = vmax.f32 %v1322, %v1324
        %1426 = vmax.xlane.f32.xlu0 %v1425
        %v1427 = vpop.xlane.xlu0 %1426
        %v1428 = vmax.f32 %v1328, %v1330
        %1429 = vmax.xlane.f32.xlu0 %v1428
        %v1430 = vpop.xlane.xlu0 %1429
        %v1431 = vmax.f32 %v1334, %v1336
        %1432 = vmax.xlane.f32.xlu0 %v1431
        %v1433 = vpop.xlane.xlu0 %1432
        %v1434 = vsub.f32 %v1148, %v1340
        %v1435 = vsub.f32 %v1150, %v1340
        %v1436 = vsub.f32 %v1154, %v1343
        %v1437 = vsub.f32 %v1156, %v1343
        %v1438 = vsub.f32 %v1160, %v1346
        %v1439 = vsub.f32 %v1162, %v1346
        %v1440 = vsub.f32 %v1166, %v1349
        %v1441 = vsub.f32 %v1168, %v1349
        %v1442 = vsub.f32 %v1172, %v1352
        %v1443 = vsub.f32 %v1174, %v1352
        %v1444 = vsub.f32 %v1178, %v1355
        %v1445 = vsub.f32 %v1180, %v1355
        %v1446 = vsub.f32 %v1184, %v1358
        %v1447 = vsub.f32 %v1186, %v1358
        %v1448 = vsub.f32 %v1190, %v1361
        %v1449 = vsub.f32 %v1192, %v1361
        %v1450 = vsub.f32 %v1196, %v1364
        %v1451 = vsub.f32 %v1198, %v1364
        %v1452 = vsub.f32 %v1202, %v1367
        %v1453 = vsub.f32 %v1204, %v1367
        %v1454 = vsub.f32 %v1208, %v1370
        %v1455 = vsub.f32 %v1210, %v1370
        %v1456 = vsub.f32 %v1214, %v1373
        %v1457 = vsub.f32 %v1216, %v1373
        %v1458 = vsub.f32 %v1220, %v1376
        %v1459 = vsub.f32 %v1222, %v1376
        %v1460 = vsub.f32 %v1226, %v1379
        %v1461 = vsub.f32 %v1228, %v1379
        %v1462 = vsub.f32 %v1232, %v1382
        %v1463 = vsub.f32 %v1234, %v1382
        %v1464 = vsub.f32 %v1238, %v1385
        %v1465 = vsub.f32 %v1240, %v1385
        %v1466 = vsub.f32 %v1244, %v1388
        %v1467 = vsub.f32 %v1246, %v1388
        %v1468 = vsub.f32 %v1250, %v1391
        %v1469 = vsub.f32 %v1252, %v1391
        %v1470 = vsub.f32 %v1256, %v1394
        %v1471 = vsub.f32 %v1258, %v1394
        %v1472 = vsub.f32 %v1262, %v1397
        %v1473 = vsub.f32 %v1264, %v1397
        %v1474 = vsub.f32 %v1268, %v1400
        %v1475 = vsub.f32 %v1270, %v1400
        %v1476 = vsub.f32 %v1274, %v1403
        %v1477 = vsub.f32 %v1276, %v1403
        %v1478 = vsub.f32 %v1280, %v1406
        %v1479 = vsub.f32 %v1282, %v1406
        %v1480 = vsub.f32 %v1286, %v1409
        %v1481 = vsub.f32 %v1288, %v1409
        %v1482 = vsub.f32 %v1292, %v1412
        %v1483 = vsub.f32 %v1294, %v1412
        %v1484 = vsub.f32 %v1298, %v1415
        %v1485 = vsub.f32 %v1300, %v1415
        %v1486 = vsub.f32 %v1304, %v1418
        %v1487 = vsub.f32 %v1306, %v1418
        %v1488 = vsub.f32 %v1310, %v1421
        %v1489 = vsub.f32 %v1312, %v1421
        %v1490 = vsub.f32 %v1316, %v1424
        %v1491 = vsub.f32 %v1318, %v1424
        %v1492 = vsub.f32 %v1322, %v1427
        %v1493 = vsub.f32 %v1324, %v1427
        %v1494 = vsub.f32 %v1328, %v1430
        %v1495 = vsub.f32 %v1330, %v1430
        %v1496 = vsub.f32 %v1334, %v1433
        %v1497 = vsub.f32 %v1336, %v1433
        %v1498 = vmul.f32 %v1434, 1.442695
        %v1499 = vpow.pop %v1498
        %v1500 = vmul.f32 %v1435, 1.442695
        %v1501 = vpow.pop %v1500
        %v1502 = vmul.f32 %v1436, 1.442695
        %v1503 = vpow.pop %v1502
        %v1504 = vmul.f32 %v1437, 1.442695
        %v1505 = vpow.pop %v1504
        %v1506 = vmul.f32 %v1438, 1.442695
        %v1507 = vpow.pop %v1506
        %v1508 = vmul.f32 %v1439, 1.442695
        %v1509 = vpow.pop %v1508
        %v1510 = vmul.f32 %v1440, 1.442695
        %v1511 = vpow.pop %v1510
        %v1512 = vmul.f32 %v1441, 1.442695
        %v1513 = vpow.pop %v1512
        %v1514 = vmul.f32 %v1442, 1.442695
        %v1515 = vpow.pop %v1514
        %v1516 = vmul.f32 %v1443, 1.442695
        %v1517 = vpow.pop %v1516
        %v1518 = vmul.f32 %v1444, 1.442695
        %v1519 = vpow.pop %v1518
        %v1520 = vmul.f32 %v1445, 1.442695
        %v1521 = vpow.pop %v1520
        %v1522 = vmul.f32 %v1446, 1.442695
        %v1523 = vpow.pop %v1522
        %v1524 = vmul.f32 %v1447, 1.442695
        %v1525 = vpow.pop %v1524
        %v1526 = vmul.f32 %v1448, 1.442695
        %v1527 = vpow.pop %v1526
        %v1528 = vmul.f32 %v1449, 1.442695
        %v1529 = vpow.pop %v1528
        %v1530 = vmul.f32 %v1450, 1.442695
        %v1531 = vpow.pop %v1530
        %v1532 = vmul.f32 %v1451, 1.442695
        %v1533 = vpow.pop %v1532
        %v1534 = vmul.f32 %v1452, 1.442695
        %v1535 = vpow.pop %v1534
        %v1536 = vmul.f32 %v1453, 1.442695
        %v1537 = vpow.pop %v1536
        %v1538 = vmul.f32 %v1454, 1.442695
        %v1539 = vpow.pop %v1538
        %v1540 = vmul.f32 %v1455, 1.442695
        %v1541 = vpow.pop %v1540
        %v1542 = vmul.f32 %v1456, 1.442695
        %v1543 = vpow.pop %v1542
        %v1544 = vmul.f32 %v1457, 1.442695
        %v1545 = vpow.pop %v1544
        %v1546 = vmul.f32 %v1458, 1.442695
        %v1547 = vpow.pop %v1546
        %v1548 = vmul.f32 %v1459, 1.442695
        %v1549 = vpow.pop %v1548
        %v1550 = vmul.f32 %v1460, 1.442695
        %v1551 = vpow.pop %v1550
        %v1552 = vmul.f32 %v1461, 1.442695
        %v1553 = vpow.pop %v1552
        %v1554 = vmul.f32 %v1462, 1.442695
        %v1555 = vpow.pop %v1554
        %v1556 = vmul.f32 %v1463, 1.442695
        %v1557 = vpow.pop %v1556
        %v1558 = vmul.f32 %v1464, 1.442695
        %v1559 = vpow.pop %v1558
        %v1560 = vmul.f32 %v1465, 1.442695
        %v1561 = vpow.pop %v1560
        %v1562 = vmul.f32 %v1466, 1.442695
        %v1563 = vpow.pop %v1562
        %v1564 = vmul.f32 %v1467, 1.442695
        %v1565 = vpow.pop %v1564
        %v1566 = vmul.f32 %v1468, 1.442695
        %v1567 = vpow.pop %v1566
        %v1568 = vmul.f32 %v1469, 1.442695
        %v1569 = vpow.pop %v1568
        %v1570 = vmul.f32 %v1470, 1.442695
        %v1571 = vpow.pop %v1570
        %v1572 = vmul.f32 %v1471, 1.442695
        %v1573 = vpow.pop %v1572
        %v1574 = vmul.f32 %v1472, 1.442695
        %v1575 = vpow.pop %v1574
        %v1576 = vmul.f32 %v1473, 1.442695
        %v1577 = vpow.pop %v1576
        %v1578 = vmul.f32 %v1474, 1.442695
        %v1579 = vpow.pop %v1578
        %v1580 = vmul.f32 %v1475, 1.442695
        %v1581 = vpow.pop %v1580
        %v1582 = vmul.f32 %v1476, 1.442695
        %v1583 = vpow.pop %v1582
        %v1584 = vmul.f32 %v1477, 1.442695
        %v1585 = vpow.pop %v1584
        %v1586 = vmul.f32 %v1478, 1.442695
        %v1587 = vpow.pop %v1586
        %v1588 = vmul.f32 %v1479, 1.442695
        %v1589 = vpow.pop %v1588
        %v1590 = vmul.f32 %v1480, 1.442695
        %v1591 = vpow.pop %v1590
        %v1592 = vmul.f32 %v1481, 1.442695
        %v1593 = vpow.pop %v1592
        %v1594 = vmul.f32 %v1482, 1.442695
        %v1595 = vpow.pop %v1594
        %v1596 = vmul.f32 %v1483, 1.442695
        %v1597 = vpow.pop %v1596
        %v1598 = vmul.f32 %v1484, 1.442695
        %v1599 = vpow.pop %v1598
        %v1600 = vmul.f32 %v1485, 1.442695
        %v1601 = vpow.pop %v1600
        %v1602 = vmul.f32 %v1486, 1.442695
        %v1603 = vpow.pop %v1602
        %v1604 = vmul.f32 %v1487, 1.442695
        %v1605 = vpow.pop %v1604
        %v1606 = vmul.f32 %v1488, 1.442695
        %v1607 = vpow.pop %v1606
        %v1608 = vmul.f32 %v1489, 1.442695
        %v1609 = vpow.pop %v1608
        %v1610 = vmul.f32 %v1490, 1.442695
        %v1611 = vpow.pop %v1610
        %v1612 = vmul.f32 %v1491, 1.442695
        %v1613 = vpow.pop %v1612
        %v1614 = vmul.f32 %v1492, 1.442695
        %v1615 = vpow.pop %v1614
        %v1616 = vmul.f32 %v1493, 1.442695
        %v1617 = vpow.pop %v1616
        %v1618 = vmul.f32 %v1494, 1.442695
        %v1619 = vpow.pop %v1618
        %v1620 = vmul.f32 %v1495, 1.442695
        %v1621 = vpow.pop %v1620
        %v1622 = vmul.f32 %v1496, 1.442695
        %v1623 = vpow.pop %v1622
        %v1624 = vmul.f32 %v1497, 1.442695
        %v1625 = vpow.pop %v1624
        %v1626 = vadd.f32 %v1499, %v1501
        %1627 = vadd.xlane.f32.xlu0 %v1626
        %v1628 = vpop.xlane.xlu0 %1627
        %v1629 = vadd.f32 %v1503, %v1505
        %1630 = vadd.xlane.f32.xlu0 %v1629
        %v1631 = vpop.xlane.xlu0 %1630
        %v1632 = vadd.f32 %v1507, %v1509
        %1633 = vadd.xlane.f32.xlu0 %v1632
        %v1634 = vpop.xlane.xlu0 %1633
        %v1635 = vadd.f32 %v1511, %v1513
        %1636 = vadd.xlane.f32.xlu0 %v1635
        %v1637 = vpop.xlane.xlu0 %1636
        %v1638 = vadd.f32 %v1515, %v1517
        %1639 = vadd.xlane.f32.xlu0 %v1638
        %v1640 = vpop.xlane.xlu0 %1639
        %v1641 = vadd.f32 %v1519, %v1521
        %1642 = vadd.xlane.f32.xlu0 %v1641
        %v1643 = vpop.xlane.xlu0 %1642
        %v1644 = vadd.f32 %v1523, %v1525
        %1645 = vadd.xlane.f32.xlu0 %v1644
        %v1646 = vpop.xlane.xlu0 %1645
        %v1647 = vadd.f32 %v1527, %v1529
        %1648 = vadd.xlane.f32.xlu0 %v1647
        %v1649 = vpop.xlane.xlu0 %1648
        %v1650 = vadd.f32 %v1531, %v1533
        %1651 = vadd.xlane.f32.xlu0 %v1650
        %v1652 = vpop.xlane.xlu0 %1651
        %v1653 = vadd.f32 %v1535, %v1537
        %1654 = vadd.xlane.f32.xlu0 %v1653
        %v1655 = vpop.xlane.xlu0 %1654
        %v1656 = vadd.f32 %v1539, %v1541
        %1657 = vadd.xlane.f32.xlu0 %v1656
        %v1658 = vpop.xlane.xlu0 %1657
        %v1659 = vadd.f32 %v1543, %v1545
        %1660 = vadd.xlane.f32.xlu0 %v1659
        %v1661 = vpop.xlane.xlu0 %1660
        %v1662 = vadd.f32 %v1547, %v1549
        %1663 = vadd.xlane.f32.xlu0 %v1662
        %v1664 = vpop.xlane.xlu0 %1663
        %v1665 = vadd.f32 %v1551, %v1553
        %1666 = vadd.xlane.f32.xlu0 %v1665
        %v1667 = vpop.xlane.xlu0 %1666
        %v1668 = vadd.f32 %v1555, %v1557
        %1669 = vadd.xlane.f32.xlu0 %v1668
        %v1670 = vpop.xlane.xlu0 %1669
        %v1671 = vadd.f32 %v1559, %v1561
        %1672 = vadd.xlane.f32.xlu0 %v1671
        %v1673 = vpop.xlane.xlu0 %1672
        %v1674 = vadd.f32 %v1563, %v1565
        %1675 = vadd.xlane.f32.xlu0 %v1674
        %v1676 = vpop.xlane.xlu0 %1675
        %v1677 = vadd.f32 %v1567, %v1569
        %1678 = vadd.xlane.f32.xlu0 %v1677
        %v1679 = vpop.xlane.xlu0 %1678
        %v1680 = vadd.f32 %v1571, %v1573
        %1681 = vadd.xlane.f32.xlu0 %v1680
        %v1682 = vpop.xlane.xlu0 %1681
        %v1683 = vadd.f32 %v1575, %v1577
        %1684 = vadd.xlane.f32.xlu0 %v1683
        %v1685 = vpop.xlane.xlu0 %1684
        %v1686 = vadd.f32 %v1579, %v1581
        %1687 = vadd.xlane.f32.xlu0 %v1686
        %v1688 = vpop.xlane.xlu0 %1687
        %v1689 = vadd.f32 %v1583, %v1585
        %1690 = vadd.xlane.f32.xlu0 %v1689
        %v1691 = vpop.xlane.xlu0 %1690
        %v1692 = vadd.f32 %v1587, %v1589
        %1693 = vadd.xlane.f32.xlu0 %v1692
        %v1694 = vpop.xlane.xlu0 %1693
        %v1695 = vadd.f32 %v1591, %v1593
        %1696 = vadd.xlane.f32.xlu0 %v1695
        %v1697 = vpop.xlane.xlu0 %1696
        %v1698 = vadd.f32 %v1595, %v1597
        %1699 = vadd.xlane.f32.xlu0 %v1698
        %v1700 = vpop.xlane.xlu0 %1699
        %v1701 = vadd.f32 %v1599, %v1601
        %1702 = vadd.xlane.f32.xlu0 %v1701
        %v1703 = vpop.xlane.xlu0 %1702
        %v1704 = vadd.f32 %v1603, %v1605
        %1705 = vadd.xlane.f32.xlu0 %v1704
        %v1706 = vpop.xlane.xlu0 %1705
        %v1707 = vadd.f32 %v1607, %v1609
        %1708 = vadd.xlane.f32.xlu0 %v1707
        %v1709 = vpop.xlane.xlu0 %1708
        %v1710 = vadd.f32 %v1611, %v1613
        %1711 = vadd.xlane.f32.xlu0 %v1710
        %v1712 = vpop.xlane.xlu0 %1711
        %v1713 = vadd.f32 %v1615, %v1617
        %1714 = vadd.xlane.f32.xlu0 %v1713
        %v1715 = vpop.xlane.xlu0 %1714
        %v1716 = vadd.f32 %v1619, %v1621
        %1717 = vadd.xlane.f32.xlu0 %v1716
        %v1718 = vpop.xlane.xlu0 %1717
        %v1719 = vadd.f32 %v1623, %v1625
        %1720 = vadd.xlane.f32.xlu0 %v1719
        %v1721 = vpop.xlane.xlu0 %1720
        %1722 = vmatprep.subr.mxu0 0.0
        %1723 = vmatpush1.msra.mxu0 %v709
        %1724 = vmatprep.subr.mxu0 0.0
        %1725 = vmatpush1.msra.mxu0 %v704
        %1726 = vmatprep.subr.mxu0 0.0
        %1727 = vmatpush1.msra.mxu0 %v699
        %1728 = vmatprep.subr.mxu0 0.0
        %1729 = vmatpush1.msra.mxu0 %v694
        %1730 = vmatprep.subr.mxu0 0.0
        %1731 = vmatpush1.msra.mxu0 %v689
        %1732 = vmatprep.subr.mxu0 0.0
        %1733 = vmatpush1.msra.mxu0 %v684
        %1734 = vmatprep.subr.mxu0 0.0
        %1735 = vmatpush1.msra.mxu0 %v679
        %1736 = vmatprep.subr.mxu0 0.0
        %1737 = vmatpush1.msra.mxu0 %v674
        %1738 = vmatprep.subr.mxu0 0.0
        %1739 = vmatpush1.msra.mxu0 %v669
        %1740 = vmatprep.subr.mxu0 0.0
        %1741 = vmatpush1.msra.mxu0 %v664
        %1742 = vmatprep.subr.mxu0 0.0
        %1743 = vmatpush1.msra.mxu0 %v659
        %1744 = vmatprep.subr.mxu0 0.0
        %1745 = vmatpush1.msra.mxu0 %v654
        %1746 = vmatprep.subr.mxu0 0.0
        %1747 = vmatpush1.msra.mxu0 %v649
        %1748 = vmatprep.subr.mxu0 0.0
        %1749 = vmatpush1.msra.mxu0 %v644
        %1750 = vmatprep.subr.mxu0 0.0
        %1751 = vmatpush1.msra.mxu0 %v639
        %1752 = vmatprep.subr.mxu0 0.0
        %1753 = vmatpush1.msra.mxu0 %v634
        %1754 = vmatprep.subr.mxu0 0.0
        %1755 = vmatpush2.msra.mxu0 %v789
        %1756 = vmatprep.subr.mxu0 0.0
        %1757 = vmatpush2.msra.mxu0 %v784
        %1758 = vmatprep.subr.mxu0 0.0
        %1759 = vmatpush2.msra.mxu0 %v779
        %1760 = vmatprep.subr.mxu0 0.0
        %1761 = vmatpush2.msra.mxu0 %v774
        %1762 = vmatprep.subr.mxu0 0.0
        %1763 = vmatpush2.msra.mxu0 %v769
        %1764 = vmatprep.subr.mxu0 0.0
        %1765 = vmatpush2.msra.mxu0 %v764
        %1766 = vmatprep.subr.mxu0 0.0
        %1767 = vmatpush2.msra.mxu0 %v759
        %1768 = vmatprep.subr.mxu0 0.0
        %1769 = vmatpush2.msra.mxu0 %v754
        %1770 = vmatprep.subr.mxu0 0.0
        %1771 = vmatpush2.msra.mxu0 %v749
        %1772 = vmatprep.subr.mxu0 0.0
        %1773 = vmatpush2.msra.mxu0 %v744
        %1774 = vmatprep.subr.mxu0 0.0
        %1775 = vmatpush2.msra.mxu0 %v739
        %1776 = vmatprep.subr.mxu0 0.0
        %1777 = vmatpush2.msra.mxu0 %v734
        %1778 = vmatprep.subr.mxu0 0.0
        %1779 = vmatpush2.msra.mxu0 %v729
        %1780 = vmatprep.subr.mxu0 0.0
        %1781 = vmatpush2.msra.mxu0 %v724
        %1782 = vmatprep.subr.mxu0 0.0
        %1783 = vmatpush2.msra.mxu0 %v719
        %1784 = vmatprep.subr.mxu0 0.0
        %1785 = vmatpush2.msra.mxu0 %v714
        %1786 = vmatprep.mubr.f32.mxu0 %v1501
        %1787 = vmatmul.mubr.f32.gmra.mxu0 %v1499
        %v1788 = vpop.f32.mrf.mxu0
        %v1789 = vadd.f32 0.0, %v1788
        %v1790 = vpop.f32.mrf.mxu0
        %1791 = vmatprep.mubr.f32.mxu0 %v1505
        %1792 = vmatmul.mubr.f32.gmra.mxu0 %v1503
        %v1793 = vpop.f32.mrf.mxu0
        %v1794 = vadd.f32 0.0, %v1793
        %v1795 = vpop.f32.mrf.mxu0
        %1796 = vmatprep.mubr.f32.mxu0 %v1509
        %1797 = vmatmul.mubr.f32.gmra.mxu0 %v1507
        %v1798 = vpop.f32.mrf.mxu0
        %v1799 = vadd.f32 0.0, %v1798
        %v1800 = vpop.f32.mrf.mxu0
        %1801 = vmatprep.mubr.f32.mxu0 %v1513
        %1802 = vmatmul.mubr.f32.gmra.mxu0 %v1511
        %v1803 = vpop.f32.mrf.mxu0
        %v1804 = vadd.f32 0.0, %v1803
        %v1805 = vpop.f32.mrf.mxu0
        %1806 = vmatprep.mubr.f32.mxu0 %v1517
        %1807 = vmatmul.mubr.f32.gmra.mxu0 %v1515
        %v1808 = vpop.f32.mrf.mxu0
        %v1809 = vadd.f32 0.0, %v1808
        %v1810 = vpop.f32.mrf.mxu0
        %1811 = vmatprep.mubr.f32.mxu0 %v1521
        %1812 = vmatmul.mubr.f32.gmra.mxu0 %v1519
        %v1813 = vpop.f32.mrf.mxu0
        %v1814 = vadd.f32 0.0, %v1813
        %v1815 = vpop.f32.mrf.mxu0
        %1816 = vmatprep.mubr.f32.mxu0 %v1525
        %1817 = vmatmul.mubr.f32.gmra.mxu0 %v1523
        %v1818 = vpop.f32.mrf.mxu0
        %v1819 = vadd.f32 0.0, %v1818
        %v1820 = vpop.f32.mrf.mxu0
        %1821 = vmatprep.mubr.f32.mxu0 %v1529
        %1822 = vmatmul.mubr.f32.gmra.mxu0 %v1527
        %v1823 = vpop.f32.mrf.mxu0
        %v1824 = vadd.f32 0.0, %v1823
        %v1825 = vpop.f32.mrf.mxu0
        %1826 = vmatprep.mubr.f32.mxu0 %v1533
        %1827 = vmatmul.mubr.f32.gmra.mxu0 %v1531
        %v1828 = vpop.f32.mrf.mxu0
        %v1829 = vadd.f32 0.0, %v1828
        %v1830 = vpop.f32.mrf.mxu0
        %1831 = vmatprep.mubr.f32.mxu0 %v1537
        %1832 = vmatmul.mubr.f32.gmra.mxu0 %v1535
        %v1833 = vpop.f32.mrf.mxu0
        %v1834 = vadd.f32 0.0, %v1833
        %v1835 = vpop.f32.mrf.mxu0
        %1836 = vmatprep.mubr.f32.mxu0 %v1541
        %1837 = vmatmul.mubr.f32.gmra.mxu0 %v1539
        %v1838 = vpop.f32.mrf.mxu0
        %v1839 = vadd.f32 0.0, %v1838
        %v1840 = vpop.f32.mrf.mxu0
        %1841 = vmatprep.mubr.f32.mxu0 %v1545
        %1842 = vmatmul.mubr.f32.gmra.mxu0 %v1543
        %v1843 = vpop.f32.mrf.mxu0
        %v1844 = vadd.f32 0.0, %v1843
        %v1845 = vpop.f32.mrf.mxu0
        %1846 = vmatprep.mubr.f32.mxu0 %v1549
        %1847 = vmatmul.mubr.f32.gmra.mxu0 %v1547
        %v1848 = vpop.f32.mrf.mxu0
        %v1849 = vadd.f32 0.0, %v1848
        %v1850 = vpop.f32.mrf.mxu0
        %1851 = vmatprep.mubr.f32.mxu0 %v1553
        %1852 = vmatmul.mubr.f32.gmra.mxu0 %v1551
        %v1853 = vpop.f32.mrf.mxu0
        %v1854 = vadd.f32 0.0, %v1853
        %v1855 = vpop.f32.mrf.mxu0
        %1856 = vmatprep.mubr.f32.mxu0 %v1557
        %1857 = vmatmul.mubr.f32.gmra.mxu0 %v1555
        %v1858 = vpop.f32.mrf.mxu0
        %v1859 = vadd.f32 0.0, %v1858
        %v1860 = vpop.f32.mrf.mxu0
        %1861 = vmatprep.mubr.f32.mxu0 %v1561
        %1862 = vmatmul.mubr.f32.gmra.mxu0 %v1559
        %v1863 = vpop.f32.mrf.mxu0
        %v1864 = vadd.f32 0.0, %v1863
        %v1865 = vpop.f32.mrf.mxu0
        %1866 = vmatprep.mubr.f32.mxu0 %v1565
        %1867 = vmatmul.mubr.f32.gmra.mxu0 %v1563
        %v1868 = vpop.f32.mrf.mxu0
        %v1869 = vadd.f32 0.0, %v1868
        %v1870 = vpop.f32.mrf.mxu0
        %1871 = vmatprep.mubr.f32.mxu0 %v1569
        %1872 = vmatmul.mubr.f32.gmra.mxu0 %v1567
        %v1873 = vpop.f32.mrf.mxu0
        %v1874 = vadd.f32 0.0, %v1873
        %v1875 = vpop.f32.mrf.mxu0
        %1876 = vmatprep.mubr.f32.mxu0 %v1573
        %1877 = vmatmul.mubr.f32.gmra.mxu0 %v1571
        %v1878 = vpop.f32.mrf.mxu0
        %v1879 = vadd.f32 0.0, %v1878
        %v1880 = vpop.f32.mrf.mxu0
        %1881 = vmatprep.mubr.f32.mxu0 %v1577
        %1882 = vmatmul.mubr.f32.gmra.mxu0 %v1575
        %v1883 = vpop.f32.mrf.mxu0
        %v1884 = vadd.f32 0.0, %v1883
        %v1885 = vpop.f32.mrf.mxu0
        %1886 = vmatprep.mubr.f32.mxu0 %v1581
        %1887 = vmatmul.mubr.f32.gmra.mxu0 %v1579
        %v1888 = vpop.f32.mrf.mxu0
        %v1889 = vadd.f32 0.0, %v1888
        %v1890 = vpop.f32.mrf.mxu0
        %1891 = vmatprep.mubr.f32.mxu0 %v1585
        %1892 = vmatmul.mubr.f32.gmra.mxu0 %v1583
        %v1893 = vpop.f32.mrf.mxu0
        %v1894 = vadd.f32 0.0, %v1893
        %v1895 = vpop.f32.mrf.mxu0
        %1896 = vmatprep.mubr.f32.mxu0 %v1589
        %1897 = vmatmul.mubr.f32.gmra.mxu0 %v1587
        %v1898 = vpop.f32.mrf.mxu0
        %v1899 = vadd.f32 0.0, %v1898
        %v1900 = vpop.f32.mrf.mxu0
        %1901 = vmatprep.mubr.f32.mxu0 %v1593
        %1902 = vmatmul.mubr.f32.gmra.mxu0 %v1591
        %v1903 = vpop.f32.mrf.mxu0
        %v1904 = vadd.f32 0.0, %v1903
        %v1905 = vpop.f32.mrf.mxu0
        %1906 = vmatprep.mubr.f32.mxu0 %v1597
        %1907 = vmatmul.mubr.f32.gmra.mxu0 %v1595
        %v1908 = vpop.f32.mrf.mxu0
        %v1909 = vadd.f32 0.0, %v1908
        %v1910 = vpop.f32.mrf.mxu0
        %1911 = vmatprep.mubr.f32.mxu0 %v1601
        %1912 = vmatmul.mubr.f32.gmra.mxu0 %v1599
        %v1913 = vpop.f32.mrf.mxu0
        %v1914 = vadd.f32 0.0, %v1913
        %v1915 = vpop.f32.mrf.mxu0
        %1916 = vmatprep.mubr.f32.mxu0 %v1605
        %1917 = vmatmul.mubr.f32.gmra.mxu0 %v1603
        %v1918 = vpop.f32.mrf.mxu0
        %v1919 = vadd.f32 0.0, %v1918
        %v1920 = vpop.f32.mrf.mxu0
        %1921 = vmatprep.mubr.f32.mxu0 %v1609
        %1922 = vmatmul.mubr.f32.gmra.mxu0 %v1607
        %v1923 = vpop.f32.mrf.mxu0
        %v1924 = vadd.f32 0.0, %v1923
        %v1925 = vpop.f32.mrf.mxu0
        %1926 = vmatprep.mubr.f32.mxu0 %v1613
        %1927 = vmatmul.mubr.f32.gmra.mxu0 %v1611
        %v1928 = vpop.f32.mrf.mxu0
        %v1929 = vadd.f32 0.0, %v1928
        %v1930 = vpop.f32.mrf.mxu0
        %1931 = vmatprep.mubr.f32.mxu0 %v1617
        %1932 = vmatmul.mubr.f32.gmra.mxu0 %v1615
        %v1933 = vpop.f32.mrf.mxu0
        %v1934 = vadd.f32 0.0, %v1933
        %v1935 = vpop.f32.mrf.mxu0
        %1936 = vmatprep.mubr.f32.mxu0 %v1621
        %1937 = vmatmul.mubr.f32.gmra.mxu0 %v1619
        %v1938 = vpop.f32.mrf.mxu0
        %v1939 = vadd.f32 0.0, %v1938
        %v1940 = vpop.f32.mrf.mxu0
        %1941 = vmatprep.mubr.f32.mxu0 %v1625
        %1942 = vmatmul.mubr.f32.gmra.mxu0 %v1623
        %v1943 = vpop.f32.mrf.mxu0
        %v1944 = vadd.f32 0.0, %v1943
        %v1945 = vpop.f32.mrf.mxu0
        %1946 = vdwg.mxu0
        %v1947 = vrcp.pop %v1628
        %v1948 = vrcp.pop %v1631
        %v1949 = vrcp.pop %v1634
        %v1950 = vrcp.pop %v1637
        %v1951 = vrcp.pop %v1640
        %v1952 = vrcp.pop %v1643
        %v1953 = vrcp.pop %v1646
        %v1954 = vrcp.pop %v1649
        %v1955 = vrcp.pop %v1652
        %v1956 = vrcp.pop %v1655
        %v1957 = vrcp.pop %v1658
        %v1958 = vrcp.pop %v1661
        %v1959 = vrcp.pop %v1664
        %v1960 = vrcp.pop %v1667
        %v1961 = vrcp.pop %v1670
        %v1962 = vrcp.pop %v1673
        %v1963 = vrcp.pop %v1676
        %v1964 = vrcp.pop %v1679
        %v1965 = vrcp.pop %v1682
        %v1966 = vrcp.pop %v1685
        %v1967 = vrcp.pop %v1688
        %v1968 = vrcp.pop %v1691
        %v1969 = vrcp.pop %v1694
        %v1970 = vrcp.pop %v1697
        %v1971 = vrcp.pop %v1700
        %v1972 = vrcp.pop %v1703
        %v1973 = vrcp.pop %v1706
        %v1974 = vrcp.pop %v1709
        %v1975 = vrcp.pop %v1712
        %v1976 = vrcp.pop %v1715
        %v1977 = vrcp.pop %v1718
        %v1978 = vrcp.pop %v1721
        %v1979 = vmul.f32 %v1789, %v1947
        %v1980 = vmul.f32 %v1794, %v1948
        %v1981 = vmul.f32 %v1799, %v1949
        %v1982 = vmul.f32 %v1804, %v1950
        %v1983 = vmul.f32 %v1809, %v1951
        %v1984 = vmul.f32 %v1814, %v1952
        %v1985 = vmul.f32 %v1819, %v1953
        %v1986 = vmul.f32 %v1824, %v1954
        %v1987 = vmul.f32 %v1829, %v1955
        %v1988 = vmul.f32 %v1834, %v1956
        %v1989 = vmul.f32 %v1839, %v1957
        %v1990 = vmul.f32 %v1844, %v1958
        %v1991 = vmul.f32 %v1849, %v1959
        %v1992 = vmul.f32 %v1854, %v1960
        %v1993 = vmul.f32 %v1859, %v1961
        %v1994 = vmul.f32 %v1864, %v1962
        %v1995 = vmul.f32 %v1869, %v1963
        %v1996 = vmul.f32 %v1874, %v1964
        %v1997 = vmul.f32 %v1879, %v1965
        %v1998 = vmul.f32 %v1884, %v1966
        %v1999 = vmul.f32 %v1889, %v1967
        %v2000 = vmul.f32 %v1894, %v1968
        %v2001 = vmul.f32 %v1899, %v1969
        %v2002 = vmul.f32 %v1904, %v1970
        %v2003 = vmul.f32 %v1909, %v1971
        %v2004 = vmul.f32 %v1914, %v1972
        %v2005 = vmul.f32 %v1919, %v1973
        %v2006 = vmul.f32 %v1924, %v1974
        %v2007 = vmul.f32 %v1929, %v1975
        %v2008 = vmul.f32 %v1934, %v1976
        %v2009 = vmul.f32 %v1939, %v1977
        %v2010 = vmul.f32 %v1944, %v1978
        %2043 = vrot.lane.b32.xlu0 %v792, 32
        %v2044 = vpop.permute.xlu0 %2043
        %2045 = vrot.lane.b32.xlu0 %v793, 32
        %v2046 = vpop.permute.xlu0 %2045
        %2047 = vrot.lane.b32.xlu0 %v794, 32
        %v2048 = vpop.permute.xlu0 %2047
        %2049 = vrot.lane.b32.xlu0 %v795, 32
        %v2050 = vpop.permute.xlu0 %2049
        %2051 = vrot.lane.b32.xlu0 %v796, 32
        %v2052 = vpop.permute.xlu0 %2051
        %2053 = vrot.lane.b32.xlu0 %v797, 32
        %v2054 = vpop.permute.xlu0 %2053
        %2055 = vrot.lane.b32.xlu0 %v798, 32
        %v2056 = vpop.permute.xlu0 %2055
        %2057 = vrot.lane.b32.xlu0 %v799, 32
        %v2058 = vpop.permute.xlu0 %2057
        %2059 = vrot.lane.b32.xlu0 %v800, 32
        %v2060 = vpop.permute.xlu0 %2059
        %2061 = vrot.lane.b32.xlu0 %v801, 32
        %v2062 = vpop.permute.xlu0 %2061
        %2063 = vrot.lane.b32.xlu0 %v802, 32
        %v2064 = vpop.permute.xlu0 %2063
        %2065 = vrot.lane.b32.xlu0 %v803, 32
        %v2066 = vpop.permute.xlu0 %2065
        %2067 = vrot.lane.b32.xlu0 %v804, 32
        %v2068 = vpop.permute.xlu0 %2067
        %2069 = vrot.lane.b32.xlu0 %v805, 32
        %v2070 = vpop.permute.xlu0 %2069
        %2071 = vrot.lane.b32.xlu0 %v806, 32
        %v2072 = vpop.permute.xlu0 %2071
        %2073 = vrot.lane.b32.xlu0 %v807, 32
        %v2074 = vpop.permute.xlu0 %2073
        %2075 = vrot.lane.b32.xlu0 %v808, 32
        %v2076 = vpop.permute.xlu0 %2075
        %2077 = vrot.lane.b32.xlu0 %v809, 32
        %v2078 = vpop.permute.xlu0 %2077
        %2079 = vrot.lane.b32.xlu0 %v810, 32
        %v2080 = vpop.permute.xlu0 %2079
        %2081 = vrot.lane.b32.xlu0 %v811, 32
        %v2082 = vpop.permute.xlu0 %2081
        %2083 = vrot.lane.b32.xlu0 %v812, 32
        %v2084 = vpop.permute.xlu0 %2083
        %2085 = vrot.lane.b32.xlu0 %v813, 32
        %v2086 = vpop.permute.xlu0 %2085
        %2087 = vrot.lane.b32.xlu0 %v814, 32
        %v2088 = vpop.permute.xlu0 %2087
        %2089 = vrot.lane.b32.xlu0 %v815, 32
        %v2090 = vpop.permute.xlu0 %2089
        %2091 = vrot.lane.b32.xlu0 %v816, 32
        %v2092 = vpop.permute.xlu0 %2091
        %2093 = vrot.lane.b32.xlu0 %v817, 32
        %v2094 = vpop.permute.xlu0 %2093
        %2095 = vrot.lane.b32.xlu0 %v818, 32
        %v2096 = vpop.permute.xlu0 %2095
        %2097 = vrot.lane.b32.xlu0 %v819, 32
        %v2098 = vpop.permute.xlu0 %2097
        %2099 = vrot.lane.b32.xlu0 %v820, 32
        %v2100 = vpop.permute.xlu0 %2099
        %2101 = vrot.lane.b32.xlu0 %v821, 32
        %v2102 = vpop.permute.xlu0 %2101
        %2103 = vrot.lane.b32.xlu0 %v822, 32
        %v2104 = vpop.permute.xlu0 %2103
        %2105 = vrot.lane.b32.xlu0 %v823, 32
        %v2106 = vpop.permute.xlu0 %2105
        %v2139 = vadd.f32 %v379, %v2044
        %v2140 = vadd.f32 %v385, %v2046
        %v2141 = vadd.f32 %v391, %v2048
        %v2142 = vadd.f32 %v397, %v2050
        %v2143 = vadd.f32 %v403, %v2052
        %v2144 = vadd.f32 %v409, %v2054
        %v2145 = vadd.f32 %v415, %v2056
        %v2146 = vadd.f32 %v421, %v2058
        %v2147 = vadd.f32 %v427, %v2060
        %v2148 = vadd.f32 %v433, %v2062
        %v2149 = vadd.f32 %v439, %v2064
        %v2150 = vadd.f32 %v445, %v2066
        %v2151 = vadd.f32 %v451, %v2068
        %v2152 = vadd.f32 %v457, %v2070
        %v2153 = vadd.f32 %v463, %v2072
        %v2154 = vadd.f32 %v469, %v2074
        %v2155 = vadd.f32 %v475, %v2076
        %v2156 = vadd.f32 %v481, %v2078
        %v2157 = vadd.f32 %v487, %v2080
        %v2158 = vadd.f32 %v493, %v2082
        %v2159 = vadd.f32 %v499, %v2084
        %v2160 = vadd.f32 %v505, %v2086
        %v2161 = vadd.f32 %v511, %v2088
        %v2162 = vadd.f32 %v517, %v2090
        %v2163 = vadd.f32 %v523, %v2092
        %v2164 = vadd.f32 %v529, %v2094
        %v2165 = vadd.f32 %v535, %v2096
        %v2166 = vadd.f32 %v541, %v2098
        %v2167 = vadd.f32 %v547, %v2100
        %v2168 = vadd.f32 %v553, %v2102
        %v2169 = vadd.f32 %v559, %v2104
        %v2170 = vadd.f32 %v565, %v2106
        %v2171 = vmul.f32 %v2139, 0.17677669
        %v2172 = vmul.f32 %v2140, 0.17677669
        %v2173 = vmul.f32 %v2141, 0.17677669
        %v2174 = vmul.f32 %v2142, 0.17677669
        %v2175 = vmul.f32 %v2143, 0.17677669
        %v2176 = vmul.f32 %v2144, 0.17677669
        %v2177 = vmul.f32 %v2145, 0.17677669
        %v2178 = vmul.f32 %v2146, 0.17677669
        %v2179 = vmul.f32 %v2147, 0.17677669
        %v2180 = vmul.f32 %v2148, 0.17677669
        %v2181 = vmul.f32 %v2149, 0.17677669
        %v2182 = vmul.f32 %v2150, 0.17677669
        %v2183 = vmul.f32 %v2151, 0.17677669
        %v2184 = vmul.f32 %v2152, 0.17677669
        %v2185 = vmul.f32 %v2153, 0.17677669
        %v2186 = vmul.f32 %v2154, 0.17677669
        %v2187 = vmul.f32 %v2155, 0.17677669
        %v2188 = vmul.f32 %v2156, 0.17677669
        %v2189 = vmul.f32 %v2157, 0.17677669
        %v2190 = vmul.f32 %v2158, 0.17677669
        %v2191 = vmul.f32 %v2159, 0.17677669
        %v2192 = vmul.f32 %v2160, 0.17677669
        %v2193 = vmul.f32 %v2161, 0.17677669
        %v2194 = vmul.f32 %v2162, 0.17677669
        %v2195 = vmul.f32 %v2163, 0.17677669
        %v2196 = vmul.f32 %v2164, 0.17677669
        %v2197 = vmul.f32 %v2165, 0.17677669
        %v2198 = vmul.f32 %v2166, 0.17677669
        %v2199 = vmul.f32 %v2167, 0.17677669
        %v2200 = vmul.f32 %v2168, 0.17677669
        %v2201 = vmul.f32 %v2169, 0.17677669
        %v2202 = vmul.f32 %v2170, 0.17677669
        %2203 = vrot.lane.b32.xlu0 %v377, 96
        %v2204 = vpop.permute.xlu0 %2203
        %2205 = vrot.lane.b32.xlu0 %v383, 96
        %v2206 = vpop.permute.xlu0 %2205
        %2207 = vrot.lane.b32.xlu0 %v389, 96
        %v2208 = vpop.permute.xlu0 %2207
        %2209 = vrot.lane.b32.xlu0 %v395, 96
        %v2210 = vpop.permute.xlu0 %2209
        %2211 = vrot.lane.b32.xlu0 %v401, 96
        %v2212 = vpop.permute.xlu0 %2211
        %2213 = vrot.lane.b32.xlu0 %v407, 96
        %v2214 = vpop.permute.xlu0 %2213
        %2215 = vrot.lane.b32.xlu0 %v413, 96
        %v2216 = vpop.permute.xlu0 %2215
        %2217 = vrot.lane.b32.xlu0 %v419, 96
        %v2218 = vpop.permute.xlu0 %2217
        %2219 = vrot.lane.b32.xlu0 %v425, 96
        %v2220 = vpop.permute.xlu0 %2219
        %2221 = vrot.lane.b32.xlu0 %v431, 96
        %v2222 = vpop.permute.xlu0 %2221
        %2223 = vrot.lane.b32.xlu0 %v437, 96
        %v2224 = vpop.permute.xlu0 %2223
        %2225 = vrot.lane.b32.xlu0 %v443, 96
        %v2226 = vpop.permute.xlu0 %2225
        %2227 = vrot.lane.b32.xlu0 %v449, 96
        %v2228 = vpop.permute.xlu0 %2227
        %2229 = vrot.lane.b32.xlu0 %v455, 96
        %v2230 = vpop.permute.xlu0 %2229
        %2231 = vrot.lane.b32.xlu0 %v461, 96
        %v2232 = vpop.permute.xlu0 %2231
        %2233 = vrot.lane.b32.xlu0 %v467, 96
        %v2234 = vpop.permute.xlu0 %2233
        %2235 = vrot.lane.b32.xlu0 %v473, 96
        %v2236 = vpop.permute.xlu0 %2235
        %2237 = vrot.lane.b32.xlu0 %v479, 96
        %v2238 = vpop.permute.xlu0 %2237
        %2239 = vrot.lane.b32.xlu0 %v485, 96
        %v2240 = vpop.permute.xlu0 %2239
        %2241 = vrot.lane.b32.xlu0 %v491, 96
        %v2242 = vpop.permute.xlu0 %2241
        %2243 = vrot.lane.b32.xlu0 %v497, 96
        %v2244 = vpop.permute.xlu0 %2243
        %2245 = vrot.lane.b32.xlu0 %v503, 96
        %v2246 = vpop.permute.xlu0 %2245
        %2247 = vrot.lane.b32.xlu0 %v509, 96
        %v2248 = vpop.permute.xlu0 %2247
        %2249 = vrot.lane.b32.xlu0 %v515, 96
        %v2250 = vpop.permute.xlu0 %2249
        %2251 = vrot.lane.b32.xlu0 %v521, 96
        %v2252 = vpop.permute.xlu0 %2251
        %2253 = vrot.lane.b32.xlu0 %v527, 96
        %v2254 = vpop.permute.xlu0 %2253
        %2255 = vrot.lane.b32.xlu0 %v533, 96
        %v2256 = vpop.permute.xlu0 %2255
        %2257 = vrot.lane.b32.xlu0 %v539, 96
        %v2258 = vpop.permute.xlu0 %2257
        %2259 = vrot.lane.b32.xlu0 %v545, 96
        %v2260 = vpop.permute.xlu0 %2259
        %2261 = vrot.lane.b32.xlu0 %v551, 96
        %v2262 = vpop.permute.xlu0 %2261
        %2263 = vrot.lane.b32.xlu0 %v557, 96
        %v2264 = vpop.permute.xlu0 %2263
        %2265 = vrot.lane.b32.xlu0 %v563, 96
        %v2266 = vpop.permute.xlu0 %2265
        %2299 = vrot.lane.b32.xlu0 %v2171, 96
        %v2300 = vpop.permute.xlu0 %2299
        %2301 = vrot.lane.b32.xlu0 %v2172, 96
        %v2302 = vpop.permute.xlu0 %2301
        %2303 = vrot.lane.b32.xlu0 %v2173, 96
        %v2304 = vpop.permute.xlu0 %2303
        %2305 = vrot.lane.b32.xlu0 %v2174, 96
        %v2306 = vpop.permute.xlu0 %2305
        %2307 = vrot.lane.b32.xlu0 %v2175, 96
        %v2308 = vpop.permute.xlu0 %2307
        %2309 = vrot.lane.b32.xlu0 %v2176, 96
        %v2310 = vpop.permute.xlu0 %2309
        %2311 = vrot.lane.b32.xlu0 %v2177, 96
        %v2312 = vpop.permute.xlu0 %2311
        %2313 = vrot.lane.b32.xlu0 %v2178, 96
        %v2314 = vpop.permute.xlu0 %2313
        %2315 = vrot.lane.b32.xlu0 %v2179, 96
        %v2316 = vpop.permute.xlu0 %2315
        %2317 = vrot.lane.b32.xlu0 %v2180, 96
        %v2318 = vpop.permute.xlu0 %2317
        %2319 = vrot.lane.b32.xlu0 %v2181, 96
        %v2320 = vpop.permute.xlu0 %2319
        %2321 = vrot.lane.b32.xlu0 %v2182, 96
        %v2322 = vpop.permute.xlu0 %2321
        %2323 = vrot.lane.b32.xlu0 %v2183, 96
        %v2324 = vpop.permute.xlu0 %2323
        %2325 = vrot.lane.b32.xlu0 %v2184, 96
        %v2326 = vpop.permute.xlu0 %2325
        %2327 = vrot.lane.b32.xlu0 %v2185, 96
        %v2328 = vpop.permute.xlu0 %2327
        %2329 = vrot.lane.b32.xlu0 %v2186, 96
        %v2330 = vpop.permute.xlu0 %2329
        %2331 = vrot.lane.b32.xlu0 %v2187, 96
        %v2332 = vpop.permute.xlu0 %2331
        %2333 = vrot.lane.b32.xlu0 %v2188, 96
        %v2334 = vpop.permute.xlu0 %2333
        %2335 = vrot.lane.b32.xlu0 %v2189, 96
        %v2336 = vpop.permute.xlu0 %2335
        %2337 = vrot.lane.b32.xlu0 %v2190, 96
        %v2338 = vpop.permute.xlu0 %2337
        %2339 = vrot.lane.b32.xlu0 %v2191, 96
        %v2340 = vpop.permute.xlu0 %2339
        %2341 = vrot.lane.b32.xlu0 %v2192, 96
        %v2342 = vpop.permute.xlu0 %2341
        %2343 = vrot.lane.b32.xlu0 %v2193, 96
        %v2344 = vpop.permute.xlu0 %2343
        %2345 = vrot.lane.b32.xlu0 %v2194, 96
        %v2346 = vpop.permute.xlu0 %2345
        %2347 = vrot.lane.b32.xlu0 %v2195, 96
        %v2348 = vpop.permute.xlu0 %2347
        %2349 = vrot.lane.b32.xlu0 %v2196, 96
        %v2350 = vpop.permute.xlu0 %2349
        %2351 = vrot.lane.b32.xlu0 %v2197, 96
        %v2352 = vpop.permute.xlu0 %2351
        %2353 = vrot.lane.b32.xlu0 %v2198, 96
        %v2354 = vpop.permute.xlu0 %2353
        %2355 = vrot.lane.b32.xlu0 %v2199, 96
        %v2356 = vpop.permute.xlu0 %2355
        %2357 = vrot.lane.b32.xlu0 %v2200, 96
        %v2358 = vpop.permute.xlu0 %2357
        %2359 = vrot.lane.b32.xlu0 %v2201, 96
        %v2360 = vpop.permute.xlu0 %2359
        %2361 = vrot.lane.b32.xlu0 %v2202, 96
        %v2362 = vpop.permute.xlu0 %2361
        %v2363 = vsel %vm888, %v2204, 0
        %v2365 = vsel %vm888, %v2206, 0
        %v2367 = vsel %vm888, %v2208, 0
        %v2369 = vsel %vm888, %v2210, 0
        %v2371 = vsel %vm888, %v2212, 0
        %v2373 = vsel %vm888, %v2214, 0
        %v2375 = vsel %vm888, %v2216, 0
        %v2377 = vsel %vm888, %v2218, 0
        %v2379 = vsel %vm888, %v2220, 0
        %v2381 = vsel %vm888, %v2222, 0
        %v2383 = vsel %vm888, %v2224, 0
        %v2385 = vsel %vm888, %v2226, 0
        %v2387 = vsel %vm888, %v2228, 0
        %v2389 = vsel %vm888, %v2230, 0
        %v2391 = vsel %vm888, %v2232, 0
        %v2393 = vsel %vm888, %v2234, 0
        %v2395 = vsel %vm888, %v2236, 0
        %v2397 = vsel %vm888, %v2238, 0
        %v2399 = vsel %vm888, %v2240, 0
        %v2401 = vsel %vm888, %v2242, 0
        %v2403 = vsel %vm888, %v2244, 0
        %v2405 = vsel %vm888, %v2246, 0
        %v2407 = vsel %vm888, %v2248, 0
        %v2409 = vsel %vm888, %v2250, 0
        %v2411 = vsel %vm888, %v2252, 0
        %v2413 = vsel %vm888, %v2254, 0
        %v2415 = vsel %vm888, %v2256, 0
        %v2417 = vsel %vm888, %v2258, 0
        %v2419 = vsel %vm888, %v2260, 0
        %v2421 = vsel %vm888, %v2262, 0
        %v2423 = vsel %vm888, %v2264, 0
        %v2425 = vsel %vm888, %v2266, 0
        %v2427 = vsel %vm888, %v2300, 0
        %v2429 = vsel %vm888, %v2302, 0
        %v2431 = vsel %vm888, %v2304, 0
        %v2433 = vsel %vm888, %v2306, 0
        %v2435 = vsel %vm888, %v2308, 0
        %v2437 = vsel %vm888, %v2310, 0
        %v2439 = vsel %vm888, %v2312, 0
        %v2441 = vsel %vm888, %v2314, 0
        %v2443 = vsel %vm888, %v2316, 0
        %v2445 = vsel %vm888, %v2318, 0
        %v2447 = vsel %vm888, %v2320, 0
        %v2449 = vsel %vm888, %v2322, 0
        %v2451 = vsel %vm888, %v2324, 0
        %v2453 = vsel %vm888, %v2326, 0
        %v2455 = vsel %vm888, %v2328, 0
        %v2457 = vsel %vm888, %v2330, 0
        %v2459 = vsel %vm888, %v2332, 0
        %v2461 = vsel %vm888, %v2334, 0
        %v2463 = vsel %vm888, %v2336, 0
        %v2465 = vsel %vm888, %v2338, 0
        %v2467 = vsel %vm888, %v2340, 0
        %v2469 = vsel %vm888, %v2342, 0
        %v2471 = vsel %vm888, %v2344, 0
        %v2473 = vsel %vm888, %v2346, 0
        %v2475 = vsel %vm888, %v2348, 0
        %v2477 = vsel %vm888, %v2350, 0
        %v2479 = vsel %vm888, %v2352, 0
        %v2481 = vsel %vm888, %v2354, 0
        %v2483 = vsel %vm888, %v2356, 0
        %v2485 = vsel %vm888, %v2358, 0
        %v2487 = vsel %vm888, %v2360, 0
        %v2489 = vsel %vm888, %v2362, 0
        %2491 = vmatprep.subr.mxu0 0.0
        %2492 = vmatpush1.xpose.msra.mxu0 %v2457
        %2493 = vmatprep.subr.mxu0 0.0
        %2494 = vmatpush1.xpose.msra.mxu0 %v2455
        %2495 = vmatprep.subr.mxu0 0.0
        %2496 = vmatpush1.xpose.msra.mxu0 %v2453
        %2497 = vmatprep.subr.mxu0 0.0
        %2498 = vmatpush1.xpose.msra.mxu0 %v2451
        %2499 = vmatprep.subr.mxu0 0.0
        %2500 = vmatpush1.xpose.msra.mxu0 %v2449
        %2501 = vmatprep.subr.mxu0 0.0
        %2502 = vmatpush1.xpose.msra.mxu0 %v2447
        %2503 = vmatprep.subr.mxu0 0.0
        %2504 = vmatpush1.xpose.msra.mxu0 %v2445
        %2505 = vmatprep.subr.mxu0 0.0
        %2506 = vmatpush1.xpose.msra.mxu0 %v2443
        %2507 = vmatprep.subr.mxu0 0.0
        %2508 = vmatpush1.xpose.msra.mxu0 %v2441
        %2509 = vmatprep.subr.mxu0 0.0
        %2510 = vmatpush1.xpose.msra.mxu0 %v2439
        %2511 = vmatprep.subr.mxu0 0.0
        %2512 = vmatpush1.xpose.msra.mxu0 %v2437
        %2513 = vmatprep.subr.mxu0 0.0
        %2514 = vmatpush1.xpose.msra.mxu0 %v2435
        %2515 = vmatprep.subr.mxu0 0.0
        %2516 = vmatpush1.xpose.msra.mxu0 %v2433
        %2517 = vmatprep.subr.mxu0 0.0
        %2518 = vmatpush1.xpose.msra.mxu0 %v2431
        %2519 = vmatprep.subr.mxu0 0.0
        %2520 = vmatpush1.xpose.msra.mxu0 %v2429
        %2521 = vmatprep.subr.mxu0 0.0
        %2522 = vmatpush1.xpose.msra.mxu0 %v2427
        %2523 = vmatprep.subr.mxu0 0.0
        %2524 = vmatpush2.xpose.msra.mxu0 %v2489
        %2525 = vmatprep.subr.mxu0 0.0
        %2526 = vmatpush2.xpose.msra.mxu0 %v2487
        %2527 = vmatprep.subr.mxu0 0.0
        %2528 = vmatpush2.xpose.msra.mxu0 %v2485
        %2529 = vmatprep.subr.mxu0 0.0
        %2530 = vmatpush2.xpose.msra.mxu0 %v2483
        %2531 = vmatprep.subr.mxu0 0.0
        %2532 = vmatpush2.xpose.msra.mxu0 %v2481
        %2533 = vmatprep.subr.mxu0 0.0
        %2534 = vmatpush2.xpose.msra.mxu0 %v2479
        %2535 = vmatprep.subr.mxu0 0.0
        %2536 = vmatpush2.xpose.msra.mxu0 %v2477
        %2537 = vmatprep.subr.mxu0 0.0
        %2538 = vmatpush2.xpose.msra.mxu0 %v2475
        %2539 = vmatprep.subr.mxu0 0.0
        %2540 = vmatpush2.xpose.msra.mxu0 %v2473
        %2541 = vmatprep.subr.mxu0 0.0
        %2542 = vmatpush2.xpose.msra.mxu0 %v2471
        %2543 = vmatprep.subr.mxu0 0.0
        %2544 = vmatpush2.xpose.msra.mxu0 %v2469
        %2545 = vmatprep.subr.mxu0 0.0
        %2546 = vmatpush2.xpose.msra.mxu0 %v2467
        %2547 = vmatprep.subr.mxu0 0.0
        %2548 = vmatpush2.xpose.msra.mxu0 %v2465
        %2549 = vmatprep.subr.mxu0 0.0
        %2550 = vmatpush2.xpose.msra.mxu0 %v2463
        %2551 = vmatprep.subr.mxu0 0.0
        %2552 = vmatpush2.xpose.msra.mxu0 %v2461
        %2553 = vmatprep.subr.mxu0 0.0
        %2554 = vmatpush2.xpose.msra.mxu0 %v2459
        %2555 = vmatprep.mubr.f32.mxu0 0.0
        %2556 = vmatmul.mubr.f32.gmra.mxu0 %v2363
        %v2557 = vpop.f32.mrf.mxu0
        %v2558 = vadd.f32 0.0, %v2557
        %v2559 = vpop.f32.mrf.mxu0
        %v2560 = vadd.f32 0.0, %v2559
        %2561 = vmatprep.mubr.f32.mxu0 0.0
        %2562 = vmatmul.mubr.f32.gmra.mxu0 %v2365
        %v2563 = vpop.f32.mrf.mxu0
        %v2564 = vadd.f32 0.0, %v2563
        %v2565 = vpop.f32.mrf.mxu0
        %v2566 = vadd.f32 0.0, %v2565
        %2567 = vmatprep.mubr.f32.mxu0 0.0
        %2568 = vmatmul.mubr.f32.gmra.mxu0 %v2367
        %v2569 = vpop.f32.mrf.mxu0
        %v2570 = vadd.f32 0.0, %v2569
        %v2571 = vpop.f32.mrf.mxu0
        %v2572 = vadd.f32 0.0, %v2571
        %2573 = vmatprep.mubr.f32.mxu0 0.0
        %2574 = vmatmul.mubr.f32.gmra.mxu0 %v2369
        %v2575 = vpop.f32.mrf.mxu0
        %v2576 = vadd.f32 0.0, %v2575
        %v2577 = vpop.f32.mrf.mxu0
        %v2578 = vadd.f32 0.0, %v2577
        %2579 = vmatprep.mubr.f32.mxu0 0.0
        %2580 = vmatmul.mubr.f32.gmra.mxu0 %v2371
        %v2581 = vpop.f32.mrf.mxu0
        %v2582 = vadd.f32 0.0, %v2581
        %v2583 = vpop.f32.mrf.mxu0
        %v2584 = vadd.f32 0.0, %v2583
        %2585 = vmatprep.mubr.f32.mxu0 0.0
        %2586 = vmatmul.mubr.f32.gmra.mxu0 %v2373
        %v2587 = vpop.f32.mrf.mxu0
        %v2588 = vadd.f32 0.0, %v2587
        %v2589 = vpop.f32.mrf.mxu0
        %v2590 = vadd.f32 0.0, %v2589
        %2591 = vmatprep.mubr.f32.mxu0 0.0
        %2592 = vmatmul.mubr.f32.gmra.mxu0 %v2375
        %v2593 = vpop.f32.mrf.mxu0
        %v2594 = vadd.f32 0.0, %v2593
        %v2595 = vpop.f32.mrf.mxu0
        %v2596 = vadd.f32 0.0, %v2595
        %2597 = vmatprep.mubr.f32.mxu0 0.0
        %2598 = vmatmul.mubr.f32.gmra.mxu0 %v2377
        %v2599 = vpop.f32.mrf.mxu0
        %v2600 = vadd.f32 0.0, %v2599
        %v2601 = vpop.f32.mrf.mxu0
        %v2602 = vadd.f32 0.0, %v2601
        %2603 = vmatprep.mubr.f32.mxu0 0.0
        %2604 = vmatmul.mubr.f32.gmra.mxu0 %v2379
        %v2605 = vpop.f32.mrf.mxu0
        %v2606 = vadd.f32 0.0, %v2605
        %v2607 = vpop.f32.mrf.mxu0
        %v2608 = vadd.f32 0.0, %v2607
        %2609 = vmatprep.mubr.f32.mxu0 0.0
        %2610 = vmatmul.mubr.f32.gmra.mxu0 %v2381
        %v2611 = vpop.f32.mrf.mxu0
        %v2612 = vadd.f32 0.0, %v2611
        %v2613 = vpop.f32.mrf.mxu0
        %v2614 = vadd.f32 0.0, %v2613
        %2615 = vmatprep.mubr.f32.mxu0 0.0
        %2616 = vmatmul.mubr.f32.gmra.mxu0 %v2383
        %v2617 = vpop.f32.mrf.mxu0
        %v2618 = vadd.f32 0.0, %v2617
        %v2619 = vpop.f32.mrf.mxu0
        %v2620 = vadd.f32 0.0, %v2619
        %2621 = vmatprep.mubr.f32.mxu0 0.0
        %2622 = vmatmul.mubr.f32.gmra.mxu0 %v2385
        %v2623 = vpop.f32.mrf.mxu0
        %v2624 = vadd.f32 0.0, %v2623
        %v2625 = vpop.f32.mrf.mxu0
        %v2626 = vadd.f32 0.0, %v2625
        %2627 = vmatprep.mubr.f32.mxu0 0.0
        %2628 = vmatmul.mubr.f32.gmra.mxu0 %v2387
        %v2629 = vpop.f32.mrf.mxu0
        %v2630 = vadd.f32 0.0, %v2629
        %v2631 = vpop.f32.mrf.mxu0
        %v2632 = vadd.f32 0.0, %v2631
        %2633 = vmatprep.mubr.f32.mxu0 0.0
        %2634 = vmatmul.mubr.f32.gmra.mxu0 %v2389
        %v2635 = vpop.f32.mrf.mxu0
        %v2636 = vadd.f32 0.0, %v2635
        %v2637 = vpop.f32.mrf.mxu0
        %v2638 = vadd.f32 0.0, %v2637
        %2639 = vmatprep.mubr.f32.mxu0 0.0
        %2640 = vmatmul.mubr.f32.gmra.mxu0 %v2391
        %v2641 = vpop.f32.mrf.mxu0
        %v2642 = vadd.f32 0.0, %v2641
        %v2643 = vpop.f32.mrf.mxu0
        %v2644 = vadd.f32 0.0, %v2643
        %2645 = vmatprep.mubr.f32.mxu0 0.0
        %2646 = vmatmul.mubr.f32.gmra.mxu0 %v2393
        %v2647 = vpop.f32.mrf.mxu0
        %v2648 = vadd.f32 0.0, %v2647
        %v2649 = vpop.f32.mrf.mxu0
        %v2650 = vadd.f32 0.0, %v2649
        %2651 = vmatprep.mubr.f32.mxu0 0.0
        %2652 = vmatmul.mubr.f32.gmra.mxu0 %v2395
        %v2653 = vpop.f32.mrf.mxu0
        %v2654 = vadd.f32 0.0, %v2653
        %v2655 = vpop.f32.mrf.mxu0
        %v2656 = vadd.f32 0.0, %v2655
        %2657 = vmatprep.mubr.f32.mxu0 0.0
        %2658 = vmatmul.mubr.f32.gmra.mxu0 %v2397
        %v2659 = vpop.f32.mrf.mxu0
        %v2660 = vadd.f32 0.0, %v2659
        %v2661 = vpop.f32.mrf.mxu0
        %v2662 = vadd.f32 0.0, %v2661
        %2663 = vmatprep.mubr.f32.mxu0 0.0
        %2664 = vmatmul.mubr.f32.gmra.mxu0 %v2399
        %v2665 = vpop.f32.mrf.mxu0
        %v2666 = vadd.f32 0.0, %v2665
        %v2667 = vpop.f32.mrf.mxu0
        %v2668 = vadd.f32 0.0, %v2667
        %2669 = vmatprep.mubr.f32.mxu0 0.0
        %2670 = vmatmul.mubr.f32.gmra.mxu0 %v2401
        %v2671 = vpop.f32.mrf.mxu0
        %v2672 = vadd.f32 0.0, %v2671
        %v2673 = vpop.f32.mrf.mxu0
        %v2674 = vadd.f32 0.0, %v2673
        %2675 = vmatprep.mubr.f32.mxu0 0.0
        %2676 = vmatmul.mubr.f32.gmra.mxu0 %v2403
        %v2677 = vpop.f32.mrf.mxu0
        %v2678 = vadd.f32 0.0, %v2677
        %v2679 = vpop.f32.mrf.mxu0
        %v2680 = vadd.f32 0.0, %v2679
        %2681 = vmatprep.mubr.f32.mxu0 0.0
        %2682 = vmatmul.mubr.f32.gmra.mxu0 %v2405
        %v2683 = vpop.f32.mrf.mxu0
        %v2684 = vadd.f32 0.0, %v2683
        %v2685 = vpop.f32.mrf.mxu0
        %v2686 = vadd.f32 0.0, %v2685
        %2687 = vmatprep.mubr.f32.mxu0 0.0
        %2688 = vmatmul.mubr.f32.gmra.mxu0 %v2407
        %v2689 = vpop.f32.mrf.mxu0
        %v2690 = vadd.f32 0.0, %v2689
        %v2691 = vpop.f32.mrf.mxu0
        %v2692 = vadd.f32 0.0, %v2691
        %2693 = vmatprep.mubr.f32.mxu0 0.0
        %2694 = vmatmul.mubr.f32.gmra.mxu0 %v2409
        %v2695 = vpop.f32.mrf.mxu0
        %v2696 = vadd.f32 0.0, %v2695
        %v2697 = vpop.f32.mrf.mxu0
        %v2698 = vadd.f32 0.0, %v2697
        %2699 = vmatprep.mubr.f32.mxu0 0.0
        %2700 = vmatmul.mubr.f32.gmra.mxu0 %v2411
        %v2701 = vpop.f32.mrf.mxu0
        %v2702 = vadd.f32 0.0, %v2701
        %v2703 = vpop.f32.mrf.mxu0
        %v2704 = vadd.f32 0.0, %v2703
        %2705 = vmatprep.mubr.f32.mxu0 0.0
        %2706 = vmatmul.mubr.f32.gmra.mxu0 %v2413
        %v2707 = vpop.f32.mrf.mxu0
        %v2708 = vadd.f32 0.0, %v2707
        %v2709 = vpop.f32.mrf.mxu0
        %v2710 = vadd.f32 0.0, %v2709
        %2711 = vmatprep.mubr.f32.mxu0 0.0
        %2712 = vmatmul.mubr.f32.gmra.mxu0 %v2415
        %v2713 = vpop.f32.mrf.mxu0
        %v2714 = vadd.f32 0.0, %v2713
        %v2715 = vpop.f32.mrf.mxu0
        %v2716 = vadd.f32 0.0, %v2715
        %2717 = vmatprep.mubr.f32.mxu0 0.0
        %2718 = vmatmul.mubr.f32.gmra.mxu0 %v2417
        %v2719 = vpop.f32.mrf.mxu0
        %v2720 = vadd.f32 0.0, %v2719
        %v2721 = vpop.f32.mrf.mxu0
        %v2722 = vadd.f32 0.0, %v2721
        %2723 = vmatprep.mubr.f32.mxu0 0.0
        %2724 = vmatmul.mubr.f32.gmra.mxu0 %v2419
        %v2725 = vpop.f32.mrf.mxu0
        %v2726 = vadd.f32 0.0, %v2725
        %v2727 = vpop.f32.mrf.mxu0
        %v2728 = vadd.f32 0.0, %v2727
        %2729 = vmatprep.mubr.f32.mxu0 0.0
        %2730 = vmatmul.mubr.f32.gmra.mxu0 %v2421
        %v2731 = vpop.f32.mrf.mxu0
        %v2732 = vadd.f32 0.0, %v2731
        %v2733 = vpop.f32.mrf.mxu0
        %v2734 = vadd.f32 0.0, %v2733
        %2735 = vmatprep.mubr.f32.mxu0 0.0
        %2736 = vmatmul.mubr.f32.gmra.mxu0 %v2423
        %v2737 = vpop.f32.mrf.mxu0
        %v2738 = vadd.f32 0.0, %v2737
        %v2739 = vpop.f32.mrf.mxu0
        %v2740 = vadd.f32 0.0, %v2739
        %2741 = vmatprep.mubr.f32.mxu0 0.0
        %2742 = vmatmul.mubr.f32.gmra.mxu0 %v2425
        %v2743 = vpop.f32.mrf.mxu0
        %v2744 = vadd.f32 0.0, %v2743
        %v2745 = vpop.f32.mrf.mxu0
        %v2746 = vadd.f32 0.0, %v2745
        %2747 = vdwg.mxu0
        %v2748 = vmax.f32 %v2558, %v2560
        %2749 = vmax.xlane.f32.xlu0 %v2748
        %v2750 = vpop.xlane.xlu0 %2749
        %v2751 = vmax.f32 %v2564, %v2566
        %2752 = vmax.xlane.f32.xlu0 %v2751
        %v2753 = vpop.xlane.xlu0 %2752
        %v2754 = vmax.f32 %v2570, %v2572
        %2755 = vmax.xlane.f32.xlu0 %v2754
        %v2756 = vpop.xlane.xlu0 %2755
        %v2757 = vmax.f32 %v2576, %v2578
        %2758 = vmax.xlane.f32.xlu0 %v2757
        %v2759 = vpop.xlane.xlu0 %2758
        %v2760 = vmax.f32 %v2582, %v2584
        %2761 = vmax.xlane.f32.xlu0 %v2760
        %v2762 = vpop.xlane.xlu0 %2761
        %v2763 = vmax.f32 %v2588, %v2590
        %2764 = vmax.xlane.f32.xlu0 %v2763
        %v2765 = vpop.xlane.xlu0 %2764
        %v2766 = vmax.f32 %v2594, %v2596
        %2767 = vmax.xlane.f32.xlu0 %v2766
        %v2768 = vpop.xlane.xlu0 %2767
        %v2769 = vmax.f32 %v2600, %v2602
        %2770 = vmax.xlane.f32.xlu0 %v2769
        %v2771 = vpop.xlane.xlu0 %2770
        %v2772 = vmax.f32 %v2606, %v2608
        %2773 = vmax.xlane.f32.xlu0 %v2772
        %v2774 = vpop.xlane.xlu0 %2773
        %v2775 = vmax.f32 %v2612, %v2614
        %2776 = vmax.xlane.f32.xlu0 %v2775
        %v2777 = vpop.xlane.xlu0 %2776
        %v2778 = vmax.f32 %v2618, %v2620
        %2779 = vmax.xlane.f32.xlu0 %v2778
        %v2780 = vpop.xlane.xlu0 %2779
        %v2781 = vmax.f32 %v2624, %v2626
        %2782 = vmax.xlane.f32.xlu0 %v2781
        %v2783 = vpop.xlane.xlu0 %2782
        %v2784 = vmax.f32 %v2630, %v2632
        %2785 = vmax.xlane.f32.xlu0 %v2784
        %v2786 = vpop.xlane.xlu0 %2785
        %v2787 = vmax.f32 %v2636, %v2638
        %2788 = vmax.xlane.f32.xlu0 %v2787
        %v2789 = vpop.xlane.xlu0 %2788
        %v2790 = vmax.f32 %v2642, %v2644
        %2791 = vmax.xlane.f32.xlu0 %v2790
        %v2792 = vpop.xlane.xlu0 %2791
        %v2793 = vmax.f32 %v2648, %v2650
        %2794 = vmax.xlane.f32.xlu0 %v2793
        %v2795 = vpop.xlane.xlu0 %2794
        %v2796 = vmax.f32 %v2654, %v2656
        %2797 = vmax.xlane.f32.xlu0 %v2796
        %v2798 = vpop.xlane.xlu0 %2797
        %v2799 = vmax.f32 %v2660, %v2662
        %2800 = vmax.xlane.f32.xlu0 %v2799
        %v2801 = vpop.xlane.xlu0 %2800
        %v2802 = vmax.f32 %v2666, %v2668
        %2803 = vmax.xlane.f32.xlu0 %v2802
        %v2804 = vpop.xlane.xlu0 %2803
        %v2805 = vmax.f32 %v2672, %v2674
        %2806 = vmax.xlane.f32.xlu0 %v2805
        %v2807 = vpop.xlane.xlu0 %2806
        %v2808 = vmax.f32 %v2678, %v2680
        %2809 = vmax.xlane.f32.xlu0 %v2808
        %v2810 = vpop.xlane.xlu0 %2809
        %v2811 = vmax.f32 %v2684, %v2686
        %2812 = vmax.xlane.f32.xlu0 %v2811
        %v2813 = vpop.xlane.xlu0 %2812
        %v2814 = vmax.f32 %v2690, %v2692
        %2815 = vmax.xlane.f32.xlu0 %v2814
        %v2816 = vpop.xlane.xlu0 %2815
        %v2817 = vmax.f32 %v2696, %v2698
        %2818 = vmax.xlane.f32.xlu0 %v2817
        %v2819 = vpop.xlane.xlu0 %2818
        %v2820 = vmax.f32 %v2702, %v2704
        %2821 = vmax.xlane.f32.xlu0 %v2820
        %v2822 = vpop.xlane.xlu0 %2821
        %v2823 = vmax.f32 %v2708, %v2710
        %2824 = vmax.xlane.f32.xlu0 %v2823
        %v2825 = vpop.xlane.xlu0 %2824
        %v2826 = vmax.f32 %v2714, %v2716
        %2827 = vmax.xlane.f32.xlu0 %v2826
        %v2828 = vpop.xlane.xlu0 %2827
        %v2829 = vmax.f32 %v2720, %v2722
        %2830 = vmax.xlane.f32.xlu0 %v2829
        %v2831 = vpop.xlane.xlu0 %2830
        %v2832 = vmax.f32 %v2726, %v2728
        %2833 = vmax.xlane.f32.xlu0 %v2832
        %v2834 = vpop.xlane.xlu0 %2833
        %v2835 = vmax.f32 %v2732, %v2734
        %2836 = vmax.xlane.f32.xlu0 %v2835
        %v2837 = vpop.xlane.xlu0 %2836
        %v2838 = vmax.f32 %v2738, %v2740
        %2839 = vmax.xlane.f32.xlu0 %v2838
        %v2840 = vpop.xlane.xlu0 %2839
        %v2841 = vmax.f32 %v2744, %v2746
        %2842 = vmax.xlane.f32.xlu0 %v2841
        %v2843 = vpop.xlane.xlu0 %2842
        %v2844 = vsub.f32 %v2558, %v2750
        %v2845 = vsub.f32 %v2560, %v2750
        %v2846 = vsub.f32 %v2564, %v2753
        %v2847 = vsub.f32 %v2566, %v2753
        %v2848 = vsub.f32 %v2570, %v2756
        %v2849 = vsub.f32 %v2572, %v2756
        %v2850 = vsub.f32 %v2576, %v2759
        %v2851 = vsub.f32 %v2578, %v2759
        %v2852 = vsub.f32 %v2582, %v2762
        %v2853 = vsub.f32 %v2584, %v2762
        %v2854 = vsub.f32 %v2588, %v2765
        %v2855 = vsub.f32 %v2590, %v2765
        %v2856 = vsub.f32 %v2594, %v2768
        %v2857 = vsub.f32 %v2596, %v2768
        %v2858 = vsub.f32 %v2600, %v2771
        %v2859 = vsub.f32 %v2602, %v2771
        %v2860 = vsub.f32 %v2606, %v2774
        %v2861 = vsub.f32 %v2608, %v2774
        %v2862 = vsub.f32 %v2612, %v2777
        %v2863 = vsub.f32 %v2614, %v2777
        %v2864 = vsub.f32 %v2618, %v2780
        %v2865 = vsub.f32 %v2620, %v2780
        %v2866 = vsub.f32 %v2624, %v2783
        %v2867 = vsub.f32 %v2626, %v2783
        %v2868 = vsub.f32 %v2630, %v2786
        %v2869 = vsub.f32 %v2632, %v2786
        %v2870 = vsub.f32 %v2636, %v2789
        %v2871 = vsub.f32 %v2638, %v2789
        %v2872 = vsub.f32 %v2642, %v2792
        %v2873 = vsub.f32 %v2644, %v2792
        %v2874 = vsub.f32 %v2648, %v2795
        %v2875 = vsub.f32 %v2650, %v2795
        %v2876 = vsub.f32 %v2654, %v2798
        %v2877 = vsub.f32 %v2656, %v2798
        %v2878 = vsub.f32 %v2660, %v2801
        %v2879 = vsub.f32 %v2662, %v2801
        %v2880 = vsub.f32 %v2666, %v2804
        %v2881 = vsub.f32 %v2668, %v2804
        %v2882 = vsub.f32 %v2672, %v2807
        %v2883 = vsub.f32 %v2674, %v2807
        %v2884 = vsub.f32 %v2678, %v2810
        %v2885 = vsub.f32 %v2680, %v2810
        %v2886 = vsub.f32 %v2684, %v2813
        %v2887 = vsub.f32 %v2686, %v2813
        %v2888 = vsub.f32 %v2690, %v2816
        %v2889 = vsub.f32 %v2692, %v2816
        %v2890 = vsub.f32 %v2696, %v2819
        %v2891 = vsub.f32 %v2698, %v2819
        %v2892 = vsub.f32 %v2702, %v2822
        %v2893 = vsub.f32 %v2704, %v2822
        %v2894 = vsub.f32 %v2708, %v2825
        %v2895 = vsub.f32 %v2710, %v2825
        %v2896 = vsub.f32 %v2714, %v2828
        %v2897 = vsub.f32 %v2716, %v2828
        %v2898 = vsub.f32 %v2720, %v2831
        %v2899 = vsub.f32 %v2722, %v2831
        %v2900 = vsub.f32 %v2726, %v2834
        %v2901 = vsub.f32 %v2728, %v2834
        %v2902 = vsub.f32 %v2732, %v2837
        %v2903 = vsub.f32 %v2734, %v2837
        %v2904 = vsub.f32 %v2738, %v2840
        %v2905 = vsub.f32 %v2740, %v2840
        %v2906 = vsub.f32 %v2744, %v2843
        %v2907 = vsub.f32 %v2746, %v2843
        %v2908 = vmul.f32 %v2844, 1.442695
        %v2909 = vpow.pop %v2908
        %v2910 = vmul.f32 %v2845, 1.442695
        %v2911 = vpow.pop %v2910
        %v2912 = vmul.f32 %v2846, 1.442695
        %v2913 = vpow.pop %v2912
        %v2914 = vmul.f32 %v2847, 1.442695
        %v2915 = vpow.pop %v2914
        %v2916 = vmul.f32 %v2848, 1.442695
        %v2917 = vpow.pop %v2916
        %v2918 = vmul.f32 %v2849, 1.442695
        %v2919 = vpow.pop %v2918
        %v2920 = vmul.f32 %v2850, 1.442695
        %v2921 = vpow.pop %v2920
        %v2922 = vmul.f32 %v2851, 1.442695
        %v2923 = vpow.pop %v2922
        %v2924 = vmul.f32 %v2852, 1.442695
        %v2925 = vpow.pop %v2924
        %v2926 = vmul.f32 %v2853, 1.442695
        %v2927 = vpow.pop %v2926
        %v2928 = vmul.f32 %v2854, 1.442695
        %v2929 = vpow.pop %v2928
        %v2930 = vmul.f32 %v2855, 1.442695
        %v2931 = vpow.pop %v2930
        %v2932 = vmul.f32 %v2856, 1.442695
        %v2933 = vpow.pop %v2932
        %v2934 = vmul.f32 %v2857, 1.442695
        %v2935 = vpow.pop %v2934
        %v2936 = vmul.f32 %v2858, 1.442695
        %v2937 = vpow.pop %v2936
        %v2938 = vmul.f32 %v2859, 1.442695
        %v2939 = vpow.pop %v2938
        %v2940 = vmul.f32 %v2860, 1.442695
        %v2941 = vpow.pop %v2940
        %v2942 = vmul.f32 %v2861, 1.442695
        %v2943 = vpow.pop %v2942
        %v2944 = vmul.f32 %v2862, 1.442695
        %v2945 = vpow.pop %v2944
        %v2946 = vmul.f32 %v2863, 1.442695
        %v2947 = vpow.pop %v2946
        %v2948 = vmul.f32 %v2864, 1.442695
        %v2949 = vpow.pop %v2948
        %v2950 = vmul.f32 %v2865, 1.442695
        %v2951 = vpow.pop %v2950
        %v2952 = vmul.f32 %v2866, 1.442695
        %v2953 = vpow.pop %v2952
        %v2954 = vmul.f32 %v2867, 1.442695
        %v2955 = vpow.pop %v2954
        %v2956 = vmul.f32 %v2868, 1.442695
        %v2957 = vpow.pop %v2956
        %v2958 = vmul.f32 %v2869, 1.442695
        %v2959 = vpow.pop %v2958
        %v2960 = vmul.f32 %v2870, 1.442695
        %v2961 = vpow.pop %v2960
        %v2962 = vmul.f32 %v2871, 1.442695
        %v2963 = vpow.pop %v2962
        %v2964 = vmul.f32 %v2872, 1.442695
        %v2965 = vpow.pop %v2964
        %v2966 = vmul.f32 %v2873, 1.442695
        %v2967 = vpow.pop %v2966
        %v2968 = vmul.f32 %v2874, 1.442695
        %v2969 = vpow.pop %v2968
        %v2970 = vmul.f32 %v2875, 1.442695
        %v2971 = vpow.pop %v2970
        %v2972 = vmul.f32 %v2876, 1.442695
        %v2973 = vpow.pop %v2972
        %v2974 = vmul.f32 %v2877, 1.442695
        %v2975 = vpow.pop %v2974
        %v2976 = vmul.f32 %v2878, 1.442695
        %v2977 = vpow.pop %v2976
        %v2978 = vmul.f32 %v2879, 1.442695
        %v2979 = vpow.pop %v2978
        %v2980 = vmul.f32 %v2880, 1.442695
        %v2981 = vpow.pop %v2980
        %v2982 = vmul.f32 %v2881, 1.442695
        %v2983 = vpow.pop %v2982
        %v2984 = vmul.f32 %v2882, 1.442695
        %v2985 = vpow.pop %v2984
        %v2986 = vmul.f32 %v2883, 1.442695
        %v2987 = vpow.pop %v2986
        %v2988 = vmul.f32 %v2884, 1.442695
        %v2989 = vpow.pop %v2988
        %v2990 = vmul.f32 %v2885, 1.442695
        %v2991 = vpow.pop %v2990
        %v2992 = vmul.f32 %v2886, 1.442695
        %v2993 = vpow.pop %v2992
        %v2994 = vmul.f32 %v2887, 1.442695
        %v2995 = vpow.pop %v2994
        %v2996 = vmul.f32 %v2888, 1.442695
        %v2997 = vpow.pop %v2996
        %v2998 = vmul.f32 %v2889, 1.442695
        %v2999 = vpow.pop %v2998
        %v3000 = vmul.f32 %v2890, 1.442695
        %v3001 = vpow.pop %v3000
        %v3002 = vmul.f32 %v2891, 1.442695
        %v3003 = vpow.pop %v3002
        %v3004 = vmul.f32 %v2892, 1.442695
        %v3005 = vpow.pop %v3004
        %v3006 = vmul.f32 %v2893, 1.442695
        %v3007 = vpow.pop %v3006
        %v3008 = vmul.f32 %v2894, 1.442695
        %v3009 = vpow.pop %v3008
        %v3010 = vmul.f32 %v2895, 1.442695
        %v3011 = vpow.pop %v3010
        %v3012 = vmul.f32 %v2896, 1.442695
        %v3013 = vpow.pop %v3012
        %v3014 = vmul.f32 %v2897, 1.442695
        %v3015 = vpow.pop %v3014
        %v3016 = vmul.f32 %v2898, 1.442695
        %v3017 = vpow.pop %v3016
        %v3018 = vmul.f32 %v2899, 1.442695
        %v3019 = vpow.pop %v3018
        %v3020 = vmul.f32 %v2900, 1.442695
        %v3021 = vpow.pop %v3020
        %v3022 = vmul.f32 %v2901, 1.442695
        %v3023 = vpow.pop %v3022
        %v3024 = vmul.f32 %v2902, 1.442695
        %v3025 = vpow.pop %v3024
        %v3026 = vmul.f32 %v2903, 1.442695
        %v3027 = vpow.pop %v3026
        %v3028 = vmul.f32 %v2904, 1.442695
        %v3029 = vpow.pop %v3028
        %v3030 = vmul.f32 %v2905, 1.442695
        %v3031 = vpow.pop %v3030
        %v3032 = vmul.f32 %v2906, 1.442695
        %v3033 = vpow.pop %v3032
        %v3034 = vmul.f32 %v2907, 1.442695
        %v3035 = vpow.pop %v3034
        %v3036 = vadd.f32 %v2909, %v2911
        %3037 = vadd.xlane.f32.xlu0 %v3036
        %v3038 = vpop.xlane.xlu0 %3037
        %v3039 = vadd.f32 %v2913, %v2915
        %3040 = vadd.xlane.f32.xlu0 %v3039
        %v3041 = vpop.xlane.xlu0 %3040
        %v3042 = vadd.f32 %v2917, %v2919
        %3043 = vadd.xlane.f32.xlu0 %v3042
        %v3044 = vpop.xlane.xlu0 %3043
        %v3045 = vadd.f32 %v2921, %v2923
        %3046 = vadd.xlane.f32.xlu0 %v3045
        %v3047 = vpop.xlane.xlu0 %3046
        %v3048 = vadd.f32 %v2925, %v2927
        %3049 = vadd.xlane.f32.xlu0 %v3048
        %v3050 = vpop.xlane.xlu0 %3049
        %v3051 = vadd.f32 %v2929, %v2931
        %3052 = vadd.xlane.f32.xlu0 %v3051
        %v3053 = vpop.xlane.xlu0 %3052
        %v3054 = vadd.f32 %v2933, %v2935
        %3055 = vadd.xlane.f32.xlu0 %v3054
        %v3056 = vpop.xlane.xlu0 %3055
        %v3057 = vadd.f32 %v2937, %v2939
        %3058 = vadd.xlane.f32.xlu0 %v3057
        %v3059 = vpop.xlane.xlu0 %3058
        %v3060 = vadd.f32 %v2941, %v2943
        %3061 = vadd.xlane.f32.xlu0 %v3060
        %v3062 = vpop.xlane.xlu0 %3061
        %v3063 = vadd.f32 %v2945, %v2947
        %3064 = vadd.xlane.f32.xlu0 %v3063
        %v3065 = vpop.xlane.xlu0 %3064
        %v3066 = vadd.f32 %v2949, %v2951
        %3067 = vadd.xlane.f32.xlu0 %v3066
        %v3068 = vpop.xlane.xlu0 %3067
        %v3069 = vadd.f32 %v2953, %v2955
        %3070 = vadd.xlane.f32.xlu0 %v3069
        %v3071 = vpop.xlane.xlu0 %3070
        %v3072 = vadd.f32 %v2957, %v2959
        %3073 = vadd.xlane.f32.xlu0 %v3072
        %v3074 = vpop.xlane.xlu0 %3073
        %v3075 = vadd.f32 %v2961, %v2963
        %3076 = vadd.xlane.f32.xlu0 %v3075
        %v3077 = vpop.xlane.xlu0 %3076
        %v3078 = vadd.f32 %v2965, %v2967
        %3079 = vadd.xlane.f32.xlu0 %v3078
        %v3080 = vpop.xlane.xlu0 %3079
        %v3081 = vadd.f32 %v2969, %v2971
        %3082 = vadd.xlane.f32.xlu0 %v3081
        %v3083 = vpop.xlane.xlu0 %3082
        %v3084 = vadd.f32 %v2973, %v2975
        %3085 = vadd.xlane.f32.xlu0 %v3084
        %v3086 = vpop.xlane.xlu0 %3085
        %v3087 = vadd.f32 %v2977, %v2979
        %3088 = vadd.xlane.f32.xlu0 %v3087
        %v3089 = vpop.xlane.xlu0 %3088
        %v3090 = vadd.f32 %v2981, %v2983
        %3091 = vadd.xlane.f32.xlu0 %v3090
        %v3092 = vpop.xlane.xlu0 %3091
        %v3093 = vadd.f32 %v2985, %v2987
        %3094 = vadd.xlane.f32.xlu0 %v3093
        %v3095 = vpop.xlane.xlu0 %3094
        %v3096 = vadd.f32 %v2989, %v2991
        %3097 = vadd.xlane.f32.xlu0 %v3096
        %v3098 = vpop.xlane.xlu0 %3097
        %v3099 = vadd.f32 %v2993, %v2995
        %3100 = vadd.xlane.f32.xlu0 %v3099
        %v3101 = vpop.xlane.xlu0 %3100
        %v3102 = vadd.f32 %v2997, %v2999
        %3103 = vadd.xlane.f32.xlu0 %v3102
        %v3104 = vpop.xlane.xlu0 %3103
        %v3105 = vadd.f32 %v3001, %v3003
        %3106 = vadd.xlane.f32.xlu0 %v3105
        %v3107 = vpop.xlane.xlu0 %3106
        %v3108 = vadd.f32 %v3005, %v3007
        %3109 = vadd.xlane.f32.xlu0 %v3108
        %v3110 = vpop.xlane.xlu0 %3109
        %v3111 = vadd.f32 %v3009, %v3011
        %3112 = vadd.xlane.f32.xlu0 %v3111
        %v3113 = vpop.xlane.xlu0 %3112
        %v3114 = vadd.f32 %v3013, %v3015
        %3115 = vadd.xlane.f32.xlu0 %v3114
        %v3116 = vpop.xlane.xlu0 %3115
        %v3117 = vadd.f32 %v3017, %v3019
        %3118 = vadd.xlane.f32.xlu0 %v3117
        %v3119 = vpop.xlane.xlu0 %3118
        %v3120 = vadd.f32 %v3021, %v3023
        %3121 = vadd.xlane.f32.xlu0 %v3120
        %v3122 = vpop.xlane.xlu0 %3121
        %v3123 = vadd.f32 %v3025, %v3027
        %3124 = vadd.xlane.f32.xlu0 %v3123
        %v3125 = vpop.xlane.xlu0 %3124
        %v3126 = vadd.f32 %v3029, %v3031
        %3127 = vadd.xlane.f32.xlu0 %v3126
        %v3128 = vpop.xlane.xlu0 %3127
        %v3129 = vadd.f32 %v3033, %v3035
        %3130 = vadd.xlane.f32.xlu0 %v3129
        %v3131 = vpop.xlane.xlu0 %3130
        %3164 = vrot.lane.b32.xlu0 %v634, 96
        %v3165 = vpop.permute.xlu0 %3164
        %3166 = vrot.lane.b32.xlu0 %v639, 96
        %v3167 = vpop.permute.xlu0 %3166
        %3168 = vrot.lane.b32.xlu0 %v644, 96
        %v3169 = vpop.permute.xlu0 %3168
        %3170 = vrot.lane.b32.xlu0 %v649, 96
        %v3171 = vpop.permute.xlu0 %3170
        %3172 = vrot.lane.b32.xlu0 %v654, 96
        %v3173 = vpop.permute.xlu0 %3172
        %3174 = vrot.lane.b32.xlu0 %v659, 96
        %v3175 = vpop.permute.xlu0 %3174
        %3176 = vrot.lane.b32.xlu0 %v664, 96
        %v3177 = vpop.permute.xlu0 %3176
        %3178 = vrot.lane.b32.xlu0 %v669, 96
        %v3179 = vpop.permute.xlu0 %3178
        %3180 = vrot.lane.b32.xlu0 %v674, 96
        %v3181 = vpop.permute.xlu0 %3180
        %3182 = vrot.lane.b32.xlu0 %v679, 96
        %v3183 = vpop.permute.xlu0 %3182
        %3184 = vrot.lane.b32.xlu0 %v684, 96
        %v3185 = vpop.permute.xlu0 %3184
        %3186 = vrot.lane.b32.xlu0 %v689, 96
        %v3187 = vpop.permute.xlu0 %3186
        %3188 = vrot.lane.b32.xlu0 %v694, 96
        %v3189 = vpop.permute.xlu0 %3188
        %3190 = vrot.lane.b32.xlu0 %v699, 96
        %v3191 = vpop.permute.xlu0 %3190
        %3192 = vrot.lane.b32.xlu0 %v704, 96
        %v3193 = vpop.permute.xlu0 %3192
        %3194 = vrot.lane.b32.xlu0 %v709, 96
        %v3195 = vpop.permute.xlu0 %3194
        %3196 = vrot.lane.b32.xlu0 %v714, 96
        %v3197 = vpop.permute.xlu0 %3196
        %3198 = vrot.lane.b32.xlu0 %v719, 96
        %v3199 = vpop.permute.xlu0 %3198
        %3200 = vrot.lane.b32.xlu0 %v724, 96
        %v3201 = vpop.permute.xlu0 %3200
        %3202 = vrot.lane.b32.xlu0 %v729, 96
        %v3203 = vpop.permute.xlu0 %3202
        %3204 = vrot.lane.b32.xlu0 %v734, 96
        %v3205 = vpop.permute.xlu0 %3204
        %3206 = vrot.lane.b32.xlu0 %v739, 96
        %v3207 = vpop.permute.xlu0 %3206
        %3208 = vrot.lane.b32.xlu0 %v744, 96
        %v3209 = vpop.permute.xlu0 %3208
        %3210 = vrot.lane.b32.xlu0 %v749, 96
        %v3211 = vpop.permute.xlu0 %3210
        %3212 = vrot.lane.b32.xlu0 %v754, 96
        %v3213 = vpop.permute.xlu0 %3212
        %3214 = vrot.lane.b32.xlu0 %v759, 96
        %v3215 = vpop.permute.xlu0 %3214
        %3216 = vrot.lane.b32.xlu0 %v764, 96
        %v3217 = vpop.permute.xlu0 %3216
        %3218 = vrot.lane.b32.xlu0 %v769, 96
        %v3219 = vpop.permute.xlu0 %3218
        %3220 = vrot.lane.b32.xlu0 %v774, 96
        %v3221 = vpop.permute.xlu0 %3220
        %3222 = vrot.lane.b32.xlu0 %v779, 96
        %v3223 = vpop.permute.xlu0 %3222
        %3224 = vrot.lane.b32.xlu0 %v784, 96
        %v3225 = vpop.permute.xlu0 %3224
        %3226 = vrot.lane.b32.xlu0 %v789, 96
        %v3227 = vpop.permute.xlu0 %3226
        %3260 = vmatprep.subr.mxu0 0.0
        %3261 = vmatpush1.msra.mxu0 %v3195
        %3262 = vmatprep.subr.mxu0 0.0
        %3263 = vmatpush1.msra.mxu0 %v3193
        %3264 = vmatprep.subr.mxu0 0.0
        %3265 = vmatpush1.msra.mxu0 %v3191
        %3266 = vmatprep.subr.mxu0 0.0
        %3267 = vmatpush1.msra.mxu0 %v3189
        %3268 = vmatprep.subr.mxu0 0.0
        %3269 = vmatpush1.msra.mxu0 %v3187
        %3270 = vmatprep.subr.mxu0 0.0
        %3271 = vmatpush1.msra.mxu0 %v3185
        %3272 = vmatprep.subr.mxu0 0.0
        %3273 = vmatpush1.msra.mxu0 %v3183
        %3274 = vmatprep.subr.mxu0 0.0
        %3275 = vmatpush1.msra.mxu0 %v3181
        %3276 = vmatprep.subr.mxu0 0.0
        %3277 = vmatpush1.msra.mxu0 %v3179
        %3278 = vmatprep.subr.mxu0 0.0
        %3279 = vmatpush1.msra.mxu0 %v3177
        %3280 = vmatprep.subr.mxu0 0.0
        %3281 = vmatpush1.msra.mxu0 %v3175
        %3282 = vmatprep.subr.mxu0 0.0
        %3283 = vmatpush1.msra.mxu0 %v3173
        %3284 = vmatprep.subr.mxu0 0.0
        %3285 = vmatpush1.msra.mxu0 %v3171
        %3286 = vmatprep.subr.mxu0 0.0
        %3287 = vmatpush1.msra.mxu0 %v3169
        %3288 = vmatprep.subr.mxu0 0.0
        %3289 = vmatpush1.msra.mxu0 %v3167
        %3290 = vmatprep.subr.mxu0 0.0
        %3291 = vmatpush1.msra.mxu0 %v3165
        %3292 = vmatprep.subr.mxu0 0.0
        %3293 = vmatpush2.msra.mxu0 %v3227
        %3294 = vmatprep.subr.mxu0 0.0
        %3295 = vmatpush2.msra.mxu0 %v3225
        %3296 = vmatprep.subr.mxu0 0.0
        %3297 = vmatpush2.msra.mxu0 %v3223
        %3298 = vmatprep.subr.mxu0 0.0
        %3299 = vmatpush2.msra.mxu0 %v3221
        %3300 = vmatprep.subr.mxu0 0.0
        %3301 = vmatpush2.msra.mxu0 %v3219
        %3302 = vmatprep.subr.mxu0 0.0
        %3303 = vmatpush2.msra.mxu0 %v3217
        %3304 = vmatprep.subr.mxu0 0.0
        %3305 = vmatpush2.msra.mxu0 %v3215
        %3306 = vmatprep.subr.mxu0 0.0
        %3307 = vmatpush2.msra.mxu0 %v3213
        %3308 = vmatprep.subr.mxu0 0.0
        %3309 = vmatpush2.msra.mxu0 %v3211
        %3310 = vmatprep.subr.mxu0 0.0
        %3311 = vmatpush2.msra.mxu0 %v3209
        %3312 = vmatprep.subr.mxu0 0.0
        %3313 = vmatpush2.msra.mxu0 %v3207
        %3314 = vmatprep.subr.mxu0 0.0
        %3315 = vmatpush2.msra.mxu0 %v3205
        %3316 = vmatprep.subr.mxu0 0.0
        %3317 = vmatpush2.msra.mxu0 %v3203
        %3318 = vmatprep.subr.mxu0 0.0
        %3319 = vmatpush2.msra.mxu0 %v3201
        %3320 = vmatprep.subr.mxu0 0.0
        %3321 = vmatpush2.msra.mxu0 %v3199
        %3322 = vmatprep.subr.mxu0 0.0
        %3323 = vmatpush2.msra.mxu0 %v3197
        %3324 = vmatprep.mubr.f32.mxu0 %v2911
        %3325 = vmatmul.mubr.f32.gmra.mxu0 %v2909
        %v3326 = vpop.f32.mrf.mxu0
        %v3327 = vadd.f32 0.0, %v3326
        %v3328 = vpop.f32.mrf.mxu0
        %3329 = vmatprep.mubr.f32.mxu0 %v2915
        %3330 = vmatmul.mubr.f32.gmra.mxu0 %v2913
        %v3331 = vpop.f32.mrf.mxu0
        %v3332 = vadd.f32 0.0, %v3331
        %v3333 = vpop.f32.mrf.mxu0
        %3334 = vmatprep.mubr.f32.mxu0 %v2919
        %3335 = vmatmul.mubr.f32.gmra.mxu0 %v2917
        %v3336 = vpop.f32.mrf.mxu0
        %v3337 = vadd.f32 0.0, %v3336
        %v3338 = vpop.f32.mrf.mxu0
        %3339 = vmatprep.mubr.f32.mxu0 %v2923
        %3340 = vmatmul.mubr.f32.gmra.mxu0 %v2921
        %v3341 = vpop.f32.mrf.mxu0
        %v3342 = vadd.f32 0.0, %v3341
        %v3343 = vpop.f32.mrf.mxu0
        %3344 = vmatprep.mubr.f32.mxu0 %v2927
        %3345 = vmatmul.mubr.f32.gmra.mxu0 %v2925
        %v3346 = vpop.f32.mrf.mxu0
        %v3347 = vadd.f32 0.0, %v3346
        %v3348 = vpop.f32.mrf.mxu0
        %3349 = vmatprep.mubr.f32.mxu0 %v2931
        %3350 = vmatmul.mubr.f32.gmra.mxu0 %v2929
        %v3351 = vpop.f32.mrf.mxu0
        %v3352 = vadd.f32 0.0, %v3351
        %v3353 = vpop.f32.mrf.mxu0
        %3354 = vmatprep.mubr.f32.mxu0 %v2935
        %3355 = vmatmul.mubr.f32.gmra.mxu0 %v2933
        %v3356 = vpop.f32.mrf.mxu0
        %v3357 = vadd.f32 0.0, %v3356
        %v3358 = vpop.f32.mrf.mxu0
        %3359 = vmatprep.mubr.f32.mxu0 %v2939
        %3360 = vmatmul.mubr.f32.gmra.mxu0 %v2937
        %v3361 = vpop.f32.mrf.mxu0
        %v3362 = vadd.f32 0.0, %v3361
        %v3363 = vpop.f32.mrf.mxu0
        %3364 = vmatprep.mubr.f32.mxu0 %v2943
        %3365 = vmatmul.mubr.f32.gmra.mxu0 %v2941
        %v3366 = vpop.f32.mrf.mxu0
        %v3367 = vadd.f32 0.0, %v3366
        %v3368 = vpop.f32.mrf.mxu0
        %3369 = vmatprep.mubr.f32.mxu0 %v2947
        %3370 = vmatmul.mubr.f32.gmra.mxu0 %v2945
        %v3371 = vpop.f32.mrf.mxu0
        %v3372 = vadd.f32 0.0, %v3371
        %v3373 = vpop.f32.mrf.mxu0
        %3374 = vmatprep.mubr.f32.mxu0 %v2951
        %3375 = vmatmul.mubr.f32.gmra.mxu0 %v2949
        %v3376 = vpop.f32.mrf.mxu0
        %v3377 = vadd.f32 0.0, %v3376
        %v3378 = vpop.f32.mrf.mxu0
        %3379 = vmatprep.mubr.f32.mxu0 %v2955
        %3380 = vmatmul.mubr.f32.gmra.mxu0 %v2953
        %v3381 = vpop.f32.mrf.mxu0
        %v3382 = vadd.f32 0.0, %v3381
        %v3383 = vpop.f32.mrf.mxu0
        %3384 = vmatprep.mubr.f32.mxu0 %v2959
        %3385 = vmatmul.mubr.f32.gmra.mxu0 %v2957
        %v3386 = vpop.f32.mrf.mxu0
        %v3387 = vadd.f32 0.0, %v3386
        %v3388 = vpop.f32.mrf.mxu0
        %3389 = vmatprep.mubr.f32.mxu0 %v2963
        %3390 = vmatmul.mubr.f32.gmra.mxu0 %v2961
        %v3391 = vpop.f32.mrf.mxu0
        %v3392 = vadd.f32 0.0, %v3391
        %v3393 = vpop.f32.mrf.mxu0
        %3394 = vmatprep.mubr.f32.mxu0 %v2967
        %3395 = vmatmul.mubr.f32.gmra.mxu0 %v2965
        %v3396 = vpop.f32.mrf.mxu0
        %v3397 = vadd.f32 0.0, %v3396
        %v3398 = vpop.f32.mrf.mxu0
        %3399 = vmatprep.mubr.f32.mxu0 %v2971
        %3400 = vmatmul.mubr.f32.gmra.mxu0 %v2969
        %v3401 = vpop.f32.mrf.mxu0
        %v3402 = vadd.f32 0.0, %v3401
        %v3403 = vpop.f32.mrf.mxu0
        %3404 = vmatprep.mubr.f32.mxu0 %v2975
        %3405 = vmatmul.mubr.f32.gmra.mxu0 %v2973
        %v3406 = vpop.f32.mrf.mxu0
        %v3407 = vadd.f32 0.0, %v3406
        %v3408 = vpop.f32.mrf.mxu0
        %3409 = vmatprep.mubr.f32.mxu0 %v2979
        %3410 = vmatmul.mubr.f32.gmra.mxu0 %v2977
        %v3411 = vpop.f32.mrf.mxu0
        %v3412 = vadd.f32 0.0, %v3411
        %v3413 = vpop.f32.mrf.mxu0
        %3414 = vmatprep.mubr.f32.mxu0 %v2983
        %3415 = vmatmul.mubr.f32.gmra.mxu0 %v2981
        %v3416 = vpop.f32.mrf.mxu0
        %v3417 = vadd.f32 0.0, %v3416
        %v3418 = vpop.f32.mrf.mxu0
        %3419 = vmatprep.mubr.f32.mxu0 %v2987
        %3420 = vmatmul.mubr.f32.gmra.mxu0 %v2985
        %v3421 = vpop.f32.mrf.mxu0
        %v3422 = vadd.f32 0.0, %v3421
        %v3423 = vpop.f32.mrf.mxu0
        %3424 = vmatprep.mubr.f32.mxu0 %v2991
        %3425 = vmatmul.mubr.f32.gmra.mxu0 %v2989
        %v3426 = vpop.f32.mrf.mxu0
        %v3427 = vadd.f32 0.0, %v3426
        %v3428 = vpop.f32.mrf.mxu0
        %3429 = vmatprep.mubr.f32.mxu0 %v2995
        %3430 = vmatmul.mubr.f32.gmra.mxu0 %v2993
        %v3431 = vpop.f32.mrf.mxu0
        %v3432 = vadd.f32 0.0, %v3431
        %v3433 = vpop.f32.mrf.mxu0
        %3434 = vmatprep.mubr.f32.mxu0 %v2999
        %3435 = vmatmul.mubr.f32.gmra.mxu0 %v2997
        %v3436 = vpop.f32.mrf.mxu0
        %v3437 = vadd.f32 0.0, %v3436
        %v3438 = vpop.f32.mrf.mxu0
        %3439 = vmatprep.mubr.f32.mxu0 %v3003
        %3440 = vmatmul.mubr.f32.gmra.mxu0 %v3001
        %v3441 = vpop.f32.mrf.mxu0
        %v3442 = vadd.f32 0.0, %v3441
        %v3443 = vpop.f32.mrf.mxu0
        %3444 = vmatprep.mubr.f32.mxu0 %v3007
        %3445 = vmatmul.mubr.f32.gmra.mxu0 %v3005
        %v3446 = vpop.f32.mrf.mxu0
        %v3447 = vadd.f32 0.0, %v3446
        %v3448 = vpop.f32.mrf.mxu0
        %3449 = vmatprep.mubr.f32.mxu0 %v3011
        %3450 = vmatmul.mubr.f32.gmra.mxu0 %v3009
        %v3451 = vpop.f32.mrf.mxu0
        %v3452 = vadd.f32 0.0, %v3451
        %v3453 = vpop.f32.mrf.mxu0
        %3454 = vmatprep.mubr.f32.mxu0 %v3015
        %3455 = vmatmul.mubr.f32.gmra.mxu0 %v3013
        %v3456 = vpop.f32.mrf.mxu0
        %v3457 = vadd.f32 0.0, %v3456
        %v3458 = vpop.f32.mrf.mxu0
        %3459 = vmatprep.mubr.f32.mxu0 %v3019
        %3460 = vmatmul.mubr.f32.gmra.mxu0 %v3017
        %v3461 = vpop.f32.mrf.mxu0
        %v3462 = vadd.f32 0.0, %v3461
        %v3463 = vpop.f32.mrf.mxu0
        %3464 = vmatprep.mubr.f32.mxu0 %v3023
        %3465 = vmatmul.mubr.f32.gmra.mxu0 %v3021
        %v3466 = vpop.f32.mrf.mxu0
        %v3467 = vadd.f32 0.0, %v3466
        %v3468 = vpop.f32.mrf.mxu0
        %3469 = vmatprep.mubr.f32.mxu0 %v3027
        %3470 = vmatmul.mubr.f32.gmra.mxu0 %v3025
        %v3471 = vpop.f32.mrf.mxu0
        %v3472 = vadd.f32 0.0, %v3471
        %v3473 = vpop.f32.mrf.mxu0
        %3474 = vmatprep.mubr.f32.mxu0 %v3031
        %3475 = vmatmul.mubr.f32.gmra.mxu0 %v3029
        %v3476 = vpop.f32.mrf.mxu0
        %v3477 = vadd.f32 0.0, %v3476
        %v3478 = vpop.f32.mrf.mxu0
        %3479 = vmatprep.mubr.f32.mxu0 %v3035
        %3480 = vmatmul.mubr.f32.gmra.mxu0 %v3033
        %v3481 = vpop.f32.mrf.mxu0
        %v3482 = vadd.f32 0.0, %v3481
        %v3483 = vpop.f32.mrf.mxu0
        %3484 = vdwg.mxu0
        %v3485 = vrcp.pop %v3038
        %v3486 = vrcp.pop %v3041
        %v3487 = vrcp.pop %v3044
        %v3488 = vrcp.pop %v3047
        %v3489 = vrcp.pop %v3050
        %v3490 = vrcp.pop %v3053
        %v3491 = vrcp.pop %v3056
        %v3492 = vrcp.pop %v3059
        %v3493 = vrcp.pop %v3062
        %v3494 = vrcp.pop %v3065
        %v3495 = vrcp.pop %v3068
        %v3496 = vrcp.pop %v3071
        %v3497 = vrcp.pop %v3074
        %v3498 = vrcp.pop %v3077
        %v3499 = vrcp.pop %v3080
        %v3500 = vrcp.pop %v3083
        %v3501 = vrcp.pop %v3086
        %v3502 = vrcp.pop %v3089
        %v3503 = vrcp.pop %v3092
        %v3504 = vrcp.pop %v3095
        %v3505 = vrcp.pop %v3098
        %v3506 = vrcp.pop %v3101
        %v3507 = vrcp.pop %v3104
        %v3508 = vrcp.pop %v3107
        %v3509 = vrcp.pop %v3110
        %v3510 = vrcp.pop %v3113
        %v3511 = vrcp.pop %v3116
        %v3512 = vrcp.pop %v3119
        %v3513 = vrcp.pop %v3122
        %v3514 = vrcp.pop %v3125
        %v3515 = vrcp.pop %v3128
        %v3516 = vrcp.pop %v3131
        %v3517 = vmul.f32 %v3327, %v3485
        %v3518 = vmul.f32 %v3332, %v3486
        %v3519 = vmul.f32 %v3337, %v3487
        %v3520 = vmul.f32 %v3342, %v3488
        %v3521 = vmul.f32 %v3347, %v3489
        %v3522 = vmul.f32 %v3352, %v3490
        %v3523 = vmul.f32 %v3357, %v3491
        %v3524 = vmul.f32 %v3362, %v3492
        %v3525 = vmul.f32 %v3367, %v3493
        %v3526 = vmul.f32 %v3372, %v3494
        %v3527 = vmul.f32 %v3377, %v3495
        %v3528 = vmul.f32 %v3382, %v3496
        %v3529 = vmul.f32 %v3387, %v3497
        %v3530 = vmul.f32 %v3392, %v3498
        %v3531 = vmul.f32 %v3397, %v3499
        %v3532 = vmul.f32 %v3402, %v3500
        %v3533 = vmul.f32 %v3407, %v3501
        %v3534 = vmul.f32 %v3412, %v3502
        %v3535 = vmul.f32 %v3417, %v3503
        %v3536 = vmul.f32 %v3422, %v3504
        %v3537 = vmul.f32 %v3427, %v3505
        %v3538 = vmul.f32 %v3432, %v3506
        %v3539 = vmul.f32 %v3437, %v3507
        %v3540 = vmul.f32 %v3442, %v3508
        %v3541 = vmul.f32 %v3447, %v3509
        %v3542 = vmul.f32 %v3452, %v3510
        %v3543 = vmul.f32 %v3457, %v3511
        %v3544 = vmul.f32 %v3462, %v3512
        %v3545 = vmul.f32 %v3467, %v3513
        %v3546 = vmul.f32 %v3472, %v3514
        %v3547 = vmul.f32 %v3477, %v3515
        %v3548 = vmul.f32 %v3482, %v3516
        %3549 = vrot.lane.b32.xlu0 %v792, 64
        %v3550 = vpop.permute.xlu0 %3549
        %3551 = vrot.lane.b32.xlu0 %v793, 64
        %v3552 = vpop.permute.xlu0 %3551
        %3553 = vrot.lane.b32.xlu0 %v794, 64
        %v3554 = vpop.permute.xlu0 %3553
        %3555 = vrot.lane.b32.xlu0 %v795, 64
        %v3556 = vpop.permute.xlu0 %3555
        %3557 = vrot.lane.b32.xlu0 %v796, 64
        %v3558 = vpop.permute.xlu0 %3557
        %3559 = vrot.lane.b32.xlu0 %v797, 64
        %v3560 = vpop.permute.xlu0 %3559
        %3561 = vrot.lane.b32.xlu0 %v798, 64
        %v3562 = vpop.permute.xlu0 %3561
        %3563 = vrot.lane.b32.xlu0 %v799, 64
        %v3564 = vpop.permute.xlu0 %3563
        %3565 = vrot.lane.b32.xlu0 %v800, 64
        %v3566 = vpop.permute.xlu0 %3565
        %3567 = vrot.lane.b32.xlu0 %v801, 64
        %v3568 = vpop.permute.xlu0 %3567
        %3569 = vrot.lane.b32.xlu0 %v802, 64
        %v3570 = vpop.permute.xlu0 %3569
        %3571 = vrot.lane.b32.xlu0 %v803, 64
        %v3572 = vpop.permute.xlu0 %3571
        %3573 = vrot.lane.b32.xlu0 %v804, 64
        %v3574 = vpop.permute.xlu0 %3573
        %3575 = vrot.lane.b32.xlu0 %v805, 64
        %v3576 = vpop.permute.xlu0 %3575
        %3577 = vrot.lane.b32.xlu0 %v806, 64
        %v3578 = vpop.permute.xlu0 %3577
        %3579 = vrot.lane.b32.xlu0 %v807, 64
        %v3580 = vpop.permute.xlu0 %3579
        %3581 = vrot.lane.b32.xlu0 %v808, 64
        %v3582 = vpop.permute.xlu0 %3581
        %3583 = vrot.lane.b32.xlu0 %v809, 64
        %v3584 = vpop.permute.xlu0 %3583
        %3585 = vrot.lane.b32.xlu0 %v810, 64
        %v3586 = vpop.permute.xlu0 %3585
        %3587 = vrot.lane.b32.xlu0 %v811, 64
        %v3588 = vpop.permute.xlu0 %3587
        %3589 = vrot.lane.b32.xlu0 %v812, 64
        %v3590 = vpop.permute.xlu0 %3589
        %3591 = vrot.lane.b32.xlu0 %v813, 64
        %v3592 = vpop.permute.xlu0 %3591
        %3593 = vrot.lane.b32.xlu0 %v814, 64
        %v3594 = vpop.permute.xlu0 %3593
        %3595 = vrot.lane.b32.xlu0 %v815, 64
        %v3596 = vpop.permute.xlu0 %3595
        %3597 = vrot.lane.b32.xlu0 %v816, 64
        %v3598 = vpop.permute.xlu0 %3597
        %3599 = vrot.lane.b32.xlu0 %v817, 64
        %v3600 = vpop.permute.xlu0 %3599
        %3601 = vrot.lane.b32.xlu0 %v818, 64
        %v3602 = vpop.permute.xlu0 %3601
        %3603 = vrot.lane.b32.xlu0 %v819, 64
        %v3604 = vpop.permute.xlu0 %3603
        %3605 = vrot.lane.b32.xlu0 %v820, 64
        %v3606 = vpop.permute.xlu0 %3605
        %3607 = vrot.lane.b32.xlu0 %v821, 64
        %v3608 = vpop.permute.xlu0 %3607
        %3609 = vrot.lane.b32.xlu0 %v822, 64
        %v3610 = vpop.permute.xlu0 %3609
        %3611 = vrot.lane.b32.xlu0 %v823, 64
        %v3612 = vpop.permute.xlu0 %3611
        %v3645 = vadd.f32 %v379, %v3550
        %v3646 = vadd.f32 %v385, %v3552
        %v3647 = vadd.f32 %v391, %v3554
        %v3648 = vadd.f32 %v397, %v3556
        %v3649 = vadd.f32 %v403, %v3558
        %v3650 = vadd.f32 %v409, %v3560
        %v3651 = vadd.f32 %v415, %v3562
        %v3652 = vadd.f32 %v421, %v3564
        %v3653 = vadd.f32 %v427, %v3566
        %v3654 = vadd.f32 %v433, %v3568
        %v3655 = vadd.f32 %v439, %v3570
        %v3656 = vadd.f32 %v445, %v3572
        %v3657 = vadd.f32 %v451, %v3574
        %v3658 = vadd.f32 %v457, %v3576
        %v3659 = vadd.f32 %v463, %v3578
        %v3660 = vadd.f32 %v469, %v3580
        %v3661 = vadd.f32 %v475, %v3582
        %v3662 = vadd.f32 %v481, %v3584
        %v3663 = vadd.f32 %v487, %v3586
        %v3664 = vadd.f32 %v493, %v3588
        %v3665 = vadd.f32 %v499, %v3590
        %v3666 = vadd.f32 %v505, %v3592
        %v3667 = vadd.f32 %v511, %v3594
        %v3668 = vadd.f32 %v517, %v3596
        %v3669 = vadd.f32 %v523, %v3598
        %v3670 = vadd.f32 %v529, %v3600
        %v3671 = vadd.f32 %v535, %v3602
        %v3672 = vadd.f32 %v541, %v3604
        %v3673 = vadd.f32 %v547, %v3606
        %v3674 = vadd.f32 %v553, %v3608
        %v3675 = vadd.f32 %v559, %v3610
        %v3676 = vadd.f32 %v565, %v3612
        %v3677 = vmul.f32 %v3645, 0.17677669
        %v3678 = vmul.f32 %v3646, 0.17677669
        %v3679 = vmul.f32 %v3647, 0.17677669
        %v3680 = vmul.f32 %v3648, 0.17677669
        %v3681 = vmul.f32 %v3649, 0.17677669
        %v3682 = vmul.f32 %v3650, 0.17677669
        %v3683 = vmul.f32 %v3651, 0.17677669
        %v3684 = vmul.f32 %v3652, 0.17677669
        %v3685 = vmul.f32 %v3653, 0.17677669
        %v3686 = vmul.f32 %v3654, 0.17677669
        %v3687 = vmul.f32 %v3655, 0.17677669
        %v3688 = vmul.f32 %v3656, 0.17677669
        %v3689 = vmul.f32 %v3657, 0.17677669
        %v3690 = vmul.f32 %v3658, 0.17677669
        %v3691 = vmul.f32 %v3659, 0.17677669
        %v3692 = vmul.f32 %v3660, 0.17677669
        %v3693 = vmul.f32 %v3661, 0.17677669
        %v3694 = vmul.f32 %v3662, 0.17677669
        %v3695 = vmul.f32 %v3663, 0.17677669
        %v3696 = vmul.f32 %v3664, 0.17677669
        %v3697 = vmul.f32 %v3665, 0.17677669
        %v3698 = vmul.f32 %v3666, 0.17677669
        %v3699 = vmul.f32 %v3667, 0.17677669
        %v3700 = vmul.f32 %v3668, 0.17677669
        %v3701 = vmul.f32 %v3669, 0.17677669
        %v3702 = vmul.f32 %v3670, 0.17677669
        %v3703 = vmul.f32 %v3671, 0.17677669
        %v3704 = vmul.f32 %v3672, 0.17677669
        %v3705 = vmul.f32 %v3673, 0.17677669
        %v3706 = vmul.f32 %v3674, 0.17677669
        %v3707 = vmul.f32 %v3675, 0.17677669
        %v3708 = vmul.f32 %v3676, 0.17677669
        %3709 = vrot.lane.b32.xlu0 %v377, 64
        %v3710 = vpop.permute.xlu0 %3709
        %3711 = vrot.lane.b32.xlu0 %v383, 64
        %v3712 = vpop.permute.xlu0 %3711
        %3713 = vrot.lane.b32.xlu0 %v389, 64
        %v3714 = vpop.permute.xlu0 %3713
        %3715 = vrot.lane.b32.xlu0 %v395, 64
        %v3716 = vpop.permute.xlu0 %3715
        %3717 = vrot.lane.b32.xlu0 %v401, 64
        %v3718 = vpop.permute.xlu0 %3717
        %3719 = vrot.lane.b32.xlu0 %v407, 64
        %v3720 = vpop.permute.xlu0 %3719
        %3721 = vrot.lane.b32.xlu0 %v413, 64
        %v3722 = vpop.permute.xlu0 %3721
        %3723 = vrot.lane.b32.xlu0 %v419, 64
        %v3724 = vpop.permute.xlu0 %3723
        %3725 = vrot.lane.b32.xlu0 %v425, 64
        %v3726 = vpop.permute.xlu0 %3725
        %3727 = vrot.lane.b32.xlu0 %v431, 64
        %v3728 = vpop.permute.xlu0 %3727
        %3729 = vrot.lane.b32.xlu0 %v437, 64
        %v3730 = vpop.permute.xlu0 %3729
        %3731 = vrot.lane.b32.xlu0 %v443, 64
        %v3732 = vpop.permute.xlu0 %3731
        %3733 = vrot.lane.b32.xlu0 %v449, 64
        %v3734 = vpop.permute.xlu0 %3733
        %3735 = vrot.lane.b32.xlu0 %v455, 64
        %v3736 = vpop.permute.xlu0 %3735
        %3737 = vrot.lane.b32.xlu0 %v461, 64
        %v3738 = vpop.permute.xlu0 %3737
        %3739 = vrot.lane.b32.xlu0 %v467, 64
        %v3740 = vpop.permute.xlu0 %3739
        %3741 = vrot.lane.b32.xlu0 %v473, 64
        %v3742 = vpop.permute.xlu0 %3741
        %3743 = vrot.lane.b32.xlu0 %v479, 64
        %v3744 = vpop.permute.xlu0 %3743
        %3745 = vrot.lane.b32.xlu0 %v485, 64
        %v3746 = vpop.permute.xlu0 %3745
        %3747 = vrot.lane.b32.xlu0 %v491, 64
        %v3748 = vpop.permute.xlu0 %3747
        %3749 = vrot.lane.b32.xlu0 %v497, 64
        %v3750 = vpop.permute.xlu0 %3749
        %3751 = vrot.lane.b32.xlu0 %v503, 64
        %v3752 = vpop.permute.xlu0 %3751
        %3753 = vrot.lane.b32.xlu0 %v509, 64
        %v3754 = vpop.permute.xlu0 %3753
        %3755 = vrot.lane.b32.xlu0 %v515, 64
        %v3756 = vpop.permute.xlu0 %3755
        %3757 = vrot.lane.b32.xlu0 %v521, 64
        %v3758 = vpop.permute.xlu0 %3757
        %3759 = vrot.lane.b32.xlu0 %v527, 64
        %v3760 = vpop.permute.xlu0 %3759
        %3761 = vrot.lane.b32.xlu0 %v533, 64
        %v3762 = vpop.permute.xlu0 %3761
        %3763 = vrot.lane.b32.xlu0 %v539, 64
        %v3764 = vpop.permute.xlu0 %3763
        %3765 = vrot.lane.b32.xlu0 %v545, 64
        %v3766 = vpop.permute.xlu0 %3765
        %3767 = vrot.lane.b32.xlu0 %v551, 64
        %v3768 = vpop.permute.xlu0 %3767
        %3769 = vrot.lane.b32.xlu0 %v557, 64
        %v3770 = vpop.permute.xlu0 %3769
        %3771 = vrot.lane.b32.xlu0 %v563, 64
        %v3772 = vpop.permute.xlu0 %3771
        %3805 = vrot.lane.b32.xlu0 %v3677, 64
        %v3806 = vpop.permute.xlu0 %3805
        %3807 = vrot.lane.b32.xlu0 %v3678, 64
        %v3808 = vpop.permute.xlu0 %3807
        %3809 = vrot.lane.b32.xlu0 %v3679, 64
        %v3810 = vpop.permute.xlu0 %3809
        %3811 = vrot.lane.b32.xlu0 %v3680, 64
        %v3812 = vpop.permute.xlu0 %3811
        %3813 = vrot.lane.b32.xlu0 %v3681, 64
        %v3814 = vpop.permute.xlu0 %3813
        %3815 = vrot.lane.b32.xlu0 %v3682, 64
        %v3816 = vpop.permute.xlu0 %3815
        %3817 = vrot.lane.b32.xlu0 %v3683, 64
        %v3818 = vpop.permute.xlu0 %3817
        %3819 = vrot.lane.b32.xlu0 %v3684, 64
        %v3820 = vpop.permute.xlu0 %3819
        %3821 = vrot.lane.b32.xlu0 %v3685, 64
        %v3822 = vpop.permute.xlu0 %3821
        %3823 = vrot.lane.b32.xlu0 %v3686, 64
        %v3824 = vpop.permute.xlu0 %3823
        %3825 = vrot.lane.b32.xlu0 %v3687, 64
        %v3826 = vpop.permute.xlu0 %3825
        %3827 = vrot.lane.b32.xlu0 %v3688, 64
        %v3828 = vpop.permute.xlu0 %3827
        %3829 = vrot.lane.b32.xlu0 %v3689, 64
        %v3830 = vpop.permute.xlu0 %3829
        %3831 = vrot.lane.b32.xlu0 %v3690, 64
        %v3832 = vpop.permute.xlu0 %3831
        %3833 = vrot.lane.b32.xlu0 %v3691, 64
        %v3834 = vpop.permute.xlu0 %3833
        %3835 = vrot.lane.b32.xlu0 %v3692, 64
        %v3836 = vpop.permute.xlu0 %3835
        %3837 = vrot.lane.b32.xlu0 %v3693, 64
        %v3838 = vpop.permute.xlu0 %3837
        %3839 = vrot.lane.b32.xlu0 %v3694, 64
        %v3840 = vpop.permute.xlu0 %3839
        %3841 = vrot.lane.b32.xlu0 %v3695, 64
        %v3842 = vpop.permute.xlu0 %3841
        %3843 = vrot.lane.b32.xlu0 %v3696, 64
        %v3844 = vpop.permute.xlu0 %3843
        %3845 = vrot.lane.b32.xlu0 %v3697, 64
        %v3846 = vpop.permute.xlu0 %3845
        %3847 = vrot.lane.b32.xlu0 %v3698, 64
        %v3848 = vpop.permute.xlu0 %3847
        %3849 = vrot.lane.b32.xlu0 %v3699, 64
        %v3850 = vpop.permute.xlu0 %3849
        %3851 = vrot.lane.b32.xlu0 %v3700, 64
        %v3852 = vpop.permute.xlu0 %3851
        %3853 = vrot.lane.b32.xlu0 %v3701, 64
        %v3854 = vpop.permute.xlu0 %3853
        %3855 = vrot.lane.b32.xlu0 %v3702, 64
        %v3856 = vpop.permute.xlu0 %3855
        %3857 = vrot.lane.b32.xlu0 %v3703, 64
        %v3858 = vpop.permute.xlu0 %3857
        %3859 = vrot.lane.b32.xlu0 %v3704, 64
        %v3860 = vpop.permute.xlu0 %3859
        %3861 = vrot.lane.b32.xlu0 %v3705, 64
        %v3862 = vpop.permute.xlu0 %3861
        %3863 = vrot.lane.b32.xlu0 %v3706, 64
        %v3864 = vpop.permute.xlu0 %3863
        %3865 = vrot.lane.b32.xlu0 %v3707, 64
        %v3866 = vpop.permute.xlu0 %3865
        %3867 = vrot.lane.b32.xlu0 %v3708, 64
        %v3868 = vpop.permute.xlu0 %3867
        %v3869 = vsel %vm888, %v3710, 0
        %v3871 = vsel %vm888, %v3712, 0
        %v3873 = vsel %vm888, %v3714, 0
        %v3875 = vsel %vm888, %v3716, 0
        %v3877 = vsel %vm888, %v3718, 0
        %v3879 = vsel %vm888, %v3720, 0
        %v3881 = vsel %vm888, %v3722, 0
        %v3883 = vsel %vm888, %v3724, 0
        %v3885 = vsel %vm888, %v3726, 0
        %v3887 = vsel %vm888, %v3728, 0
        %v3889 = vsel %vm888, %v3730, 0
        %v3891 = vsel %vm888, %v3732, 0
        %v3893 = vsel %vm888, %v3734, 0
        %v3895 = vsel %vm888, %v3736, 0
        %v3897 = vsel %vm888, %v3738, 0
        %v3899 = vsel %vm888, %v3740, 0
        %v3901 = vsel %vm888, %v3742, 0
        %v3903 = vsel %vm888, %v3744, 0
        %v3905 = vsel %vm888, %v3746, 0
        %v3907 = vsel %vm888, %v3748, 0
        %v3909 = vsel %vm888, %v3750, 0
        %v3911 = vsel %vm888, %v3752, 0
        %v3913 = vsel %vm888, %v3754, 0
        %v3915 = vsel %vm888, %v3756, 0
        %v3917 = vsel %vm888, %v3758, 0
        %v3919 = vsel %vm888, %v3760, 0
        %v3921 = vsel %vm888, %v3762, 0
        %v3923 = vsel %vm888, %v3764, 0
        %v3925 = vsel %vm888, %v3766, 0
        %v3927 = vsel %vm888, %v3768, 0
        %v3929 = vsel %vm888, %v3770, 0
        %v3931 = vsel %vm888, %v3772, 0
        %v3933 = vsel %vm888, %v3806, 0
        %v3935 = vsel %vm888, %v3808, 0
        %v3937 = vsel %vm888, %v3810, 0
        %v3939 = vsel %vm888, %v3812, 0
        %v3941 = vsel %vm888, %v3814, 0
        %v3943 = vsel %vm888, %v3816, 0
        %v3945 = vsel %vm888, %v3818, 0
        %v3947 = vsel %vm888, %v3820, 0
        %v3949 = vsel %vm888, %v3822, 0
        %v3951 = vsel %vm888, %v3824, 0
        %v3953 = vsel %vm888, %v3826, 0
        %v3955 = vsel %vm888, %v3828, 0
        %v3957 = vsel %vm888, %v3830, 0
        %v3959 = vsel %vm888, %v3832, 0
        %v3961 = vsel %vm888, %v3834, 0
        %v3963 = vsel %vm888, %v3836, 0
        %v3965 = vsel %vm888, %v3838, 0
        %v3967 = vsel %vm888, %v3840, 0
        %v3969 = vsel %vm888, %v3842, 0
        %v3971 = vsel %vm888, %v3844, 0
        %v3973 = vsel %vm888, %v3846, 0
        %v3975 = vsel %vm888, %v3848, 0
        %v3977 = vsel %vm888, %v3850, 0
        %v3979 = vsel %vm888, %v3852, 0
        %v3981 = vsel %vm888, %v3854, 0
        %v3983 = vsel %vm888, %v3856, 0
        %v3985 = vsel %vm888, %v3858, 0
        %v3987 = vsel %vm888, %v3860, 0
        %v3989 = vsel %vm888, %v3862, 0
        %v3991 = vsel %vm888, %v3864, 0
        %v3993 = vsel %vm888, %v3866, 0
        %v3995 = vsel %vm888, %v3868, 0
        %3997 = vmatprep.subr.mxu0 0.0
        %3998 = vmatpush1.xpose.msra.mxu0 %v3963
        %3999 = vmatprep.subr.mxu0 0.0
        %4000 = vmatpush1.xpose.msra.mxu0 %v3961
        %4001 = vmatprep.subr.mxu0 0.0
        %4002 = vmatpush1.xpose.msra.mxu0 %v3959
        %4003 = vmatprep.subr.mxu0 0.0
        %4004 = vmatpush1.xpose.msra.mxu0 %v3957
        %4005 = vmatprep.subr.mxu0 0.0
        %4006 = vmatpush1.xpose.msra.mxu0 %v3955
        %4007 = vmatprep.subr.mxu0 0.0
        %4008 = vmatpush1.xpose.msra.mxu0 %v3953
        %4009 = vmatprep.subr.mxu0 0.0
        %4010 = vmatpush1.xpose.msra.mxu0 %v3951
        %4011 = vmatprep.subr.mxu0 0.0
        %4012 = vmatpush1.xpose.msra.mxu0 %v3949
        %4013 = vmatprep.subr.mxu0 0.0
        %4014 = vmatpush1.xpose.msra.mxu0 %v3947
        %4015 = vmatprep.subr.mxu0 0.0
        %4016 = vmatpush1.xpose.msra.mxu0 %v3945
        %4017 = vmatprep.subr.mxu0 0.0
        %4018 = vmatpush1.xpose.msra.mxu0 %v3943
        %4019 = vmatprep.subr.mxu0 0.0
        %4020 = vmatpush1.xpose.msra.mxu0 %v3941
        %4021 = vmatprep.subr.mxu0 0.0
        %4022 = vmatpush1.xpose.msra.mxu0 %v3939
        %4023 = vmatprep.subr.mxu0 0.0
        %4024 = vmatpush1.xpose.msra.mxu0 %v3937
        %4025 = vmatprep.subr.mxu0 0.0
        %4026 = vmatpush1.xpose.msra.mxu0 %v3935
        %4027 = vmatprep.subr.mxu0 0.0
        %4028 = vmatpush1.xpose.msra.mxu0 %v3933
        %4029 = vmatprep.subr.mxu0 0.0
        %4030 = vmatpush2.xpose.msra.mxu0 %v3995
        %4031 = vmatprep.subr.mxu0 0.0
        %4032 = vmatpush2.xpose.msra.mxu0 %v3993
        %4033 = vmatprep.subr.mxu0 0.0
        %4034 = vmatpush2.xpose.msra.mxu0 %v3991
        %4035 = vmatprep.subr.mxu0 0.0
        %4036 = vmatpush2.xpose.msra.mxu0 %v3989
        %4037 = vmatprep.subr.mxu0 0.0
        %4038 = vmatpush2.xpose.msra.mxu0 %v3987
        %4039 = vmatprep.subr.mxu0 0.0
        %4040 = vmatpush2.xpose.msra.mxu0 %v3985
        %4041 = vmatprep.subr.mxu0 0.0
        %4042 = vmatpush2.xpose.msra.mxu0 %v3983
        %4043 = vmatprep.subr.mxu0 0.0
        %4044 = vmatpush2.xpose.msra.mxu0 %v3981
        %4045 = vmatprep.subr.mxu0 0.0
        %4046 = vmatpush2.xpose.msra.mxu0 %v3979
        %4047 = vmatprep.subr.mxu0 0.0
        %4048 = vmatpush2.xpose.msra.mxu0 %v3977
        %4049 = vmatprep.subr.mxu0 0.0
        %4050 = vmatpush2.xpose.msra.mxu0 %v3975
        %4051 = vmatprep.subr.mxu0 0.0
        %4052 = vmatpush2.xpose.msra.mxu0 %v3973
        %4053 = vmatprep.subr.mxu0 0.0
        %4054 = vmatpush2.xpose.msra.mxu0 %v3971
        %4055 = vmatprep.subr.mxu0 0.0
        %4056 = vmatpush2.xpose.msra.mxu0 %v3969
        %4057 = vmatprep.subr.mxu0 0.0
        %4058 = vmatpush2.xpose.msra.mxu0 %v3967
        %4059 = vmatprep.subr.mxu0 0.0
        %4060 = vmatpush2.xpose.msra.mxu0 %v3965
        %4061 = vmatprep.mubr.f32.mxu0 0.0
        %4062 = vmatmul.mubr.f32.gmra.mxu0 %v3869
        %v4063 = vpop.f32.mrf.mxu0
        %v4064 = vadd.f32 0.0, %v4063
        %v4065 = vpop.f32.mrf.mxu0
        %v4066 = vadd.f32 0.0, %v4065
        %4067 = vmatprep.mubr.f32.mxu0 0.0
        %4068 = vmatmul.mubr.f32.gmra.mxu0 %v3871
        %v4069 = vpop.f32.mrf.mxu0
        %v4070 = vadd.f32 0.0, %v4069
        %v4071 = vpop.f32.mrf.mxu0
        %v4072 = vadd.f32 0.0, %v4071
        %4073 = vmatprep.mubr.f32.mxu0 0.0
        %4074 = vmatmul.mubr.f32.gmra.mxu0 %v3873
        %v4075 = vpop.f32.mrf.mxu0
        %v4076 = vadd.f32 0.0, %v4075
        %v4077 = vpop.f32.mrf.mxu0
        %v4078 = vadd.f32 0.0, %v4077
        %4079 = vmatprep.mubr.f32.mxu0 0.0
        %4080 = vmatmul.mubr.f32.gmra.mxu0 %v3875
        %v4081 = vpop.f32.mrf.mxu0
        %v4082 = vadd.f32 0.0, %v4081
        %v4083 = vpop.f32.mrf.mxu0
        %v4084 = vadd.f32 0.0, %v4083
        %4085 = vmatprep.mubr.f32.mxu0 0.0
        %4086 = vmatmul.mubr.f32.gmra.mxu0 %v3877
        %v4087 = vpop.f32.mrf.mxu0
        %v4088 = vadd.f32 0.0, %v4087
        %v4089 = vpop.f32.mrf.mxu0
        %v4090 = vadd.f32 0.0, %v4089
        %4091 = vmatprep.mubr.f32.mxu0 0.0
        %4092 = vmatmul.mubr.f32.gmra.mxu0 %v3879
        %v4093 = vpop.f32.mrf.mxu0
        %v4094 = vadd.f32 0.0, %v4093
        %v4095 = vpop.f32.mrf.mxu0
        %v4096 = vadd.f32 0.0, %v4095
        %4097 = vmatprep.mubr.f32.mxu0 0.0
        %4098 = vmatmul.mubr.f32.gmra.mxu0 %v3881
        %v4099 = vpop.f32.mrf.mxu0
        %v4100 = vadd.f32 0.0, %v4099
        %v4101 = vpop.f32.mrf.mxu0
        %v4102 = vadd.f32 0.0, %v4101
        %4103 = vmatprep.mubr.f32.mxu0 0.0
        %4104 = vmatmul.mubr.f32.gmra.mxu0 %v3883
        %v4105 = vpop.f32.mrf.mxu0
        %v4106 = vadd.f32 0.0, %v4105
        %v4107 = vpop.f32.mrf.mxu0
        %v4108 = vadd.f32 0.0, %v4107
        %4109 = vmatprep.mubr.f32.mxu0 0.0
        %4110 = vmatmul.mubr.f32.gmra.mxu0 %v3885
        %v4111 = vpop.f32.mrf.mxu0
        %v4112 = vadd.f32 0.0, %v4111
        %v4113 = vpop.f32.mrf.mxu0
        %v4114 = vadd.f32 0.0, %v4113
        %4115 = vmatprep.mubr.f32.mxu0 0.0
        %4116 = vmatmul.mubr.f32.gmra.mxu0 %v3887
        %v4117 = vpop.f32.mrf.mxu0
        %v4118 = vadd.f32 0.0, %v4117
        %v4119 = vpop.f32.mrf.mxu0
        %v4120 = vadd.f32 0.0, %v4119
        %4121 = vmatprep.mubr.f32.mxu0 0.0
        %4122 = vmatmul.mubr.f32.gmra.mxu0 %v3889
        %v4123 = vpop.f32.mrf.mxu0
        %v4124 = vadd.f32 0.0, %v4123
        %v4125 = vpop.f32.mrf.mxu0
        %v4126 = vadd.f32 0.0, %v4125
        %4127 = vmatprep.mubr.f32.mxu0 0.0
        %4128 = vmatmul.mubr.f32.gmra.mxu0 %v3891
        %v4129 = vpop.f32.mrf.mxu0
        %v4130 = vadd.f32 0.0, %v4129
        %v4131 = vpop.f32.mrf.mxu0
        %v4132 = vadd.f32 0.0, %v4131
        %4133 = vmatprep.mubr.f32.mxu0 0.0
        %4134 = vmatmul.mubr.f32.gmra.mxu0 %v3893
        %v4135 = vpop.f32.mrf.mxu0
        %v4136 = vadd.f32 0.0, %v4135
        %v4137 = vpop.f32.mrf.mxu0
        %v4138 = vadd.f32 0.0, %v4137
        %4139 = vmatprep.mubr.f32.mxu0 0.0
        %4140 = vmatmul.mubr.f32.gmra.mxu0 %v3895
        %v4141 = vpop.f32.mrf.mxu0
        %v4142 = vadd.f32 0.0, %v4141
        %v4143 = vpop.f32.mrf.mxu0
        %v4144 = vadd.f32 0.0, %v4143
        %4145 = vmatprep.mubr.f32.mxu0 0.0
        %4146 = vmatmul.mubr.f32.gmra.mxu0 %v3897
        %v4147 = vpop.f32.mrf.mxu0
        %v4148 = vadd.f32 0.0, %v4147
        %v4149 = vpop.f32.mrf.mxu0
        %v4150 = vadd.f32 0.0, %v4149
        %4151 = vmatprep.mubr.f32.mxu0 0.0
        %4152 = vmatmul.mubr.f32.gmra.mxu0 %v3899
        %v4153 = vpop.f32.mrf.mxu0
        %v4154 = vadd.f32 0.0, %v4153
        %v4155 = vpop.f32.mrf.mxu0
        %v4156 = vadd.f32 0.0, %v4155
        %4157 = vmatprep.mubr.f32.mxu0 0.0
        %4158 = vmatmul.mubr.f32.gmra.mxu0 %v3901
        %v4159 = vpop.f32.mrf.mxu0
        %v4160 = vadd.f32 0.0, %v4159
        %v4161 = vpop.f32.mrf.mxu0
        %v4162 = vadd.f32 0.0, %v4161
        %4163 = vmatprep.mubr.f32.mxu0 0.0
        %4164 = vmatmul.mubr.f32.gmra.mxu0 %v3903
        %v4165 = vpop.f32.mrf.mxu0
        %v4166 = vadd.f32 0.0, %v4165
        %v4167 = vpop.f32.mrf.mxu0
        %v4168 = vadd.f32 0.0, %v4167
        %4169 = vmatprep.mubr.f32.mxu0 0.0
        %4170 = vmatmul.mubr.f32.gmra.mxu0 %v3905
        %v4171 = vpop.f32.mrf.mxu0
        %v4172 = vadd.f32 0.0, %v4171
        %v4173 = vpop.f32.mrf.mxu0
        %v4174 = vadd.f32 0.0, %v4173
        %4175 = vmatprep.mubr.f32.mxu0 0.0
        %4176 = vmatmul.mubr.f32.gmra.mxu0 %v3907
        %v4177 = vpop.f32.mrf.mxu0
        %v4178 = vadd.f32 0.0, %v4177
        %v4179 = vpop.f32.mrf.mxu0
        %v4180 = vadd.f32 0.0, %v4179
        %4181 = vmatprep.mubr.f32.mxu0 0.0
        %4182 = vmatmul.mubr.f32.gmra.mxu0 %v3909
        %v4183 = vpop.f32.mrf.mxu0
        %v4184 = vadd.f32 0.0, %v4183
        %v4185 = vpop.f32.mrf.mxu0
        %v4186 = vadd.f32 0.0, %v4185
        %4187 = vmatprep.mubr.f32.mxu0 0.0
        %4188 = vmatmul.mubr.f32.gmra.mxu0 %v3911
        %v4189 = vpop.f32.mrf.mxu0
        %v4190 = vadd.f32 0.0, %v4189
        %v4191 = vpop.f32.mrf.mxu0
        %v4192 = vadd.f32 0.0, %v4191
        %4193 = vmatprep.mubr.f32.mxu0 0.0
        %4194 = vmatmul.mubr.f32.gmra.mxu0 %v3913
        %v4195 = vpop.f32.mrf.mxu0
        %v4196 = vadd.f32 0.0, %v4195
        %v4197 = vpop.f32.mrf.mxu0
        %v4198 = vadd.f32 0.0, %v4197
        %4199 = vmatprep.mubr.f32.mxu0 0.0
        %4200 = vmatmul.mubr.f32.gmra.mxu0 %v3915
        %v4201 = vpop.f32.mrf.mxu0
        %v4202 = vadd.f32 0.0, %v4201
        %v4203 = vpop.f32.mrf.mxu0
        %v4204 = vadd.f32 0.0, %v4203
        %4205 = vmatprep.mubr.f32.mxu0 0.0
        %4206 = vmatmul.mubr.f32.gmra.mxu0 %v3917
        %v4207 = vpop.f32.mrf.mxu0
        %v4208 = vadd.f32 0.0, %v4207
        %v4209 = vpop.f32.mrf.mxu0
        %v4210 = vadd.f32 0.0, %v4209
        %4211 = vmatprep.mubr.f32.mxu0 0.0
        %4212 = vmatmul.mubr.f32.gmra.mxu0 %v3919
        %v4213 = vpop.f32.mrf.mxu0
        %v4214 = vadd.f32 0.0, %v4213
        %v4215 = vpop.f32.mrf.mxu0
        %v4216 = vadd.f32 0.0, %v4215
        %4217 = vmatprep.mubr.f32.mxu0 0.0
        %4218 = vmatmul.mubr.f32.gmra.mxu0 %v3921
        %v4219 = vpop.f32.mrf.mxu0
        %v4220 = vadd.f32 0.0, %v4219
        %v4221 = vpop.f32.mrf.mxu0
        %v4222 = vadd.f32 0.0, %v4221
        %4223 = vmatprep.mubr.f32.mxu0 0.0
        %4224 = vmatmul.mubr.f32.gmra.mxu0 %v3923
        %v4225 = vpop.f32.mrf.mxu0
        %v4226 = vadd.f32 0.0, %v4225
        %v4227 = vpop.f32.mrf.mxu0
        %v4228 = vadd.f32 0.0, %v4227
        %4229 = vmatprep.mubr.f32.mxu0 0.0
        %4230 = vmatmul.mubr.f32.gmra.mxu0 %v3925
        %v4231 = vpop.f32.mrf.mxu0
        %v4232 = vadd.f32 0.0, %v4231
        %v4233 = vpop.f32.mrf.mxu0
        %v4234 = vadd.f32 0.0, %v4233
        %4235 = vmatprep.mubr.f32.mxu0 0.0
        %4236 = vmatmul.mubr.f32.gmra.mxu0 %v3927
        %v4237 = vpop.f32.mrf.mxu0
        %v4238 = vadd.f32 0.0, %v4237
        %v4239 = vpop.f32.mrf.mxu0
        %v4240 = vadd.f32 0.0, %v4239
        %4241 = vmatprep.mubr.f32.mxu0 0.0
        %4242 = vmatmul.mubr.f32.gmra.mxu0 %v3929
        %v4243 = vpop.f32.mrf.mxu0
        %v4244 = vadd.f32 0.0, %v4243
        %v4245 = vpop.f32.mrf.mxu0
        %v4246 = vadd.f32 0.0, %v4245
        %4247 = vmatprep.mubr.f32.mxu0 0.0
        %4248 = vmatmul.mubr.f32.gmra.mxu0 %v3931
        %v4249 = vpop.f32.mrf.mxu0
        %v4250 = vadd.f32 0.0, %v4249
        %v4251 = vpop.f32.mrf.mxu0
        %v4252 = vadd.f32 0.0, %v4251
        %4253 = vdwg.mxu0
        %v4254 = vmax.f32 %v4064, %v4066
        %4255 = vmax.xlane.f32.xlu0 %v4254
        %v4256 = vpop.xlane.xlu0 %4255
        %v4257 = vmax.f32 %v4070, %v4072
        %4258 = vmax.xlane.f32.xlu0 %v4257
        %v4259 = vpop.xlane.xlu0 %4258
        %v4260 = vmax.f32 %v4076, %v4078
        %4261 = vmax.xlane.f32.xlu0 %v4260
        %v4262 = vpop.xlane.xlu0 %4261
        %v4263 = vmax.f32 %v4082, %v4084
        %4264 = vmax.xlane.f32.xlu0 %v4263
        %v4265 = vpop.xlane.xlu0 %4264
        %v4266 = vmax.f32 %v4088, %v4090
        %4267 = vmax.xlane.f32.xlu0 %v4266
        %v4268 = vpop.xlane.xlu0 %4267
        %v4269 = vmax.f32 %v4094, %v4096
        %4270 = vmax.xlane.f32.xlu0 %v4269
        %v4271 = vpop.xlane.xlu0 %4270
        %v4272 = vmax.f32 %v4100, %v4102
        %4273 = vmax.xlane.f32.xlu0 %v4272
        %v4274 = vpop.xlane.xlu0 %4273
        %v4275 = vmax.f32 %v4106, %v4108
        %4276 = vmax.xlane.f32.xlu0 %v4275
        %v4277 = vpop.xlane.xlu0 %4276
        %v4278 = vmax.f32 %v4112, %v4114
        %4279 = vmax.xlane.f32.xlu0 %v4278
        %v4280 = vpop.xlane.xlu0 %4279
        %v4281 = vmax.f32 %v4118, %v4120
        %4282 = vmax.xlane.f32.xlu0 %v4281
        %v4283 = vpop.xlane.xlu0 %4282
        %v4284 = vmax.f32 %v4124, %v4126
        %4285 = vmax.xlane.f32.xlu0 %v4284
        %v4286 = vpop.xlane.xlu0 %4285
        %v4287 = vmax.f32 %v4130, %v4132
        %4288 = vmax.xlane.f32.xlu0 %v4287
        %v4289 = vpop.xlane.xlu0 %4288
        %v4290 = vmax.f32 %v4136, %v4138
        %4291 = vmax.xlane.f32.xlu0 %v4290
        %v4292 = vpop.xlane.xlu0 %4291
        %v4293 = vmax.f32 %v4142, %v4144
        %4294 = vmax.xlane.f32.xlu0 %v4293
        %v4295 = vpop.xlane.xlu0 %4294
        %v4296 = vmax.f32 %v4148, %v4150
        %4297 = vmax.xlane.f32.xlu0 %v4296
        %v4298 = vpop.xlane.xlu0 %4297
        %v4299 = vmax.f32 %v4154, %v4156
        %4300 = vmax.xlane.f32.xlu0 %v4299
        %v4301 = vpop.xlane.xlu0 %4300
        %v4302 = vmax.f32 %v4160, %v4162
        %4303 = vmax.xlane.f32.xlu0 %v4302
        %v4304 = vpop.xlane.xlu0 %4303
        %v4305 = vmax.f32 %v4166, %v4168
        %4306 = vmax.xlane.f32.xlu0 %v4305
        %v4307 = vpop.xlane.xlu0 %4306
        %v4308 = vmax.f32 %v4172, %v4174
        %4309 = vmax.xlane.f32.xlu0 %v4308
        %v4310 = vpop.xlane.xlu0 %4309
        %v4311 = vmax.f32 %v4178, %v4180
        %4312 = vmax.xlane.f32.xlu0 %v4311
        %v4313 = vpop.xlane.xlu0 %4312
        %v4314 = vmax.f32 %v4184, %v4186
        %4315 = vmax.xlane.f32.xlu0 %v4314
        %v4316 = vpop.xlane.xlu0 %4315
        %v4317 = vmax.f32 %v4190, %v4192
        %4318 = vmax.xlane.f32.xlu0 %v4317
        %v4319 = vpop.xlane.xlu0 %4318
        %v4320 = vmax.f32 %v4196, %v4198
        %4321 = vmax.xlane.f32.xlu0 %v4320
        %v4322 = vpop.xlane.xlu0 %4321
        %v4323 = vmax.f32 %v4202, %v4204
        %4324 = vmax.xlane.f32.xlu0 %v4323
        %v4325 = vpop.xlane.xlu0 %4324
        %v4326 = vmax.f32 %v4208, %v4210
        %4327 = vmax.xlane.f32.xlu0 %v4326
        %v4328 = vpop.xlane.xlu0 %4327
        %v4329 = vmax.f32 %v4214, %v4216
        %4330 = vmax.xlane.f32.xlu0 %v4329
        %v4331 = vpop.xlane.xlu0 %4330
        %v4332 = vmax.f32 %v4220, %v4222
        %4333 = vmax.xlane.f32.xlu0 %v4332
        %v4334 = vpop.xlane.xlu0 %4333
        %v4335 = vmax.f32 %v4226, %v4228
        %4336 = vmax.xlane.f32.xlu0 %v4335
        %v4337 = vpop.xlane.xlu0 %4336
        %v4338 = vmax.f32 %v4232, %v4234
        %4339 = vmax.xlane.f32.xlu0 %v4338
        %v4340 = vpop.xlane.xlu0 %4339
        %v4341 = vmax.f32 %v4238, %v4240
        %4342 = vmax.xlane.f32.xlu0 %v4341
        %v4343 = vpop.xlane.xlu0 %4342
        %v4344 = vmax.f32 %v4244, %v4246
        %4345 = vmax.xlane.f32.xlu0 %v4344
        %v4346 = vpop.xlane.xlu0 %4345
        %v4347 = vmax.f32 %v4250, %v4252
        %4348 = vmax.xlane.f32.xlu0 %v4347
        %v4349 = vpop.xlane.xlu0 %4348
        %v4350 = vsub.f32 %v4064, %v4256
        %v4351 = vsub.f32 %v4066, %v4256
        %v4352 = vsub.f32 %v4070, %v4259
        %v4353 = vsub.f32 %v4072, %v4259
        %v4354 = vsub.f32 %v4076, %v4262
        %v4355 = vsub.f32 %v4078, %v4262
        %v4356 = vsub.f32 %v4082, %v4265
        %v4357 = vsub.f32 %v4084, %v4265
        %v4358 = vsub.f32 %v4088, %v4268
        %v4359 = vsub.f32 %v4090, %v4268
        %v4360 = vsub.f32 %v4094, %v4271
        %v4361 = vsub.f32 %v4096, %v4271
        %v4362 = vsub.f32 %v4100, %v4274
        %v4363 = vsub.f32 %v4102, %v4274
        %v4364 = vsub.f32 %v4106, %v4277
        %v4365 = vsub.f32 %v4108, %v4277
        %v4366 = vsub.f32 %v4112, %v4280
        %v4367 = vsub.f32 %v4114, %v4280
        %v4368 = vsub.f32 %v4118, %v4283
        %v4369 = vsub.f32 %v4120, %v4283
        %v4370 = vsub.f32 %v4124, %v4286
        %v4371 = vsub.f32 %v4126, %v4286
        %v4372 = vsub.f32 %v4130, %v4289
        %v4373 = vsub.f32 %v4132, %v4289
        %v4374 = vsub.f32 %v4136, %v4292
        %v4375 = vsub.f32 %v4138, %v4292
        %v4376 = vsub.f32 %v4142, %v4295
        %v4377 = vsub.f32 %v4144, %v4295
        %v4378 = vsub.f32 %v4148, %v4298
        %v4379 = vsub.f32 %v4150, %v4298
        %v4380 = vsub.f32 %v4154, %v4301
        %v4381 = vsub.f32 %v4156, %v4301
        %v4382 = vsub.f32 %v4160, %v4304
        %v4383 = vsub.f32 %v4162, %v4304
        %v4384 = vsub.f32 %v4166, %v4307
        %v4385 = vsub.f32 %v4168, %v4307
        %v4386 = vsub.f32 %v4172, %v4310
        %v4387 = vsub.f32 %v4174, %v4310
        %v4388 = vsub.f32 %v4178, %v4313
        %v4389 = vsub.f32 %v4180, %v4313
        %v4390 = vsub.f32 %v4184, %v4316
        %v4391 = vsub.f32 %v4186, %v4316
        %v4392 = vsub.f32 %v4190, %v4319
        %v4393 = vsub.f32 %v4192, %v4319
        %v4394 = vsub.f32 %v4196, %v4322
        %v4395 = vsub.f32 %v4198, %v4322
        %v4396 = vsub.f32 %v4202, %v4325
        %v4397 = vsub.f32 %v4204, %v4325
        %v4398 = vsub.f32 %v4208, %v4328
        %v4399 = vsub.f32 %v4210, %v4328
        %v4400 = vsub.f32 %v4214, %v4331
        %v4401 = vsub.f32 %v4216, %v4331
        %v4402 = vsub.f32 %v4220, %v4334
        %v4403 = vsub.f32 %v4222, %v4334
        %v4404 = vsub.f32 %v4226, %v4337
        %v4405 = vsub.f32 %v4228, %v4337
        %v4406 = vsub.f32 %v4232, %v4340
        %v4407 = vsub.f32 %v4234, %v4340
        %v4408 = vsub.f32 %v4238, %v4343
        %v4409 = vsub.f32 %v4240, %v4343
        %v4410 = vsub.f32 %v4244, %v4346
        %v4411 = vsub.f32 %v4246, %v4346
        %v4412 = vsub.f32 %v4250, %v4349
        %v4413 = vsub.f32 %v4252, %v4349
        %v4414 = vmul.f32 %v4350, 1.442695
        %v4415 = vpow.pop %v4414
        %v4416 = vmul.f32 %v4351, 1.442695
        %v4417 = vpow.pop %v4416
        %v4418 = vmul.f32 %v4352, 1.442695
        %v4419 = vpow.pop %v4418
        %v4420 = vmul.f32 %v4353, 1.442695
        %v4421 = vpow.pop %v4420
        %v4422 = vmul.f32 %v4354, 1.442695
        %v4423 = vpow.pop %v4422
        %v4424 = vmul.f32 %v4355, 1.442695
        %v4425 = vpow.pop %v4424
        %v4426 = vmul.f32 %v4356, 1.442695
        %v4427 = vpow.pop %v4426
        %v4428 = vmul.f32 %v4357, 1.442695
        %v4429 = vpow.pop %v4428
        %v4430 = vmul.f32 %v4358, 1.442695
        %v4431 = vpow.pop %v4430
        %v4432 = vmul.f32 %v4359, 1.442695
        %v4433 = vpow.pop %v4432
        %v4434 = vmul.f32 %v4360, 1.442695
        %v4435 = vpow.pop %v4434
        %v4436 = vmul.f32 %v4361, 1.442695
        %v4437 = vpow.pop %v4436
        %v4438 = vmul.f32 %v4362, 1.442695
        %v4439 = vpow.pop %v4438
        %v4440 = vmul.f32 %v4363, 1.442695
        %v4441 = vpow.pop %v4440
        %v4442 = vmul.f32 %v4364, 1.442695
        %v4443 = vpow.pop %v4442
        %v4444 = vmul.f32 %v4365, 1.442695
        %v4445 = vpow.pop %v4444
        %v4446 = vmul.f32 %v4366, 1.442695
        %v4447 = vpow.pop %v4446
        %v4448 = vmul.f32 %v4367, 1.442695
        %v4449 = vpow.pop %v4448
        %v4450 = vmul.f32 %v4368, 1.442695
        %v4451 = vpow.pop %v4450
        %v4452 = vmul.f32 %v4369, 1.442695
        %v4453 = vpow.pop %v4452
        %v4454 = vmul.f32 %v4370, 1.442695
        %v4455 = vpow.pop %v4454
        %v4456 = vmul.f32 %v4371, 1.442695
        %v4457 = vpow.pop %v4456
        %v4458 = vmul.f32 %v4372, 1.442695
        %v4459 = vpow.pop %v4458
        %v4460 = vmul.f32 %v4373, 1.442695
        %v4461 = vpow.pop %v4460
        %v4462 = vmul.f32 %v4374, 1.442695
        %v4463 = vpow.pop %v4462
        %v4464 = vmul.f32 %v4375, 1.442695
        %v4465 = vpow.pop %v4464
        %v4466 = vmul.f32 %v4376, 1.442695
        %v4467 = vpow.pop %v4466
        %v4468 = vmul.f32 %v4377, 1.442695
        %v4469 = vpow.pop %v4468
        %v4470 = vmul.f32 %v4378, 1.442695
        %v4471 = vpow.pop %v4470
        %v4472 = vmul.f32 %v4379, 1.442695
        %v4473 = vpow.pop %v4472
        %v4474 = vmul.f32 %v4380, 1.442695
        %v4475 = vpow.pop %v4474
        %v4476 = vmul.f32 %v4381, 1.442695
        %v4477 = vpow.pop %v4476
        %v4478 = vmul.f32 %v4382, 1.442695
        %v4479 = vpow.pop %v4478
        %v4480 = vmul.f32 %v4383, 1.442695
        %v4481 = vpow.pop %v4480
        %v4482 = vmul.f32 %v4384, 1.442695
        %v4483 = vpow.pop %v4482
        %v4484 = vmul.f32 %v4385, 1.442695
        %v4485 = vpow.pop %v4484
        %v4486 = vmul.f32 %v4386, 1.442695
        %v4487 = vpow.pop %v4486
        %v4488 = vmul.f32 %v4387, 1.442695
        %v4489 = vpow.pop %v4488
        %v4490 = vmul.f32 %v4388, 1.442695
        %v4491 = vpow.pop %v4490
        %v4492 = vmul.f32 %v4389, 1.442695
        %v4493 = vpow.pop %v4492
        %v4494 = vmul.f32 %v4390, 1.442695
        %v4495 = vpow.pop %v4494
        %v4496 = vmul.f32 %v4391, 1.442695
        %v4497 = vpow.pop %v4496
        %v4498 = vmul.f32 %v4392, 1.442695
        %v4499 = vpow.pop %v4498
        %v4500 = vmul.f32 %v4393, 1.442695
        %v4501 = vpow.pop %v4500
        %v4502 = vmul.f32 %v4394, 1.442695
        %v4503 = vpow.pop %v4502
        %v4504 = vmul.f32 %v4395, 1.442695
        %v4505 = vpow.pop %v4504
        %v4506 = vmul.f32 %v4396, 1.442695
        %v4507 = vpow.pop %v4506
        %v4508 = vmul.f32 %v4397, 1.442695
        %v4509 = vpow.pop %v4508
        %v4510 = vmul.f32 %v4398, 1.442695
        %v4511 = vpow.pop %v4510
        %v4512 = vmul.f32 %v4399, 1.442695
        %v4513 = vpow.pop %v4512
        %v4514 = vmul.f32 %v4400, 1.442695
        %v4515 = vpow.pop %v4514
        %v4516 = vmul.f32 %v4401, 1.442695
        %v4517 = vpow.pop %v4516
        %v4518 = vmul.f32 %v4402, 1.442695
        %v4519 = vpow.pop %v4518
        %v4520 = vmul.f32 %v4403, 1.442695
        %v4521 = vpow.pop %v4520
        %v4522 = vmul.f32 %v4404, 1.442695
        %v4523 = vpow.pop %v4522
        %v4524 = vmul.f32 %v4405, 1.442695
        %v4525 = vpow.pop %v4524
        %v4526 = vmul.f32 %v4406, 1.442695
        %v4527 = vpow.pop %v4526
        %v4528 = vmul.f32 %v4407, 1.442695
        %v4529 = vpow.pop %v4528
        %v4530 = vmul.f32 %v4408, 1.442695
        %v4531 = vpow.pop %v4530
        %v4532 = vmul.f32 %v4409, 1.442695
        %v4533 = vpow.pop %v4532
        %v4534 = vmul.f32 %v4410, 1.442695
        %v4535 = vpow.pop %v4534
        %v4536 = vmul.f32 %v4411, 1.442695
        %v4537 = vpow.pop %v4536
        %v4538 = vmul.f32 %v4412, 1.442695
        %v4539 = vpow.pop %v4538
        %v4540 = vmul.f32 %v4413, 1.442695
        %v4541 = vpow.pop %v4540
        %v4542 = vadd.f32 %v4415, %v4417
        %4543 = vadd.xlane.f32.xlu0 %v4542
        %v4544 = vpop.xlane.xlu0 %4543
        %v4545 = vadd.f32 %v4419, %v4421
        %4546 = vadd.xlane.f32.xlu0 %v4545
        %v4547 = vpop.xlane.xlu0 %4546
        %v4548 = vadd.f32 %v4423, %v4425
        %4549 = vadd.xlane.f32.xlu0 %v4548
        %v4550 = vpop.xlane.xlu0 %4549
        %v4551 = vadd.f32 %v4427, %v4429
        %4552 = vadd.xlane.f32.xlu0 %v4551
        %v4553 = vpop.xlane.xlu0 %4552
        %v4554 = vadd.f32 %v4431, %v4433
        %4555 = vadd.xlane.f32.xlu0 %v4554
        %v4556 = vpop.xlane.xlu0 %4555
        %v4557 = vadd.f32 %v4435, %v4437
        %4558 = vadd.xlane.f32.xlu0 %v4557
        %v4559 = vpop.xlane.xlu0 %4558
        %v4560 = vadd.f32 %v4439, %v4441
        %4561 = vadd.xlane.f32.xlu0 %v4560
        %v4562 = vpop.xlane.xlu0 %4561
        %v4563 = vadd.f32 %v4443, %v4445
        %4564 = vadd.xlane.f32.xlu0 %v4563
        %v4565 = vpop.xlane.xlu0 %4564
        %v4566 = vadd.f32 %v4447, %v4449
        %4567 = vadd.xlane.f32.xlu0 %v4566
        %v4568 = vpop.xlane.xlu0 %4567
        %v4569 = vadd.f32 %v4451, %v4453
        %4570 = vadd.xlane.f32.xlu0 %v4569
        %v4571 = vpop.xlane.xlu0 %4570
        %v4572 = vadd.f32 %v4455, %v4457
        %4573 = vadd.xlane.f32.xlu0 %v4572
        %v4574 = vpop.xlane.xlu0 %4573
        %v4575 = vadd.f32 %v4459, %v4461
        %4576 = vadd.xlane.f32.xlu0 %v4575
        %v4577 = vpop.xlane.xlu0 %4576
        %v4578 = vadd.f32 %v4463, %v4465
        %4579 = vadd.xlane.f32.xlu0 %v4578
        %v4580 = vpop.xlane.xlu0 %4579
        %v4581 = vadd.f32 %v4467, %v4469
        %4582 = vadd.xlane.f32.xlu0 %v4581
        %v4583 = vpop.xlane.xlu0 %4582
        %v4584 = vadd.f32 %v4471, %v4473
        %4585 = vadd.xlane.f32.xlu0 %v4584
        %v4586 = vpop.xlane.xlu0 %4585
        %v4587 = vadd.f32 %v4475, %v4477
        %4588 = vadd.xlane.f32.xlu0 %v4587
        %v4589 = vpop.xlane.xlu0 %4588
        %v4590 = vadd.f32 %v4479, %v4481
        %4591 = vadd.xlane.f32.xlu0 %v4590
        %v4592 = vpop.xlane.xlu0 %4591
        %v4593 = vadd.f32 %v4483, %v4485
        %4594 = vadd.xlane.f32.xlu0 %v4593
        %v4595 = vpop.xlane.xlu0 %4594
        %v4596 = vadd.f32 %v4487, %v4489
        %4597 = vadd.xlane.f32.xlu0 %v4596
        %v4598 = vpop.xlane.xlu0 %4597
        %v4599 = vadd.f32 %v4491, %v4493
        %4600 = vadd.xlane.f32.xlu0 %v4599
        %v4601 = vpop.xlane.xlu0 %4600
        %v4602 = vadd.f32 %v4495, %v4497
        %4603 = vadd.xlane.f32.xlu0 %v4602
        %v4604 = vpop.xlane.xlu0 %4603
        %v4605 = vadd.f32 %v4499, %v4501
        %4606 = vadd.xlane.f32.xlu0 %v4605
        %v4607 = vpop.xlane.xlu0 %4606
        %v4608 = vadd.f32 %v4503, %v4505
        %4609 = vadd.xlane.f32.xlu0 %v4608
        %v4610 = vpop.xlane.xlu0 %4609
        %v4611 = vadd.f32 %v4507, %v4509
        %4612 = vadd.xlane.f32.xlu0 %v4611
        %v4613 = vpop.xlane.xlu0 %4612
        %v4614 = vadd.f32 %v4511, %v4513
        %4615 = vadd.xlane.f32.xlu0 %v4614
        %v4616 = vpop.xlane.xlu0 %4615
        %v4617 = vadd.f32 %v4515, %v4517
        %4618 = vadd.xlane.f32.xlu0 %v4617
        %v4619 = vpop.xlane.xlu0 %4618
        %v4620 = vadd.f32 %v4519, %v4521
        %4621 = vadd.xlane.f32.xlu0 %v4620
        %v4622 = vpop.xlane.xlu0 %4621
        %v4623 = vadd.f32 %v4523, %v4525
        %4624 = vadd.xlane.f32.xlu0 %v4623
        %v4625 = vpop.xlane.xlu0 %4624
        %v4626 = vadd.f32 %v4527, %v4529
        %4627 = vadd.xlane.f32.xlu0 %v4626
        %v4628 = vpop.xlane.xlu0 %4627
        %v4629 = vadd.f32 %v4531, %v4533
        %4630 = vadd.xlane.f32.xlu0 %v4629
        %v4631 = vpop.xlane.xlu0 %4630
        %v4632 = vadd.f32 %v4535, %v4537
        %4633 = vadd.xlane.f32.xlu0 %v4632
        %v4634 = vpop.xlane.xlu0 %4633
        %v4635 = vadd.f32 %v4539, %v4541
        %4636 = vadd.xlane.f32.xlu0 %v4635
        %v4637 = vpop.xlane.xlu0 %4636
        %4638 = vrot.lane.b32.xlu0 %v634, 64
        %v4639 = vpop.permute.xlu0 %4638
        %4640 = vrot.lane.b32.xlu0 %v639, 64
        %v4641 = vpop.permute.xlu0 %4640
        %4642 = vrot.lane.b32.xlu0 %v644, 64
        %v4643 = vpop.permute.xlu0 %4642
        %4644 = vrot.lane.b32.xlu0 %v649, 64
        %v4645 = vpop.permute.xlu0 %4644
        %4646 = vrot.lane.b32.xlu0 %v654, 64
        %v4647 = vpop.permute.xlu0 %4646
        %4648 = vrot.lane.b32.xlu0 %v659, 64
        %v4649 = vpop.permute.xlu0 %4648
        %4650 = vrot.lane.b32.xlu0 %v664, 64
        %v4651 = vpop.permute.xlu0 %4650
        %4652 = vrot.lane.b32.xlu0 %v669, 64
        %v4653 = vpop.permute.xlu0 %4652
        %4654 = vrot.lane.b32.xlu0 %v674, 64
        %v4655 = vpop.permute.xlu0 %4654
        %4656 = vrot.lane.b32.xlu0 %v679, 64
        %v4657 = vpop.permute.xlu0 %4656
        %4658 = vrot.lane.b32.xlu0 %v684, 64
        %v4659 = vpop.permute.xlu0 %4658
        %4660 = vrot.lane.b32.xlu0 %v689, 64
        %v4661 = vpop.permute.xlu0 %4660
        %4662 = vrot.lane.b32.xlu0 %v694, 64
        %v4663 = vpop.permute.xlu0 %4662
        %4664 = vrot.lane.b32.xlu0 %v699, 64
        %v4665 = vpop.permute.xlu0 %4664
        %4666 = vrot.lane.b32.xlu0 %v704, 64
        %v4667 = vpop.permute.xlu0 %4666
        %4668 = vrot.lane.b32.xlu0 %v709, 64
        %v4669 = vpop.permute.xlu0 %4668
        %4670 = vrot.lane.b32.xlu0 %v714, 64
        %v4671 = vpop.permute.xlu0 %4670
        %4672 = vrot.lane.b32.xlu0 %v719, 64
        %v4673 = vpop.permute.xlu0 %4672
        %4674 = vrot.lane.b32.xlu0 %v724, 64
        %v4675 = vpop.permute.xlu0 %4674
        %4676 = vrot.lane.b32.xlu0 %v729, 64
        %v4677 = vpop.permute.xlu0 %4676
        %4678 = vrot.lane.b32.xlu0 %v734, 64
        %v4679 = vpop.permute.xlu0 %4678
        %4680 = vrot.lane.b32.xlu0 %v739, 64
        %v4681 = vpop.permute.xlu0 %4680
        %4682 = vrot.lane.b32.xlu0 %v744, 64
        %v4683 = vpop.permute.xlu0 %4682
        %4684 = vrot.lane.b32.xlu0 %v749, 64
        %v4685 = vpop.permute.xlu0 %4684
        %4686 = vrot.lane.b32.xlu0 %v754, 64
        %v4687 = vpop.permute.xlu0 %4686
        %4688 = vrot.lane.b32.xlu0 %v759, 64
        %v4689 = vpop.permute.xlu0 %4688
        %4690 = vrot.lane.b32.xlu0 %v764, 64
        %v4691 = vpop.permute.xlu0 %4690
        %4692 = vrot.lane.b32.xlu0 %v769, 64
        %v4693 = vpop.permute.xlu0 %4692
        %4694 = vrot.lane.b32.xlu0 %v774, 64
        %v4695 = vpop.permute.xlu0 %4694
        %4696 = vrot.lane.b32.xlu0 %v779, 64
        %v4697 = vpop.permute.xlu0 %4696
        %4698 = vrot.lane.b32.xlu0 %v784, 64
        %v4699 = vpop.permute.xlu0 %4698
        %4700 = vrot.lane.b32.xlu0 %v789, 64
        %v4701 = vpop.permute.xlu0 %4700
        %4734 = vmatprep.subr.mxu0 0.0
        %4735 = vmatpush1.msra.mxu0 %v4669
        %4736 = vmatprep.subr.mxu0 0.0
        %4737 = vmatpush1.msra.mxu0 %v4667
        %4738 = vmatprep.subr.mxu0 0.0
        %4739 = vmatpush1.msra.mxu0 %v4665
        %4740 = vmatprep.subr.mxu0 0.0
        %4741 = vmatpush1.msra.mxu0 %v4663
        %4742 = vmatprep.subr.mxu0 0.0
        %4743 = vmatpush1.msra.mxu0 %v4661
        %4744 = vmatprep.subr.mxu0 0.0
        %4745 = vmatpush1.msra.mxu0 %v4659
        %4746 = vmatprep.subr.mxu0 0.0
        %4747 = vmatpush1.msra.mxu0 %v4657
        %4748 = vmatprep.subr.mxu0 0.0
        %4749 = vmatpush1.msra.mxu0 %v4655
        %4750 = vmatprep.subr.mxu0 0.0
        %4751 = vmatpush1.msra.mxu0 %v4653
        %4752 = vmatprep.subr.mxu0 0.0
        %4753 = vmatpush1.msra.mxu0 %v4651
        %4754 = vmatprep.subr.mxu0 0.0
        %4755 = vmatpush1.msra.mxu0 %v4649
        %4756 = vmatprep.subr.mxu0 0.0
        %4757 = vmatpush1.msra.mxu0 %v4647
        %4758 = vmatprep.subr.mxu0 0.0
        %4759 = vmatpush1.msra.mxu0 %v4645
        %4760 = vmatprep.subr.mxu0 0.0
        %4761 = vmatpush1.msra.mxu0 %v4643
        %4762 = vmatprep.subr.mxu0 0.0
        %4763 = vmatpush1.msra.mxu0 %v4641
        %4764 = vmatprep.subr.mxu0 0.0
        %4765 = vmatpush1.msra.mxu0 %v4639
        %4766 = vmatprep.subr.mxu0 0.0
        %4767 = vmatpush2.msra.mxu0 %v4701
        %4768 = vmatprep.subr.mxu0 0.0
        %4769 = vmatpush2.msra.mxu0 %v4699
        %4770 = vmatprep.subr.mxu0 0.0
        %4771 = vmatpush2.msra.mxu0 %v4697
        %4772 = vmatprep.subr.mxu0 0.0
        %4773 = vmatpush2.msra.mxu0 %v4695
        %4774 = vmatprep.subr.mxu0 0.0
        %4775 = vmatpush2.msra.mxu0 %v4693
        %4776 = vmatprep.subr.mxu0 0.0
        %4777 = vmatpush2.msra.mxu0 %v4691
        %4778 = vmatprep.subr.mxu0 0.0
        %4779 = vmatpush2.msra.mxu0 %v4689
        %4780 = vmatprep.subr.mxu0 0.0
        %4781 = vmatpush2.msra.mxu0 %v4687
        %4782 = vmatprep.subr.mxu0 0.0
        %4783 = vmatpush2.msra.mxu0 %v4685
        %4784 = vmatprep.subr.mxu0 0.0
        %4785 = vmatpush2.msra.mxu0 %v4683
        %4786 = vmatprep.subr.mxu0 0.0
        %4787 = vmatpush2.msra.mxu0 %v4681
        %4788 = vmatprep.subr.mxu0 0.0
        %4789 = vmatpush2.msra.mxu0 %v4679
        %4790 = vmatprep.subr.mxu0 0.0
        %4791 = vmatpush2.msra.mxu0 %v4677
        %4792 = vmatprep.subr.mxu0 0.0
        %4793 = vmatpush2.msra.mxu0 %v4675
        %4794 = vmatprep.subr.mxu0 0.0
        %4795 = vmatpush2.msra.mxu0 %v4673
        %4796 = vmatprep.subr.mxu0 0.0
        %4797 = vmatpush2.msra.mxu0 %v4671
        %4798 = vmatprep.mubr.f32.mxu0 %v4417
        %4799 = vmatmul.mubr.f32.gmra.mxu0 %v4415
        %v4800 = vpop.f32.mrf.mxu0
        %v4801 = vadd.f32 0.0, %v4800
        %v4802 = vpop.f32.mrf.mxu0
        %4803 = vmatprep.mubr.f32.mxu0 %v4421
        %4804 = vmatmul.mubr.f32.gmra.mxu0 %v4419
        %v4805 = vpop.f32.mrf.mxu0
        %v4806 = vadd.f32 0.0, %v4805
        %v4807 = vpop.f32.mrf.mxu0
        %4808 = vmatprep.mubr.f32.mxu0 %v4425
        %4809 = vmatmul.mubr.f32.gmra.mxu0 %v4423
        %v4810 = vpop.f32.mrf.mxu0
        %v4811 = vadd.f32 0.0, %v4810
        %v4812 = vpop.f32.mrf.mxu0
        %4813 = vmatprep.mubr.f32.mxu0 %v4429
        %4814 = vmatmul.mubr.f32.gmra.mxu0 %v4427
        %v4815 = vpop.f32.mrf.mxu0
        %v4816 = vadd.f32 0.0, %v4815
        %v4817 = vpop.f32.mrf.mxu0
        %4818 = vmatprep.mubr.f32.mxu0 %v4433
        %4819 = vmatmul.mubr.f32.gmra.mxu0 %v4431
        %v4820 = vpop.f32.mrf.mxu0
        %v4821 = vadd.f32 0.0, %v4820
        %v4822 = vpop.f32.mrf.mxu0
        %4823 = vmatprep.mubr.f32.mxu0 %v4437
        %4824 = vmatmul.mubr.f32.gmra.mxu0 %v4435
        %v4825 = vpop.f32.mrf.mxu0
        %v4826 = vadd.f32 0.0, %v4825
        %v4827 = vpop.f32.mrf.mxu0
        %4828 = vmatprep.mubr.f32.mxu0 %v4441
        %4829 = vmatmul.mubr.f32.gmra.mxu0 %v4439
        %v4830 = vpop.f32.mrf.mxu0
        %v4831 = vadd.f32 0.0, %v4830
        %v4832 = vpop.f32.mrf.mxu0
        %4833 = vmatprep.mubr.f32.mxu0 %v4445
        %4834 = vmatmul.mubr.f32.gmra.mxu0 %v4443
        %v4835 = vpop.f32.mrf.mxu0
        %v4836 = vadd.f32 0.0, %v4835
        %v4837 = vpop.f32.mrf.mxu0
        %4838 = vmatprep.mubr.f32.mxu0 %v4449
        %4839 = vmatmul.mubr.f32.gmra.mxu0 %v4447
        %v4840 = vpop.f32.mrf.mxu0
        %v4841 = vadd.f32 0.0, %v4840
        %v4842 = vpop.f32.mrf.mxu0
        %4843 = vmatprep.mubr.f32.mxu0 %v4453
        %4844 = vmatmul.mubr.f32.gmra.mxu0 %v4451
        %v4845 = vpop.f32.mrf.mxu0
        %v4846 = vadd.f32 0.0, %v4845
        %v4847 = vpop.f32.mrf.mxu0
        %4848 = vmatprep.mubr.f32.mxu0 %v4457
        %4849 = vmatmul.mubr.f32.gmra.mxu0 %v4455
        %v4850 = vpop.f32.mrf.mxu0
        %v4851 = vadd.f32 0.0, %v4850
        %v4852 = vpop.f32.mrf.mxu0
        %4853 = vmatprep.mubr.f32.mxu0 %v4461
        %4854 = vmatmul.mubr.f32.gmra.mxu0 %v4459
        %v4855 = vpop.f32.mrf.mxu0
        %v4856 = vadd.f32 0.0, %v4855
        %v4857 = vpop.f32.mrf.mxu0
        %4858 = vmatprep.mubr.f32.mxu0 %v4465
        %4859 = vmatmul.mubr.f32.gmra.mxu0 %v4463
        %v4860 = vpop.f32.mrf.mxu0
        %v4861 = vadd.f32 0.0, %v4860
        %v4862 = vpop.f32.mrf.mxu0
        %4863 = vmatprep.mubr.f32.mxu0 %v4469
        %4864 = vmatmul.mubr.f32.gmra.mxu0 %v4467
        %v4865 = vpop.f32.mrf.mxu0
        %v4866 = vadd.f32 0.0, %v4865
        %v4867 = vpop.f32.mrf.mxu0
        %4868 = vmatprep.mubr.f32.mxu0 %v4473
        %4869 = vmatmul.mubr.f32.gmra.mxu0 %v4471
        %v4870 = vpop.f32.mrf.mxu0
        %v4871 = vadd.f32 0.0, %v4870
        %v4872 = vpop.f32.mrf.mxu0
        %4873 = vmatprep.mubr.f32.mxu0 %v4477
        %4874 = vmatmul.mubr.f32.gmra.mxu0 %v4475
        %v4875 = vpop.f32.mrf.mxu0
        %v4876 = vadd.f32 0.0, %v4875
        %v4877 = vpop.f32.mrf.mxu0
        %4878 = vmatprep.mubr.f32.mxu0 %v4481
        %4879 = vmatmul.mubr.f32.gmra.mxu0 %v4479
        %v4880 = vpop.f32.mrf.mxu0
        %v4881 = vadd.f32 0.0, %v4880
        %v4882 = vpop.f32.mrf.mxu0
        %4883 = vmatprep.mubr.f32.mxu0 %v4485
        %4884 = vmatmul.mubr.f32.gmra.mxu0 %v4483
        %v4885 = vpop.f32.mrf.mxu0
        %v4886 = vadd.f32 0.0, %v4885
        %v4887 = vpop.f32.mrf.mxu0
        %4888 = vmatprep.mubr.f32.mxu0 %v4489
        %4889 = vmatmul.mubr.f32.gmra.mxu0 %v4487
        %v4890 = vpop.f32.mrf.mxu0
        %v4891 = vadd.f32 0.0, %v4890
        %v4892 = vpop.f32.mrf.mxu0
        %4893 = vmatprep.mubr.f32.mxu0 %v4493
        %4894 = vmatmul.mubr.f32.gmra.mxu0 %v4491
        %v4895 = vpop.f32.mrf.mxu0
        %v4896 = vadd.f32 0.0, %v4895
        %v4897 = vpop.f32.mrf.mxu0
        %4898 = vmatprep.mubr.f32.mxu0 %v4497
        %4899 = vmatmul.mubr.f32.gmra.mxu0 %v4495
        %v4900 = vpop.f32.mrf.mxu0
        %v4901 = vadd.f32 0.0, %v4900
        %v4902 = vpop.f32.mrf.mxu0
        %4903 = vmatprep.mubr.f32.mxu0 %v4501
        %4904 = vmatmul.mubr.f32.gmra.mxu0 %v4499
        %v4905 = vpop.f32.mrf.mxu0
        %v4906 = vadd.f32 0.0, %v4905
        %v4907 = vpop.f32.mrf.mxu0
        %4908 = vmatprep.mubr.f32.mxu0 %v4505
        %4909 = vmatmul.mubr.f32.gmra.mxu0 %v4503
        %v4910 = vpop.f32.mrf.mxu0
        %v4911 = vadd.f32 0.0, %v4910
        %v4912 = vpop.f32.mrf.mxu0
        %4913 = vmatprep.mubr.f32.mxu0 %v4509
        %4914 = vmatmul.mubr.f32.gmra.mxu0 %v4507
        %v4915 = vpop.f32.mrf.mxu0
        %v4916 = vadd.f32 0.0, %v4915
        %v4917 = vpop.f32.mrf.mxu0
        %4918 = vmatprep.mubr.f32.mxu0 %v4513
        %4919 = vmatmul.mubr.f32.gmra.mxu0 %v4511
        %v4920 = vpop.f32.mrf.mxu0
        %v4921 = vadd.f32 0.0, %v4920
        %v4922 = vpop.f32.mrf.mxu0
        %4923 = vmatprep.mubr.f32.mxu0 %v4517
        %4924 = vmatmul.mubr.f32.gmra.mxu0 %v4515
        %v4925 = vpop.f32.mrf.mxu0
        %v4926 = vadd.f32 0.0, %v4925
        %v4927 = vpop.f32.mrf.mxu0
        %4928 = vmatprep.mubr.f32.mxu0 %v4521
        %4929 = vmatmul.mubr.f32.gmra.mxu0 %v4519
        %v4930 = vpop.f32.mrf.mxu0
        %v4931 = vadd.f32 0.0, %v4930
        %v4932 = vpop.f32.mrf.mxu0
        %4933 = vmatprep.mubr.f32.mxu0 %v4525
        %4934 = vmatmul.mubr.f32.gmra.mxu0 %v4523
        %v4935 = vpop.f32.mrf.mxu0
        %v4936 = vadd.f32 0.0, %v4935
        %v4937 = vpop.f32.mrf.mxu0
        %4938 = vmatprep.mubr.f32.mxu0 %v4529
        %4939 = vmatmul.mubr.f32.gmra.mxu0 %v4527
        %v4940 = vpop.f32.mrf.mxu0
        %v4941 = vadd.f32 0.0, %v4940
        %v4942 = vpop.f32.mrf.mxu0
        %4943 = vmatprep.mubr.f32.mxu0 %v4533
        %4944 = vmatmul.mubr.f32.gmra.mxu0 %v4531
        %v4945 = vpop.f32.mrf.mxu0
        %v4946 = vadd.f32 0.0, %v4945
        %v4947 = vpop.f32.mrf.mxu0
        %4948 = vmatprep.mubr.f32.mxu0 %v4537
        %4949 = vmatmul.mubr.f32.gmra.mxu0 %v4535
        %v4950 = vpop.f32.mrf.mxu0
        %v4951 = vadd.f32 0.0, %v4950
        %v4952 = vpop.f32.mrf.mxu0
        %4953 = vmatprep.mubr.f32.mxu0 %v4541
        %4954 = vmatmul.mubr.f32.gmra.mxu0 %v4539
        %v4955 = vpop.f32.mrf.mxu0
        %v4956 = vadd.f32 0.0, %v4955
        %v4957 = vpop.f32.mrf.mxu0
        %4958 = vdwg.mxu0
        %v4959 = vrcp.pop %v4544
        %v4960 = vrcp.pop %v4547
        %v4961 = vrcp.pop %v4550
        %v4962 = vrcp.pop %v4553
        %v4963 = vrcp.pop %v4556
        %v4964 = vrcp.pop %v4559
        %v4965 = vrcp.pop %v4562
        %v4966 = vrcp.pop %v4565
        %v4967 = vrcp.pop %v4568
        %v4968 = vrcp.pop %v4571
        %v4969 = vrcp.pop %v4574
        %v4970 = vrcp.pop %v4577
        %v4971 = vrcp.pop %v4580
        %v4972 = vrcp.pop %v4583
        %v4973 = vrcp.pop %v4586
        %v4974 = vrcp.pop %v4589
        %v4975 = vrcp.pop %v4592
        %v4976 = vrcp.pop %v4595
        %v4977 = vrcp.pop %v4598
        %v4978 = vrcp.pop %v4601
        %v4979 = vrcp.pop %v4604
        %v4980 = vrcp.pop %v4607
        %v4981 = vrcp.pop %v4610
        %v4982 = vrcp.pop %v4613
        %v4983 = vrcp.pop %v4616
        %v4984 = vrcp.pop %v4619
        %v4985 = vrcp.pop %v4622
        %v4986 = vrcp.pop %v4625
        %v4987 = vrcp.pop %v4628
        %v4988 = vrcp.pop %v4631
        %v4989 = vrcp.pop %v4634
        %v4990 = vrcp.pop %v4637
        %v4991 = vmul.f32 %v4801, %v4959
        %v4992 = vmul.f32 %v4806, %v4960
        %v4993 = vmul.f32 %v4811, %v4961
        %v4994 = vmul.f32 %v4816, %v4962
        %v4995 = vmul.f32 %v4821, %v4963
        %v4996 = vmul.f32 %v4826, %v4964
        %v4997 = vmul.f32 %v4831, %v4965
        %v4998 = vmul.f32 %v4836, %v4966
        %v4999 = vmul.f32 %v4841, %v4967
        %v5000 = vmul.f32 %v4846, %v4968
        %v5001 = vmul.f32 %v4851, %v4969
        %v5002 = vmul.f32 %v4856, %v4970
        %v5003 = vmul.f32 %v4861, %v4971
        %v5004 = vmul.f32 %v4866, %v4972
        %v5005 = vmul.f32 %v4871, %v4973
        %v5006 = vmul.f32 %v4876, %v4974
        %v5007 = vmul.f32 %v4881, %v4975
        %v5008 = vmul.f32 %v4886, %v4976
        %v5009 = vmul.f32 %v4891, %v4977
        %v5010 = vmul.f32 %v4896, %v4978
        %v5011 = vmul.f32 %v4901, %v4979
        %v5012 = vmul.f32 %v4906, %v4980
        %v5013 = vmul.f32 %v4911, %v4981
        %v5014 = vmul.f32 %v4916, %v4982
        %v5015 = vmul.f32 %v4921, %v4983
        %v5016 = vmul.f32 %v4926, %v4984
        %v5017 = vmul.f32 %v4931, %v4985
        %v5018 = vmul.f32 %v4936, %v4986
        %v5019 = vmul.f32 %v4941, %v4987
        %v5020 = vmul.f32 %v4946, %v4988
        %v5021 = vmul.f32 %v4951, %v4989
        %v5022 = vmul.f32 %v4956, %v4990
        %5023 = vrot.lane.b32.xlu0 %v792, 96
        %v5024 = vpop.permute.xlu0 %5023
        %5025 = vrot.lane.b32.xlu0 %v793, 96
        %v5026 = vpop.permute.xlu0 %5025
        %5027 = vrot.lane.b32.xlu0 %v794, 96
        %v5028 = vpop.permute.xlu0 %5027
        %5029 = vrot.lane.b32.xlu0 %v795, 96
        %v5030 = vpop.permute.xlu0 %5029
        %5031 = vrot.lane.b32.xlu0 %v796, 96
        %v5032 = vpop.permute.xlu0 %5031
        %5033 = vrot.lane.b32.xlu0 %v797, 96
        %v5034 = vpop.permute.xlu0 %5033
        %5035 = vrot.lane.b32.xlu0 %v798, 96
        %v5036 = vpop.permute.xlu0 %5035
        %5037 = vrot.lane.b32.xlu0 %v799, 96
        %v5038 = vpop.permute.xlu0 %5037
        %5039 = vrot.lane.b32.xlu0 %v800, 96
        %v5040 = vpop.permute.xlu0 %5039
        %5041 = vrot.lane.b32.xlu0 %v801, 96
        %v5042 = vpop.permute.xlu0 %5041
        %5043 = vrot.lane.b32.xlu0 %v802, 96
        %v5044 = vpop.permute.xlu0 %5043
        %5045 = vrot.lane.b32.xlu0 %v803, 96
        %v5046 = vpop.permute.xlu0 %5045
        %5047 = vrot.lane.b32.xlu0 %v804, 96
        %v5048 = vpop.permute.xlu0 %5047
        %5049 = vrot.lane.b32.xlu0 %v805, 96
        %v5050 = vpop.permute.xlu0 %5049
        %5051 = vrot.lane.b32.xlu0 %v806, 96
        %v5052 = vpop.permute.xlu0 %5051
        %5053 = vrot.lane.b32.xlu0 %v807, 96
        %v5054 = vpop.permute.xlu0 %5053
        %5055 = vrot.lane.b32.xlu0 %v808, 96
        %v5056 = vpop.permute.xlu0 %5055
        %5057 = vrot.lane.b32.xlu0 %v809, 96
        %v5058 = vpop.permute.xlu0 %5057
        %5059 = vrot.lane.b32.xlu0 %v810, 96
        %v5060 = vpop.permute.xlu0 %5059
        %5061 = vrot.lane.b32.xlu0 %v811, 96
        %v5062 = vpop.permute.xlu0 %5061
        %5063 = vrot.lane.b32.xlu0 %v812, 96
        %v5064 = vpop.permute.xlu0 %5063
        %5065 = vrot.lane.b32.xlu0 %v813, 96
        %v5066 = vpop.permute.xlu0 %5065
        %5067 = vrot.lane.b32.xlu0 %v814, 96
        %v5068 = vpop.permute.xlu0 %5067
        %5069 = vrot.lane.b32.xlu0 %v815, 96
        %v5070 = vpop.permute.xlu0 %5069
        %5071 = vrot.lane.b32.xlu0 %v816, 96
        %v5072 = vpop.permute.xlu0 %5071
        %5073 = vrot.lane.b32.xlu0 %v817, 96
        %v5074 = vpop.permute.xlu0 %5073
        %5075 = vrot.lane.b32.xlu0 %v818, 96
        %v5076 = vpop.permute.xlu0 %5075
        %5077 = vrot.lane.b32.xlu0 %v819, 96
        %v5078 = vpop.permute.xlu0 %5077
        %5079 = vrot.lane.b32.xlu0 %v820, 96
        %v5080 = vpop.permute.xlu0 %5079
        %5081 = vrot.lane.b32.xlu0 %v821, 96
        %v5082 = vpop.permute.xlu0 %5081
        %5083 = vrot.lane.b32.xlu0 %v822, 96
        %v5084 = vpop.permute.xlu0 %5083
        %5085 = vrot.lane.b32.xlu0 %v823, 96
        %v5086 = vpop.permute.xlu0 %5085
        %v5119 = vadd.f32 %v379, %v5024
        %v5120 = vadd.f32 %v385, %v5026
        %v5121 = vadd.f32 %v391, %v5028
        %v5122 = vadd.f32 %v397, %v5030
        %v5123 = vadd.f32 %v403, %v5032
        %v5124 = vadd.f32 %v409, %v5034
        %v5125 = vadd.f32 %v415, %v5036
        %v5126 = vadd.f32 %v421, %v5038
        %v5127 = vadd.f32 %v427, %v5040
        %v5128 = vadd.f32 %v433, %v5042
        %v5129 = vadd.f32 %v439, %v5044
        %v5130 = vadd.f32 %v445, %v5046
        %v5131 = vadd.f32 %v451, %v5048
        %v5132 = vadd.f32 %v457, %v5050
        %v5133 = vadd.f32 %v463, %v5052
        %v5134 = vadd.f32 %v469, %v5054
        %v5135 = vadd.f32 %v475, %v5056
        %v5136 = vadd.f32 %v481, %v5058
        %v5137 = vadd.f32 %v487, %v5060
        %v5138 = vadd.f32 %v493, %v5062
        %v5139 = vadd.f32 %v499, %v5064
        %v5140 = vadd.f32 %v505, %v5066
        %v5141 = vadd.f32 %v511, %v5068
        %v5142 = vadd.f32 %v517, %v5070
        %v5143 = vadd.f32 %v523, %v5072
        %v5144 = vadd.f32 %v529, %v5074
        %v5145 = vadd.f32 %v535, %v5076
        %v5146 = vadd.f32 %v541, %v5078
        %v5147 = vadd.f32 %v547, %v5080
        %v5148 = vadd.f32 %v553, %v5082
        %v5149 = vadd.f32 %v559, %v5084
        %v5150 = vadd.f32 %v565, %v5086
        %v5151 = vmul.f32 %v5119, 0.17677669
        %v5152 = vmul.f32 %v5120, 0.17677669
        %v5153 = vmul.f32 %v5121, 0.17677669
        %v5154 = vmul.f32 %v5122, 0.17677669
        %v5155 = vmul.f32 %v5123, 0.17677669
        %v5156 = vmul.f32 %v5124, 0.17677669
        %v5157 = vmul.f32 %v5125, 0.17677669
        %v5158 = vmul.f32 %v5126, 0.17677669
        %v5159 = vmul.f32 %v5127, 0.17677669
        %v5160 = vmul.f32 %v5128, 0.17677669
        %v5161 = vmul.f32 %v5129, 0.17677669
        %v5162 = vmul.f32 %v5130, 0.17677669
        %v5163 = vmul.f32 %v5131, 0.17677669
        %v5164 = vmul.f32 %v5132, 0.17677669
        %v5165 = vmul.f32 %v5133, 0.17677669
        %v5166 = vmul.f32 %v5134, 0.17677669
        %v5167 = vmul.f32 %v5135, 0.17677669
        %v5168 = vmul.f32 %v5136, 0.17677669
        %v5169 = vmul.f32 %v5137, 0.17677669
        %v5170 = vmul.f32 %v5138, 0.17677669
        %v5171 = vmul.f32 %v5139, 0.17677669
        %v5172 = vmul.f32 %v5140, 0.17677669
        %v5173 = vmul.f32 %v5141, 0.17677669
        %v5174 = vmul.f32 %v5142, 0.17677669
        %v5175 = vmul.f32 %v5143, 0.17677669
        %v5176 = vmul.f32 %v5144, 0.17677669
        %v5177 = vmul.f32 %v5145, 0.17677669
        %v5178 = vmul.f32 %v5146, 0.17677669
        %v5179 = vmul.f32 %v5147, 0.17677669
        %v5180 = vmul.f32 %v5148, 0.17677669
        %v5181 = vmul.f32 %v5149, 0.17677669
        %v5182 = vmul.f32 %v5150, 0.17677669
        %5183 = vrot.lane.b32.xlu0 %v377, 32
        %v5184 = vpop.permute.xlu0 %5183
        %5185 = vrot.lane.b32.xlu0 %v383, 32
        %v5186 = vpop.permute.xlu0 %5185
        %5187 = vrot.lane.b32.xlu0 %v389, 32
        %v5188 = vpop.permute.xlu0 %5187
        %5189 = vrot.lane.b32.xlu0 %v395, 32
        %v5190 = vpop.permute.xlu0 %5189
        %5191 = vrot.lane.b32.xlu0 %v401, 32
        %v5192 = vpop.permute.xlu0 %5191
        %5193 = vrot.lane.b32.xlu0 %v407, 32
        %v5194 = vpop.permute.xlu0 %5193
        %5195 = vrot.lane.b32.xlu0 %v413, 32
        %v5196 = vpop.permute.xlu0 %5195
        %5197 = vrot.lane.b32.xlu0 %v419, 32
        %v5198 = vpop.permute.xlu0 %5197
        %5199 = vrot.lane.b32.xlu0 %v425, 32
        %v5200 = vpop.permute.xlu0 %5199
        %5201 = vrot.lane.b32.xlu0 %v431, 32
        %v5202 = vpop.permute.xlu0 %5201
        %5203 = vrot.lane.b32.xlu0 %v437, 32
        %v5204 = vpop.permute.xlu0 %5203
        %5205 = vrot.lane.b32.xlu0 %v443, 32
        %v5206 = vpop.permute.xlu0 %5205
        %5207 = vrot.lane.b32.xlu0 %v449, 32
        %v5208 = vpop.permute.xlu0 %5207
        %5209 = vrot.lane.b32.xlu0 %v455, 32
        %v5210 = vpop.permute.xlu0 %5209
        %5211 = vrot.lane.b32.xlu0 %v461, 32
        %v5212 = vpop.permute.xlu0 %5211
        %5213 = vrot.lane.b32.xlu0 %v467, 32
        %v5214 = vpop.permute.xlu0 %5213
        %5215 = vrot.lane.b32.xlu0 %v473, 32
        %v5216 = vpop.permute.xlu0 %5215
        %5217 = vrot.lane.b32.xlu0 %v479, 32
        %v5218 = vpop.permute.xlu0 %5217
        %5219 = vrot.lane.b32.xlu0 %v485, 32
        %v5220 = vpop.permute.xlu0 %5219
        %5221 = vrot.lane.b32.xlu0 %v491, 32
        %v5222 = vpop.permute.xlu0 %5221
        %5223 = vrot.lane.b32.xlu0 %v497, 32
        %v5224 = vpop.permute.xlu0 %5223
        %5225 = vrot.lane.b32.xlu0 %v503, 32
        %v5226 = vpop.permute.xlu0 %5225
        %5227 = vrot.lane.b32.xlu0 %v509, 32
        %v5228 = vpop.permute.xlu0 %5227
        %5229 = vrot.lane.b32.xlu0 %v515, 32
        %v5230 = vpop.permute.xlu0 %5229
        %5231 = vrot.lane.b32.xlu0 %v521, 32
        %v5232 = vpop.permute.xlu0 %5231
        %5233 = vrot.lane.b32.xlu0 %v527, 32
        %v5234 = vpop.permute.xlu0 %5233
        %5235 = vrot.lane.b32.xlu0 %v533, 32
        %v5236 = vpop.permute.xlu0 %5235
        %5237 = vrot.lane.b32.xlu0 %v539, 32
        %v5238 = vpop.permute.xlu0 %5237
        %5239 = vrot.lane.b32.xlu0 %v545, 32
        %v5240 = vpop.permute.xlu0 %5239
        %5241 = vrot.lane.b32.xlu0 %v551, 32
        %v5242 = vpop.permute.xlu0 %5241
        %5243 = vrot.lane.b32.xlu0 %v557, 32
        %v5244 = vpop.permute.xlu0 %5243
        %5245 = vrot.lane.b32.xlu0 %v563, 32
        %v5246 = vpop.permute.xlu0 %5245
        %5279 = vrot.lane.b32.xlu0 %v5151, 32
        %v5280 = vpop.permute.xlu0 %5279
        %5281 = vrot.lane.b32.xlu0 %v5152, 32
        %v5282 = vpop.permute.xlu0 %5281
        %5283 = vrot.lane.b32.xlu0 %v5153, 32
        %v5284 = vpop.permute.xlu0 %5283
        %5285 = vrot.lane.b32.xlu0 %v5154, 32
        %v5286 = vpop.permute.xlu0 %5285
        %5287 = vrot.lane.b32.xlu0 %v5155, 32
        %v5288 = vpop.permute.xlu0 %5287
        %5289 = vrot.lane.b32.xlu0 %v5156, 32
        %v5290 = vpop.permute.xlu0 %5289
        %5291 = vrot.lane.b32.xlu0 %v5157, 32
        %v5292 = vpop.permute.xlu0 %5291
        %5293 = vrot.lane.b32.xlu0 %v5158, 32
        %v5294 = vpop.permute.xlu0 %5293
        %5295 = vrot.lane.b32.xlu0 %v5159, 32
        %v5296 = vpop.permute.xlu0 %5295
        %5297 = vrot.lane.b32.xlu0 %v5160, 32
        %v5298 = vpop.permute.xlu0 %5297
        %5299 = vrot.lane.b32.xlu0 %v5161, 32
        %v5300 = vpop.permute.xlu0 %5299
        %5301 = vrot.lane.b32.xlu0 %v5162, 32
        %v5302 = vpop.permute.xlu0 %5301
        %5303 = vrot.lane.b32.xlu0 %v5163, 32
        %v5304 = vpop.permute.xlu0 %5303
        %5305 = vrot.lane.b32.xlu0 %v5164, 32
        %v5306 = vpop.permute.xlu0 %5305
        %5307 = vrot.lane.b32.xlu0 %v5165, 32
        %v5308 = vpop.permute.xlu0 %5307
        %5309 = vrot.lane.b32.xlu0 %v5166, 32
        %v5310 = vpop.permute.xlu0 %5309
        %5311 = vrot.lane.b32.xlu0 %v5167, 32
        %v5312 = vpop.permute.xlu0 %5311
        %5313 = vrot.lane.b32.xlu0 %v5168, 32
        %v5314 = vpop.permute.xlu0 %5313
        %5315 = vrot.lane.b32.xlu0 %v5169, 32
        %v5316 = vpop.permute.xlu0 %5315
        %5317 = vrot.lane.b32.xlu0 %v5170, 32
        %v5318 = vpop.permute.xlu0 %5317
        %5319 = vrot.lane.b32.xlu0 %v5171, 32
        %v5320 = vpop.permute.xlu0 %5319
        %5321 = vrot.lane.b32.xlu0 %v5172, 32
        %v5322 = vpop.permute.xlu0 %5321
        %5323 = vrot.lane.b32.xlu0 %v5173, 32
        %v5324 = vpop.permute.xlu0 %5323
        %5325 = vrot.lane.b32.xlu0 %v5174, 32
        %v5326 = vpop.permute.xlu0 %5325
        %5327 = vrot.lane.b32.xlu0 %v5175, 32
        %v5328 = vpop.permute.xlu0 %5327
        %5329 = vrot.lane.b32.xlu0 %v5176, 32
        %v5330 = vpop.permute.xlu0 %5329
        %5331 = vrot.lane.b32.xlu0 %v5177, 32
        %v5332 = vpop.permute.xlu0 %5331
        %5333 = vrot.lane.b32.xlu0 %v5178, 32
        %v5334 = vpop.permute.xlu0 %5333
        %5335 = vrot.lane.b32.xlu0 %v5179, 32
        %v5336 = vpop.permute.xlu0 %5335
        %5337 = vrot.lane.b32.xlu0 %v5180, 32
        %v5338 = vpop.permute.xlu0 %5337
        %5339 = vrot.lane.b32.xlu0 %v5181, 32
        %v5340 = vpop.permute.xlu0 %5339
        %5341 = vrot.lane.b32.xlu0 %v5182, 32
        %v5342 = vpop.permute.xlu0 %5341
        %v5343 = vsel %vm888, %v5184, 0
        %v5345 = vsel %vm888, %v5186, 0
        %v5347 = vsel %vm888, %v5188, 0
        %v5349 = vsel %vm888, %v5190, 0
        %v5351 = vsel %vm888, %v5192, 0
        %v5353 = vsel %vm888, %v5194, 0
        %v5355 = vsel %vm888, %v5196, 0
        %v5357 = vsel %vm888, %v5198, 0
        %v5359 = vsel %vm888, %v5200, 0
        %v5361 = vsel %vm888, %v5202, 0
        %v5363 = vsel %vm888, %v5204, 0
        %v5365 = vsel %vm888, %v5206, 0
        %v5367 = vsel %vm888, %v5208, 0
        %v5369 = vsel %vm888, %v5210, 0
        %v5371 = vsel %vm888, %v5212, 0
        %v5373 = vsel %vm888, %v5214, 0
        %v5375 = vsel %vm888, %v5216, 0
        %v5377 = vsel %vm888, %v5218, 0
        %v5379 = vsel %vm888, %v5220, 0
        %v5381 = vsel %vm888, %v5222, 0
        %v5383 = vsel %vm888, %v5224, 0
        %v5385 = vsel %vm888, %v5226, 0
        %v5387 = vsel %vm888, %v5228, 0
        %v5389 = vsel %vm888, %v5230, 0
        %v5391 = vsel %vm888, %v5232, 0
        %v5393 = vsel %vm888, %v5234, 0
        %v5395 = vsel %vm888, %v5236, 0
        %v5397 = vsel %vm888, %v5238, 0
        %v5399 = vsel %vm888, %v5240, 0
        %v5401 = vsel %vm888, %v5242, 0
        %v5403 = vsel %vm888, %v5244, 0
        %v5405 = vsel %vm888, %v5246, 0
        %v5407 = vsel %vm888, %v5280, 0
        %v5409 = vsel %vm888, %v5282, 0
        %v5411 = vsel %vm888, %v5284, 0
        %v5413 = vsel %vm888, %v5286, 0
        %v5415 = vsel %vm888, %v5288, 0
        %v5417 = vsel %vm888, %v5290, 0
        %v5419 = vsel %vm888, %v5292, 0
        %v5421 = vsel %vm888, %v5294, 0
        %v5423 = vsel %vm888, %v5296, 0
        %v5425 = vsel %vm888, %v5298, 0
        %v5427 = vsel %vm888, %v5300, 0
        %v5429 = vsel %vm888, %v5302, 0
        %v5431 = vsel %vm888, %v5304, 0
        %v5433 = vsel %vm888, %v5306, 0
        %v5435 = vsel %vm888, %v5308, 0
        %v5437 = vsel %vm888, %v5310, 0
        %v5439 = vsel %vm888, %v5312, 0
        %v5441 = vsel %vm888, %v5314, 0
        %v5443 = vsel %vm888, %v5316, 0
        %v5445 = vsel %vm888, %v5318, 0
        %v5447 = vsel %vm888, %v5320, 0
        %v5449 = vsel %vm888, %v5322, 0
        %v5451 = vsel %vm888, %v5324, 0
        %v5453 = vsel %vm888, %v5326, 0
        %v5455 = vsel %vm888, %v5328, 0
        %v5457 = vsel %vm888, %v5330, 0
        %v5459 = vsel %vm888, %v5332, 0
        %v5461 = vsel %vm888, %v5334, 0
        %v5463 = vsel %vm888, %v5336, 0
        %v5465 = vsel %vm888, %v5338, 0
        %v5467 = vsel %vm888, %v5340, 0
        %v5469 = vsel %vm888, %v5342, 0
        %5471 = vmatprep.subr.mxu0 0.0
        %5472 = vmatpush1.xpose.msra.mxu0 %v5437
        %5473 = vmatprep.subr.mxu0 0.0
        %5474 = vmatpush1.xpose.msra.mxu0 %v5435
        %5475 = vmatprep.subr.mxu0 0.0
        %5476 = vmatpush1.xpose.msra.mxu0 %v5433
        %5477 = vmatprep.subr.mxu0 0.0
        %5478 = vmatpush1.xpose.msra.mxu0 %v5431
        %5479 = vmatprep.subr.mxu0 0.0
        %5480 = vmatpush1.xpose.msra.mxu0 %v5429
        %5481 = vmatprep.subr.mxu0 0.0
        %5482 = vmatpush1.xpose.msra.mxu0 %v5427
        %5483 = vmatprep.subr.mxu0 0.0
        %5484 = vmatpush1.xpose.msra.mxu0 %v5425
        %5485 = vmatprep.subr.mxu0 0.0
        %5486 = vmatpush1.xpose.msra.mxu0 %v5423
        %5487 = vmatprep.subr.mxu0 0.0
        %5488 = vmatpush1.xpose.msra.mxu0 %v5421
        %5489 = vmatprep.subr.mxu0 0.0
        %5490 = vmatpush1.xpose.msra.mxu0 %v5419
        %5491 = vmatprep.subr.mxu0 0.0
        %5492 = vmatpush1.xpose.msra.mxu0 %v5417
        %5493 = vmatprep.subr.mxu0 0.0
        %5494 = vmatpush1.xpose.msra.mxu0 %v5415
        %5495 = vmatprep.subr.mxu0 0.0
        %5496 = vmatpush1.xpose.msra.mxu0 %v5413
        %5497 = vmatprep.subr.mxu0 0.0
        %5498 = vmatpush1.xpose.msra.mxu0 %v5411
        %5499 = vmatprep.subr.mxu0 0.0
        %5500 = vmatpush1.xpose.msra.mxu0 %v5409
        %5501 = vmatprep.subr.mxu0 0.0
        %5502 = vmatpush1.xpose.msra.mxu0 %v5407
        %5503 = vmatprep.subr.mxu0 0.0
        %5504 = vmatpush2.xpose.msra.mxu0 %v5469
        %5505 = vmatprep.subr.mxu0 0.0
        %5506 = vmatpush2.xpose.msra.mxu0 %v5467
        %5507 = vmatprep.subr.mxu0 0.0
        %5508 = vmatpush2.xpose.msra.mxu0 %v5465
        %5509 = vmatprep.subr.mxu0 0.0
        %5510 = vmatpush2.xpose.msra.mxu0 %v5463
        %5511 = vmatprep.subr.mxu0 0.0
        %5512 = vmatpush2.xpose.msra.mxu0 %v5461
        %5513 = vmatprep.subr.mxu0 0.0
        %5514 = vmatpush2.xpose.msra.mxu0 %v5459
        %5515 = vmatprep.subr.mxu0 0.0
        %5516 = vmatpush2.xpose.msra.mxu0 %v5457
        %5517 = vmatprep.subr.mxu0 0.0
        %5518 = vmatpush2.xpose.msra.mxu0 %v5455
        %5519 = vmatprep.subr.mxu0 0.0
        %5520 = vmatpush2.xpose.msra.mxu0 %v5453
        %5521 = vmatprep.subr.mxu0 0.0
        %5522 = vmatpush2.xpose.msra.mxu0 %v5451
        %5523 = vmatprep.subr.mxu0 0.0
        %5524 = vmatpush2.xpose.msra.mxu0 %v5449
        %5525 = vmatprep.subr.mxu0 0.0
        %5526 = vmatpush2.xpose.msra.mxu0 %v5447
        %5527 = vmatprep.subr.mxu0 0.0
        %5528 = vmatpush2.xpose.msra.mxu0 %v5445
        %5529 = vmatprep.subr.mxu0 0.0
        %5530 = vmatpush2.xpose.msra.mxu0 %v5443
        %5531 = vmatprep.subr.mxu0 0.0
        %5532 = vmatpush2.xpose.msra.mxu0 %v5441
        %5533 = vmatprep.subr.mxu0 0.0
        %5534 = vmatpush2.xpose.msra.mxu0 %v5439
        %5535 = vmatprep.mubr.f32.mxu0 0.0
        %5536 = vmatmul.mubr.f32.gmra.mxu0 %v5343
        %v5537 = vpop.f32.mrf.mxu0
        %v5538 = vadd.f32 0.0, %v5537
        %v5539 = vpop.f32.mrf.mxu0
        %v5540 = vadd.f32 0.0, %v5539
        %5541 = vmatprep.mubr.f32.mxu0 0.0
        %5542 = vmatmul.mubr.f32.gmra.mxu0 %v5345
        %v5543 = vpop.f32.mrf.mxu0
        %v5544 = vadd.f32 0.0, %v5543
        %v5545 = vpop.f32.mrf.mxu0
        %v5546 = vadd.f32 0.0, %v5545
        %5547 = vmatprep.mubr.f32.mxu0 0.0
        %5548 = vmatmul.mubr.f32.gmra.mxu0 %v5347
        %v5549 = vpop.f32.mrf.mxu0
        %v5550 = vadd.f32 0.0, %v5549
        %v5551 = vpop.f32.mrf.mxu0
        %v5552 = vadd.f32 0.0, %v5551
        %5553 = vmatprep.mubr.f32.mxu0 0.0
        %5554 = vmatmul.mubr.f32.gmra.mxu0 %v5349
        %v5555 = vpop.f32.mrf.mxu0
        %v5556 = vadd.f32 0.0, %v5555
        %v5557 = vpop.f32.mrf.mxu0
        %v5558 = vadd.f32 0.0, %v5557
        %5559 = vmatprep.mubr.f32.mxu0 0.0
        %5560 = vmatmul.mubr.f32.gmra.mxu0 %v5351
        %v5561 = vpop.f32.mrf.mxu0
        %v5562 = vadd.f32 0.0, %v5561
        %v5563 = vpop.f32.mrf.mxu0
        %v5564 = vadd.f32 0.0, %v5563
        %5565 = vmatprep.mubr.f32.mxu0 0.0
        %5566 = vmatmul.mubr.f32.gmra.mxu0 %v5353
        %v5567 = vpop.f32.mrf.mxu0
        %v5568 = vadd.f32 0.0, %v5567
        %v5569 = vpop.f32.mrf.mxu0
        %v5570 = vadd.f32 0.0, %v5569
        %5571 = vmatprep.mubr.f32.mxu0 0.0
        %5572 = vmatmul.mubr.f32.gmra.mxu0 %v5355
        %v5573 = vpop.f32.mrf.mxu0
        %v5574 = vadd.f32 0.0, %v5573
        %v5575 = vpop.f32.mrf.mxu0
        %v5576 = vadd.f32 0.0, %v5575
        %5577 = vmatprep.mubr.f32.mxu0 0.0
        %5578 = vmatmul.mubr.f32.gmra.mxu0 %v5357
        %v5579 = vpop.f32.mrf.mxu0
        %v5580 = vadd.f32 0.0, %v5579
        %v5581 = vpop.f32.mrf.mxu0
        %v5582 = vadd.f32 0.0, %v5581
        %5583 = vmatprep.mubr.f32.mxu0 0.0
        %5584 = vmatmul.mubr.f32.gmra.mxu0 %v5359
        %v5585 = vpop.f32.mrf.mxu0
        %v5586 = vadd.f32 0.0, %v5585
        %v5587 = vpop.f32.mrf.mxu0
        %v5588 = vadd.f32 0.0, %v5587
        %5589 = vmatprep.mubr.f32.mxu0 0.0
        %5590 = vmatmul.mubr.f32.gmra.mxu0 %v5361
        %v5591 = vpop.f32.mrf.mxu0
        %v5592 = vadd.f32 0.0, %v5591
        %v5593 = vpop.f32.mrf.mxu0
        %v5594 = vadd.f32 0.0, %v5593
        %5595 = vmatprep.mubr.f32.mxu0 0.0
        %5596 = vmatmul.mubr.f32.gmra.mxu0 %v5363
        %v5597 = vpop.f32.mrf.mxu0
        %v5598 = vadd.f32 0.0, %v5597
        %v5599 = vpop.f32.mrf.mxu0
        %v5600 = vadd.f32 0.0, %v5599
        %5601 = vmatprep.mubr.f32.mxu0 0.0
        %5602 = vmatmul.mubr.f32.gmra.mxu0 %v5365
        %v5603 = vpop.f32.mrf.mxu0
        %v5604 = vadd.f32 0.0, %v5603
        %v5605 = vpop.f32.mrf.mxu0
        %v5606 = vadd.f32 0.0, %v5605
        %5607 = vmatprep.mubr.f32.mxu0 0.0
        %5608 = vmatmul.mubr.f32.gmra.mxu0 %v5367
        %v5609 = vpop.f32.mrf.mxu0
        %v5610 = vadd.f32 0.0, %v5609
        %v5611 = vpop.f32.mrf.mxu0
        %v5612 = vadd.f32 0.0, %v5611
        %5613 = vmatprep.mubr.f32.mxu0 0.0
        %5614 = vmatmul.mubr.f32.gmra.mxu0 %v5369
        %v5615 = vpop.f32.mrf.mxu0
        %v5616 = vadd.f32 0.0, %v5615
        %v5617 = vpop.f32.mrf.mxu0
        %v5618 = vadd.f32 0.0, %v5617
        %5619 = vmatprep.mubr.f32.mxu0 0.0
        %5620 = vmatmul.mubr.f32.gmra.mxu0 %v5371
        %v5621 = vpop.f32.mrf.mxu0
        %v5622 = vadd.f32 0.0, %v5621
        %v5623 = vpop.f32.mrf.mxu0
        %v5624 = vadd.f32 0.0, %v5623
        %5625 = vmatprep.mubr.f32.mxu0 0.0
        %5626 = vmatmul.mubr.f32.gmra.mxu0 %v5373
        %v5627 = vpop.f32.mrf.mxu0
        %v5628 = vadd.f32 0.0, %v5627
        %v5629 = vpop.f32.mrf.mxu0
        %v5630 = vadd.f32 0.0, %v5629
        %5631 = vmatprep.mubr.f32.mxu0 0.0
        %5632 = vmatmul.mubr.f32.gmra.mxu0 %v5375
        %v5633 = vpop.f32.mrf.mxu0
        %v5634 = vadd.f32 0.0, %v5633
        %v5635 = vpop.f32.mrf.mxu0
        %v5636 = vadd.f32 0.0, %v5635
        %5637 = vmatprep.mubr.f32.mxu0 0.0
        %5638 = vmatmul.mubr.f32.gmra.mxu0 %v5377
        %v5639 = vpop.f32.mrf.mxu0
        %v5640 = vadd.f32 0.0, %v5639
        %v5641 = vpop.f32.mrf.mxu0
        %v5642 = vadd.f32 0.0, %v5641
        %5643 = vmatprep.mubr.f32.mxu0 0.0
        %5644 = vmatmul.mubr.f32.gmra.mxu0 %v5379
        %v5645 = vpop.f32.mrf.mxu0
        %v5646 = vadd.f32 0.0, %v5645
        %v5647 = vpop.f32.mrf.mxu0
        %v5648 = vadd.f32 0.0, %v5647
        %5649 = vmatprep.mubr.f32.mxu0 0.0
        %5650 = vmatmul.mubr.f32.gmra.mxu0 %v5381
        %v5651 = vpop.f32.mrf.mxu0
        %v5652 = vadd.f32 0.0, %v5651
        %v5653 = vpop.f32.mrf.mxu0
        %v5654 = vadd.f32 0.0, %v5653
        %5655 = vmatprep.mubr.f32.mxu0 0.0
        %5656 = vmatmul.mubr.f32.gmra.mxu0 %v5383
        %v5657 = vpop.f32.mrf.mxu0
        %v5658 = vadd.f32 0.0, %v5657
        %v5659 = vpop.f32.mrf.mxu0
        %v5660 = vadd.f32 0.0, %v5659
        %5661 = vmatprep.mubr.f32.mxu0 0.0
        %5662 = vmatmul.mubr.f32.gmra.mxu0 %v5385
        %v5663 = vpop.f32.mrf.mxu0
        %v5664 = vadd.f32 0.0, %v5663
        %v5665 = vpop.f32.mrf.mxu0
        %v5666 = vadd.f32 0.0, %v5665
        %5667 = vmatprep.mubr.f32.mxu0 0.0
        %5668 = vmatmul.mubr.f32.gmra.mxu0 %v5387
        %v5669 = vpop.f32.mrf.mxu0
        %v5670 = vadd.f32 0.0, %v5669
        %v5671 = vpop.f32.mrf.mxu0
        %v5672 = vadd.f32 0.0, %v5671
        %5673 = vmatprep.mubr.f32.mxu0 0.0
        %5674 = vmatmul.mubr.f32.gmra.mxu0 %v5389
        %v5675 = vpop.f32.mrf.mxu0
        %v5676 = vadd.f32 0.0, %v5675
        %v5677 = vpop.f32.mrf.mxu0
        %v5678 = vadd.f32 0.0, %v5677
        %5679 = vmatprep.mubr.f32.mxu0 0.0
        %5680 = vmatmul.mubr.f32.gmra.mxu0 %v5391
        %v5681 = vpop.f32.mrf.mxu0
        %v5682 = vadd.f32 0.0, %v5681
        %v5683 = vpop.f32.mrf.mxu0
        %v5684 = vadd.f32 0.0, %v5683
        %5685 = vmatprep.mubr.f32.mxu0 0.0
        %5686 = vmatmul.mubr.f32.gmra.mxu0 %v5393
        %v5687 = vpop.f32.mrf.mxu0
        %v5688 = vadd.f32 0.0, %v5687
        %v5689 = vpop.f32.mrf.mxu0
        %v5690 = vadd.f32 0.0, %v5689
        %5691 = vmatprep.mubr.f32.mxu0 0.0
        %5692 = vmatmul.mubr.f32.gmra.mxu0 %v5395
        %v5693 = vpop.f32.mrf.mxu0
        %v5694 = vadd.f32 0.0, %v5693
        %v5695 = vpop.f32.mrf.mxu0
        %v5696 = vadd.f32 0.0, %v5695
        %5697 = vmatprep.mubr.f32.mxu0 0.0
        %5698 = vmatmul.mubr.f32.gmra.mxu0 %v5397
        %v5699 = vpop.f32.mrf.mxu0
        %v5700 = vadd.f32 0.0, %v5699
        %v5701 = vpop.f32.mrf.mxu0
        %v5702 = vadd.f32 0.0, %v5701
        %5703 = vmatprep.mubr.f32.mxu0 0.0
        %5704 = vmatmul.mubr.f32.gmra.mxu0 %v5399
        %v5705 = vpop.f32.mrf.mxu0
        %v5706 = vadd.f32 0.0, %v5705
        %v5707 = vpop.f32.mrf.mxu0
        %v5708 = vadd.f32 0.0, %v5707
        %5709 = vmatprep.mubr.f32.mxu0 0.0
        %5710 = vmatmul.mubr.f32.gmra.mxu0 %v5401
        %v5711 = vpop.f32.mrf.mxu0
        %v5712 = vadd.f32 0.0, %v5711
        %v5713 = vpop.f32.mrf.mxu0
        %v5714 = vadd.f32 0.0, %v5713
        %5715 = vmatprep.mubr.f32.mxu0 0.0
        %5716 = vmatmul.mubr.f32.gmra.mxu0 %v5403
        %v5717 = vpop.f32.mrf.mxu0
        %v5718 = vadd.f32 0.0, %v5717
        %v5719 = vpop.f32.mrf.mxu0
        %v5720 = vadd.f32 0.0, %v5719
        %5721 = vmatprep.mubr.f32.mxu0 0.0
        %5722 = vmatmul.mubr.f32.gmra.mxu0 %v5405
        %v5723 = vpop.f32.mrf.mxu0
        %v5724 = vadd.f32 0.0, %v5723
        %v5725 = vpop.f32.mrf.mxu0
        %v5726 = vadd.f32 0.0, %v5725
        %5727 = vdwg.mxu0
        %v5728 = vmax.f32 %v5538, %v5540
        %5729 = vmax.xlane.f32.xlu0 %v5728
        %v5730 = vpop.xlane.xlu0 %5729
        %v5731 = vmax.f32 %v5544, %v5546
        %5732 = vmax.xlane.f32.xlu0 %v5731
        %v5733 = vpop.xlane.xlu0 %5732
        %v5734 = vmax.f32 %v5550, %v5552
        %5735 = vmax.xlane.f32.xlu0 %v5734
        %v5736 = vpop.xlane.xlu0 %5735
        %v5737 = vmax.f32 %v5556, %v5558
        %5738 = vmax.xlane.f32.xlu0 %v5737
        %v5739 = vpop.xlane.xlu0 %5738
        %v5740 = vmax.f32 %v5562, %v5564
        %5741 = vmax.xlane.f32.xlu0 %v5740
        %v5742 = vpop.xlane.xlu0 %5741
        %v5743 = vmax.f32 %v5568, %v5570
        %5744 = vmax.xlane.f32.xlu0 %v5743
        %v5745 = vpop.xlane.xlu0 %5744
        %v5746 = vmax.f32 %v5574, %v5576
        %5747 = vmax.xlane.f32.xlu0 %v5746
        %v5748 = vpop.xlane.xlu0 %5747
        %v5749 = vmax.f32 %v5580, %v5582
        %5750 = vmax.xlane.f32.xlu0 %v5749
        %v5751 = vpop.xlane.xlu0 %5750
        %v5752 = vmax.f32 %v5586, %v5588
        %5753 = vmax.xlane.f32.xlu0 %v5752
        %v5754 = vpop.xlane.xlu0 %5753
        %v5755 = vmax.f32 %v5592, %v5594
        %5756 = vmax.xlane.f32.xlu0 %v5755
        %v5757 = vpop.xlane.xlu0 %5756
        %v5758 = vmax.f32 %v5598, %v5600
        %5759 = vmax.xlane.f32.xlu0 %v5758
        %v5760 = vpop.xlane.xlu0 %5759
        %v5761 = vmax.f32 %v5604, %v5606
        %5762 = vmax.xlane.f32.xlu0 %v5761
        %v5763 = vpop.xlane.xlu0 %5762
        %v5764 = vmax.f32 %v5610, %v5612
        %5765 = vmax.xlane.f32.xlu0 %v5764
        %v5766 = vpop.xlane.xlu0 %5765
        %v5767 = vmax.f32 %v5616, %v5618
        %5768 = vmax.xlane.f32.xlu0 %v5767
        %v5769 = vpop.xlane.xlu0 %5768
        %v5770 = vmax.f32 %v5622, %v5624
        %5771 = vmax.xlane.f32.xlu0 %v5770
        %v5772 = vpop.xlane.xlu0 %5771
        %v5773 = vmax.f32 %v5628, %v5630
        %5774 = vmax.xlane.f32.xlu0 %v5773
        %v5775 = vpop.xlane.xlu0 %5774
        %v5776 = vmax.f32 %v5634, %v5636
        %5777 = vmax.xlane.f32.xlu0 %v5776
        %v5778 = vpop.xlane.xlu0 %5777
        %v5779 = vmax.f32 %v5640, %v5642
        %5780 = vmax.xlane.f32.xlu0 %v5779
        %v5781 = vpop.xlane.xlu0 %5780
        %v5782 = vmax.f32 %v5646, %v5648
        %5783 = vmax.xlane.f32.xlu0 %v5782
        %v5784 = vpop.xlane.xlu0 %5783
        %v5785 = vmax.f32 %v5652, %v5654
        %5786 = vmax.xlane.f32.xlu0 %v5785
        %v5787 = vpop.xlane.xlu0 %5786
        %v5788 = vmax.f32 %v5658, %v5660
        %5789 = vmax.xlane.f32.xlu0 %v5788
        %v5790 = vpop.xlane.xlu0 %5789
        %v5791 = vmax.f32 %v5664, %v5666
        %5792 = vmax.xlane.f32.xlu0 %v5791
        %v5793 = vpop.xlane.xlu0 %5792
        %v5794 = vmax.f32 %v5670, %v5672
        %5795 = vmax.xlane.f32.xlu0 %v5794
        %v5796 = vpop.xlane.xlu0 %5795
        %v5797 = vmax.f32 %v5676, %v5678
        %5798 = vmax.xlane.f32.xlu0 %v5797
        %v5799 = vpop.xlane.xlu0 %5798
        %v5800 = vmax.f32 %v5682, %v5684
        %5801 = vmax.xlane.f32.xlu0 %v5800
        %v5802 = vpop.xlane.xlu0 %5801
        %v5803 = vmax.f32 %v5688, %v5690
        %5804 = vmax.xlane.f32.xlu0 %v5803
        %v5805 = vpop.xlane.xlu0 %5804
        %v5806 = vmax.f32 %v5694, %v5696
        %5807 = vmax.xlane.f32.xlu0 %v5806
        %v5808 = vpop.xlane.xlu0 %5807
        %v5809 = vmax.f32 %v5700, %v5702
        %5810 = vmax.xlane.f32.xlu0 %v5809
        %v5811 = vpop.xlane.xlu0 %5810
        %v5812 = vmax.f32 %v5706, %v5708
        %5813 = vmax.xlane.f32.xlu0 %v5812
        %v5814 = vpop.xlane.xlu0 %5813
        %v5815 = vmax.f32 %v5712, %v5714
        %5816 = vmax.xlane.f32.xlu0 %v5815
        %v5817 = vpop.xlane.xlu0 %5816
        %v5818 = vmax.f32 %v5718, %v5720
        %5819 = vmax.xlane.f32.xlu0 %v5818
        %v5820 = vpop.xlane.xlu0 %5819
        %v5821 = vmax.f32 %v5724, %v5726
        %5822 = vmax.xlane.f32.xlu0 %v5821
        %v5823 = vpop.xlane.xlu0 %5822
        %v5824 = vsub.f32 %v5538, %v5730
        %v5825 = vsub.f32 %v5540, %v5730
        %v5826 = vsub.f32 %v5544, %v5733
        %v5827 = vsub.f32 %v5546, %v5733
        %v5828 = vsub.f32 %v5550, %v5736
        %v5829 = vsub.f32 %v5552, %v5736
        %v5830 = vsub.f32 %v5556, %v5739
        %v5831 = vsub.f32 %v5558, %v5739
        %v5832 = vsub.f32 %v5562, %v5742
        %v5833 = vsub.f32 %v5564, %v5742
        %v5834 = vsub.f32 %v5568, %v5745
        %v5835 = vsub.f32 %v5570, %v5745
        %v5836 = vsub.f32 %v5574, %v5748
        %v5837 = vsub.f32 %v5576, %v5748
        %v5838 = vsub.f32 %v5580, %v5751
        %v5839 = vsub.f32 %v5582, %v5751
        %v5840 = vsub.f32 %v5586, %v5754
        %v5841 = vsub.f32 %v5588, %v5754
        %v5842 = vsub.f32 %v5592, %v5757
        %v5843 = vsub.f32 %v5594, %v5757
        %v5844 = vsub.f32 %v5598, %v5760
        %v5845 = vsub.f32 %v5600, %v5760
        %v5846 = vsub.f32 %v5604, %v5763
        %v5847 = vsub.f32 %v5606, %v5763
        %v5848 = vsub.f32 %v5610, %v5766
        %v5849 = vsub.f32 %v5612, %v5766
        %v5850 = vsub.f32 %v5616, %v5769
        %v5851 = vsub.f32 %v5618, %v5769
        %v5852 = vsub.f32 %v5622, %v5772
        %v5853 = vsub.f32 %v5624, %v5772
        %v5854 = vsub.f32 %v5628, %v5775
        %v5855 = vsub.f32 %v5630, %v5775
        %v5856 = vsub.f32 %v5634, %v5778
        %v5857 = vsub.f32 %v5636, %v5778
        %v5858 = vsub.f32 %v5640, %v5781
        %v5859 = vsub.f32 %v5642, %v5781
        %v5860 = vsub.f32 %v5646, %v5784
        %v5861 = vsub.f32 %v5648, %v5784
        %v5862 = vsub.f32 %v5652, %v5787
        %v5863 = vsub.f32 %v5654, %v5787
        %v5864 = vsub.f32 %v5658, %v5790
        %v5865 = vsub.f32 %v5660, %v5790
        %v5866 = vsub.f32 %v5664, %v5793
        %v5867 = vsub.f32 %v5666, %v5793
        %v5868 = vsub.f32 %v5670, %v5796
        %v5869 = vsub.f32 %v5672, %v5796
        %v5870 = vsub.f32 %v5676, %v5799
        %v5871 = vsub.f32 %v5678, %v5799
        %v5872 = vsub.f32 %v5682, %v5802
        %v5873 = vsub.f32 %v5684, %v5802
        %v5874 = vsub.f32 %v5688, %v5805
        %v5875 = vsub.f32 %v5690, %v5805
        %v5876 = vsub.f32 %v5694, %v5808
        %v5877 = vsub.f32 %v5696, %v5808
        %v5878 = vsub.f32 %v5700, %v5811
        %v5879 = vsub.f32 %v5702, %v5811
        %v5880 = vsub.f32 %v5706, %v5814
        %v5881 = vsub.f32 %v5708, %v5814
        %v5882 = vsub.f32 %v5712, %v5817
        %v5883 = vsub.f32 %v5714, %v5817
        %v5884 = vsub.f32 %v5718, %v5820
        %v5885 = vsub.f32 %v5720, %v5820
        %v5886 = vsub.f32 %v5724, %v5823
        %v5887 = vsub.f32 %v5726, %v5823
        %v5888 = vmul.f32 %v5824, 1.442695
        %v5889 = vpow.pop %v5888
        %v5890 = vmul.f32 %v5825, 1.442695
        %v5891 = vpow.pop %v5890
        %v5892 = vmul.f32 %v5826, 1.442695
        %v5893 = vpow.pop %v5892
        %v5894 = vmul.f32 %v5827, 1.442695
        %v5895 = vpow.pop %v5894
        %v5896 = vmul.f32 %v5828, 1.442695
        %v5897 = vpow.pop %v5896
        %v5898 = vmul.f32 %v5829, 1.442695
        %v5899 = vpow.pop %v5898
        %v5900 = vmul.f32 %v5830, 1.442695
        %v5901 = vpow.pop %v5900
        %v5902 = vmul.f32 %v5831, 1.442695
        %v5903 = vpow.pop %v5902
        %v5904 = vmul.f32 %v5832, 1.442695
        %v5905 = vpow.pop %v5904
        %v5906 = vmul.f32 %v5833, 1.442695
        %v5907 = vpow.pop %v5906
        %v5908 = vmul.f32 %v5834, 1.442695
        %v5909 = vpow.pop %v5908
        %v5910 = vmul.f32 %v5835, 1.442695
        %v5911 = vpow.pop %v5910
        %v5912 = vmul.f32 %v5836, 1.442695
        %v5913 = vpow.pop %v5912
        %v5914 = vmul.f32 %v5837, 1.442695
        %v5915 = vpow.pop %v5914
        %v5916 = vmul.f32 %v5838, 1.442695
        %v5917 = vpow.pop %v5916
        %v5918 = vmul.f32 %v5839, 1.442695
        %v5919 = vpow.pop %v5918
        %v5920 = vmul.f32 %v5840, 1.442695
        %v5921 = vpow.pop %v5920
        %v5922 = vmul.f32 %v5841, 1.442695
        %v5923 = vpow.pop %v5922
        %v5924 = vmul.f32 %v5842, 1.442695
        %v5925 = vpow.pop %v5924
        %v5926 = vmul.f32 %v5843, 1.442695
        %v5927 = vpow.pop %v5926
        %v5928 = vmul.f32 %v5844, 1.442695
        %v5929 = vpow.pop %v5928
        %v5930 = vmul.f32 %v5845, 1.442695
        %v5931 = vpow.pop %v5930
        %v5932 = vmul.f32 %v5846, 1.442695
        %v5933 = vpow.pop %v5932
        %v5934 = vmul.f32 %v5847, 1.442695
        %v5935 = vpow.pop %v5934
        %v5936 = vmul.f32 %v5848, 1.442695
        %v5937 = vpow.pop %v5936
        %v5938 = vmul.f32 %v5849, 1.442695
        %v5939 = vpow.pop %v5938
        %v5940 = vmul.f32 %v5850, 1.442695
        %v5941 = vpow.pop %v5940
        %v5942 = vmul.f32 %v5851, 1.442695
        %v5943 = vpow.pop %v5942
        %v5944 = vmul.f32 %v5852, 1.442695
        %v5945 = vpow.pop %v5944
        %v5946 = vmul.f32 %v5853, 1.442695
        %v5947 = vpow.pop %v5946
        %v5948 = vmul.f32 %v5854, 1.442695
        %v5949 = vpow.pop %v5948
        %v5950 = vmul.f32 %v5855, 1.442695
        %v5951 = vpow.pop %v5950
        %v5952 = vmul.f32 %v5856, 1.442695
        %v5953 = vpow.pop %v5952
        %v5954 = vmul.f32 %v5857, 1.442695
        %v5955 = vpow.pop %v5954
        %v5956 = vmul.f32 %v5858, 1.442695
        %v5957 = vpow.pop %v5956
        %v5958 = vmul.f32 %v5859, 1.442695
        %v5959 = vpow.pop %v5958
        %v5960 = vmul.f32 %v5860, 1.442695
        %v5961 = vpow.pop %v5960
        %v5962 = vmul.f32 %v5861, 1.442695
        %v5963 = vpow.pop %v5962
        %v5964 = vmul.f32 %v5862, 1.442695
        %v5965 = vpow.pop %v5964
        %v5966 = vmul.f32 %v5863, 1.442695
        %v5967 = vpow.pop %v5966
        %v5968 = vmul.f32 %v5864, 1.442695
        %v5969 = vpow.pop %v5968
        %v5970 = vmul.f32 %v5865, 1.442695
        %v5971 = vpow.pop %v5970
        %v5972 = vmul.f32 %v5866, 1.442695
        %v5973 = vpow.pop %v5972
        %v5974 = vmul.f32 %v5867, 1.442695
        %v5975 = vpow.pop %v5974
        %v5976 = vmul.f32 %v5868, 1.442695
        %v5977 = vpow.pop %v5976
        %v5978 = vmul.f32 %v5869, 1.442695
        %v5979 = vpow.pop %v5978
        %v5980 = vmul.f32 %v5870, 1.442695
        %v5981 = vpow.pop %v5980
        %v5982 = vmul.f32 %v5871, 1.442695
        %v5983 = vpow.pop %v5982
        %v5984 = vmul.f32 %v5872, 1.442695
        %v5985 = vpow.pop %v5984
        %v5986 = vmul.f32 %v5873, 1.442695
        %v5987 = vpow.pop %v5986
        %v5988 = vmul.f32 %v5874, 1.442695
        %v5989 = vpow.pop %v5988
        %v5990 = vmul.f32 %v5875, 1.442695
        %v5991 = vpow.pop %v5990
        %v5992 = vmul.f32 %v5876, 1.442695
        %v5993 = vpow.pop %v5992
        %v5994 = vmul.f32 %v5877, 1.442695
        %v5995 = vpow.pop %v5994
        %v5996 = vmul.f32 %v5878, 1.442695
        %v5997 = vpow.pop %v5996
        %v5998 = vmul.f32 %v5879, 1.442695
        %v5999 = vpow.pop %v5998
        %v6000 = vmul.f32 %v5880, 1.442695
        %v6001 = vpow.pop %v6000
        %v6002 = vmul.f32 %v5881, 1.442695
        %v6003 = vpow.pop %v6002
        %v6004 = vmul.f32 %v5882, 1.442695
        %v6005 = vpow.pop %v6004
        %v6006 = vmul.f32 %v5883, 1.442695
        %v6007 = vpow.pop %v6006
        %v6008 = vmul.f32 %v5884, 1.442695
        %v6009 = vpow.pop %v6008
        %v6010 = vmul.f32 %v5885, 1.442695
        %v6011 = vpow.pop %v6010
        %v6012 = vmul.f32 %v5886, 1.442695
        %v6013 = vpow.pop %v6012
        %v6014 = vmul.f32 %v5887, 1.442695
        %v6015 = vpow.pop %v6014
        %v6016 = vadd.f32 %v5889, %v5891
        %6017 = vadd.xlane.f32.xlu0 %v6016
        %v6018 = vpop.xlane.xlu0 %6017
        %v6019 = vadd.f32 %v5893, %v5895
        %6020 = vadd.xlane.f32.xlu0 %v6019
        %v6021 = vpop.xlane.xlu0 %6020
        %v6022 = vadd.f32 %v5897, %v5899
        %6023 = vadd.xlane.f32.xlu0 %v6022
        %v6024 = vpop.xlane.xlu0 %6023
        %v6025 = vadd.f32 %v5901, %v5903
        %6026 = vadd.xlane.f32.xlu0 %v6025
        %v6027 = vpop.xlane.xlu0 %6026
        %v6028 = vadd.f32 %v5905, %v5907
        %6029 = vadd.xlane.f32.xlu0 %v6028
        %v6030 = vpop.xlane.xlu0 %6029
        %v6031 = vadd.f32 %v5909, %v5911
        %6032 = vadd.xlane.f32.xlu0 %v6031
        %v6033 = vpop.xlane.xlu0 %6032
        %v6034 = vadd.f32 %v5913, %v5915
        %6035 = vadd.xlane.f32.xlu0 %v6034
        %v6036 = vpop.xlane.xlu0 %6035
        %v6037 = vadd.f32 %v5917, %v5919
        %6038 = vadd.xlane.f32.xlu0 %v6037
        %v6039 = vpop.xlane.xlu0 %6038
        %v6040 = vadd.f32 %v5921, %v5923
        %6041 = vadd.xlane.f32.xlu0 %v6040
        %v6042 = vpop.xlane.xlu0 %6041
        %v6043 = vadd.f32 %v5925, %v5927
        %6044 = vadd.xlane.f32.xlu0 %v6043
        %v6045 = vpop.xlane.xlu0 %6044
        %v6046 = vadd.f32 %v5929, %v5931
        %6047 = vadd.xlane.f32.xlu0 %v6046
        %v6048 = vpop.xlane.xlu0 %6047
        %v6049 = vadd.f32 %v5933, %v5935
        %6050 = vadd.xlane.f32.xlu0 %v6049
        %v6051 = vpop.xlane.xlu0 %6050
        %v6052 = vadd.f32 %v5937, %v5939
        %6053 = vadd.xlane.f32.xlu0 %v6052
        %v6054 = vpop.xlane.xlu0 %6053
        %v6055 = vadd.f32 %v5941, %v5943
        %6056 = vadd.xlane.f32.xlu0 %v6055
        %v6057 = vpop.xlane.xlu0 %6056
        %v6058 = vadd.f32 %v5945, %v5947
        %6059 = vadd.xlane.f32.xlu0 %v6058
        %v6060 = vpop.xlane.xlu0 %6059
        %v6061 = vadd.f32 %v5949, %v5951
        %6062 = vadd.xlane.f32.xlu0 %v6061
        %v6063 = vpop.xlane.xlu0 %6062
        %v6064 = vadd.f32 %v5953, %v5955
        %6065 = vadd.xlane.f32.xlu0 %v6064
        %v6066 = vpop.xlane.xlu0 %6065
        %v6067 = vadd.f32 %v5957, %v5959
        %6068 = vadd.xlane.f32.xlu0 %v6067
        %v6069 = vpop.xlane.xlu0 %6068
        %v6070 = vadd.f32 %v5961, %v5963
        %6071 = vadd.xlane.f32.xlu0 %v6070
        %v6072 = vpop.xlane.xlu0 %6071
        %v6073 = vadd.f32 %v5965, %v5967
        %6074 = vadd.xlane.f32.xlu0 %v6073
        %v6075 = vpop.xlane.xlu0 %6074
        %v6076 = vadd.f32 %v5969, %v5971
        %6077 = vadd.xlane.f32.xlu0 %v6076
        %v6078 = vpop.xlane.xlu0 %6077
        %v6079 = vadd.f32 %v5973, %v5975
        %6080 = vadd.xlane.f32.xlu0 %v6079
        %v6081 = vpop.xlane.xlu0 %6080
        %v6082 = vadd.f32 %v5977, %v5979
        %6083 = vadd.xlane.f32.xlu0 %v6082
        %v6084 = vpop.xlane.xlu0 %6083
        %v6085 = vadd.f32 %v5981, %v5983
        %6086 = vadd.xlane.f32.xlu0 %v6085
        %v6087 = vpop.xlane.xlu0 %6086
        %v6088 = vadd.f32 %v5985, %v5987
        %6089 = vadd.xlane.f32.xlu0 %v6088
        %v6090 = vpop.xlane.xlu0 %6089
        %v6091 = vadd.f32 %v5989, %v5991
        %6092 = vadd.xlane.f32.xlu0 %v6091
        %v6093 = vpop.xlane.xlu0 %6092
        %v6094 = vadd.f32 %v5993, %v5995
        %6095 = vadd.xlane.f32.xlu0 %v6094
        %v6096 = vpop.xlane.xlu0 %6095
        %v6097 = vadd.f32 %v5997, %v5999
        %6098 = vadd.xlane.f32.xlu0 %v6097
        %v6099 = vpop.xlane.xlu0 %6098
        %v6100 = vadd.f32 %v6001, %v6003
        %6101 = vadd.xlane.f32.xlu0 %v6100
        %v6102 = vpop.xlane.xlu0 %6101
        %v6103 = vadd.f32 %v6005, %v6007
        %6104 = vadd.xlane.f32.xlu0 %v6103
        %v6105 = vpop.xlane.xlu0 %6104
        %v6106 = vadd.f32 %v6009, %v6011
        %6107 = vadd.xlane.f32.xlu0 %v6106
        %v6108 = vpop.xlane.xlu0 %6107
        %v6109 = vadd.f32 %v6013, %v6015
        %6110 = vadd.xlane.f32.xlu0 %v6109
        %v6111 = vpop.xlane.xlu0 %6110
        %6112 = vrot.lane.b32.xlu0 %v634, 32
        %v6113 = vpop.permute.xlu0 %6112
        %6114 = vrot.lane.b32.xlu0 %v639, 32
        %v6115 = vpop.permute.xlu0 %6114
        %6116 = vrot.lane.b32.xlu0 %v644, 32
        %v6117 = vpop.permute.xlu0 %6116
        %6118 = vrot.lane.b32.xlu0 %v649, 32
        %v6119 = vpop.permute.xlu0 %6118
        %6120 = vrot.lane.b32.xlu0 %v654, 32
        %v6121 = vpop.permute.xlu0 %6120
        %6122 = vrot.lane.b32.xlu0 %v659, 32
        %v6123 = vpop.permute.xlu0 %6122
        %6124 = vrot.lane.b32.xlu0 %v664, 32
        %v6125 = vpop.permute.xlu0 %6124
        %6126 = vrot.lane.b32.xlu0 %v669, 32
        %v6127 = vpop.permute.xlu0 %6126
        %6128 = vrot.lane.b32.xlu0 %v674, 32
        %v6129 = vpop.permute.xlu0 %6128
        %6130 = vrot.lane.b32.xlu0 %v679, 32
        %v6131 = vpop.permute.xlu0 %6130
        %6132 = vrot.lane.b32.xlu0 %v684, 32
        %v6133 = vpop.permute.xlu0 %6132
        %6134 = vrot.lane.b32.xlu0 %v689, 32
        %v6135 = vpop.permute.xlu0 %6134
        %6136 = vrot.lane.b32.xlu0 %v694, 32
        %v6137 = vpop.permute.xlu0 %6136
        %6138 = vrot.lane.b32.xlu0 %v699, 32
        %v6139 = vpop.permute.xlu0 %6138
        %6140 = vrot.lane.b32.xlu0 %v704, 32
        %v6141 = vpop.permute.xlu0 %6140
        %6142 = vrot.lane.b32.xlu0 %v709, 32
        %v6143 = vpop.permute.xlu0 %6142
        %6144 = vrot.lane.b32.xlu0 %v714, 32
        %v6145 = vpop.permute.xlu0 %6144
        %6146 = vrot.lane.b32.xlu0 %v719, 32
        %v6147 = vpop.permute.xlu0 %6146
        %6148 = vrot.lane.b32.xlu0 %v724, 32
        %v6149 = vpop.permute.xlu0 %6148
        %6150 = vrot.lane.b32.xlu0 %v729, 32
        %v6151 = vpop.permute.xlu0 %6150
        %6152 = vrot.lane.b32.xlu0 %v734, 32
        %v6153 = vpop.permute.xlu0 %6152
        %6154 = vrot.lane.b32.xlu0 %v739, 32
        %v6155 = vpop.permute.xlu0 %6154
        %6156 = vrot.lane.b32.xlu0 %v744, 32
        %v6157 = vpop.permute.xlu0 %6156
        %6158 = vrot.lane.b32.xlu0 %v749, 32
        %v6159 = vpop.permute.xlu0 %6158
        %6160 = vrot.lane.b32.xlu0 %v754, 32
        %v6161 = vpop.permute.xlu0 %6160
        %6162 = vrot.lane.b32.xlu0 %v759, 32
        %v6163 = vpop.permute.xlu0 %6162
        %6164 = vrot.lane.b32.xlu0 %v764, 32
        %v6165 = vpop.permute.xlu0 %6164
        %6166 = vrot.lane.b32.xlu0 %v769, 32
        %v6167 = vpop.permute.xlu0 %6166
        %6168 = vrot.lane.b32.xlu0 %v774, 32
        %v6169 = vpop.permute.xlu0 %6168
        %6170 = vrot.lane.b32.xlu0 %v779, 32
        %v6171 = vpop.permute.xlu0 %6170
        %6172 = vrot.lane.b32.xlu0 %v784, 32
        %v6173 = vpop.permute.xlu0 %6172
        %6174 = vrot.lane.b32.xlu0 %v789, 32
        %v6175 = vpop.permute.xlu0 %6174
        %6208 = vmatprep.subr.mxu0 0.0
        %6209 = vmatpush1.msra.mxu0 %v6143
        %6210 = vmatprep.subr.mxu0 0.0
        %6211 = vmatpush1.msra.mxu0 %v6141
        %6212 = vmatprep.subr.mxu0 0.0
        %6213 = vmatpush1.msra.mxu0 %v6139
        %6214 = vmatprep.subr.mxu0 0.0
        %6215 = vmatpush1.msra.mxu0 %v6137
        %6216 = vmatprep.subr.mxu0 0.0
        %6217 = vmatpush1.msra.mxu0 %v6135
        %6218 = vmatprep.subr.mxu0 0.0
        %6219 = vmatpush1.msra.mxu0 %v6133
        %6220 = vmatprep.subr.mxu0 0.0
        %6221 = vmatpush1.msra.mxu0 %v6131
        %6222 = vmatprep.subr.mxu0 0.0
        %6223 = vmatpush1.msra.mxu0 %v6129
        %6224 = vmatprep.subr.mxu0 0.0
        %6225 = vmatpush1.msra.mxu0 %v6127
        %6226 = vmatprep.subr.mxu0 0.0
        %6227 = vmatpush1.msra.mxu0 %v6125
        %6228 = vmatprep.subr.mxu0 0.0
        %6229 = vmatpush1.msra.mxu0 %v6123
        %6230 = vmatprep.subr.mxu0 0.0
        %6231 = vmatpush1.msra.mxu0 %v6121
        %6232 = vmatprep.subr.mxu0 0.0
        %6233 = vmatpush1.msra.mxu0 %v6119
        %6234 = vmatprep.subr.mxu0 0.0
        %6235 = vmatpush1.msra.mxu0 %v6117
        %6236 = vmatprep.subr.mxu0 0.0
        %6237 = vmatpush1.msra.mxu0 %v6115
        %6238 = vmatprep.subr.mxu0 0.0
        %6239 = vmatpush1.msra.mxu0 %v6113
        %6240 = vmatprep.subr.mxu0 0.0
        %6241 = vmatpush2.msra.mxu0 %v6175
        %6242 = vmatprep.subr.mxu0 0.0
        %6243 = vmatpush2.msra.mxu0 %v6173
        %6244 = vmatprep.subr.mxu0 0.0
        %6245 = vmatpush2.msra.mxu0 %v6171
        %6246 = vmatprep.subr.mxu0 0.0
        %6247 = vmatpush2.msra.mxu0 %v6169
        %6248 = vmatprep.subr.mxu0 0.0
        %6249 = vmatpush2.msra.mxu0 %v6167
        %6250 = vmatprep.subr.mxu0 0.0
        %6251 = vmatpush2.msra.mxu0 %v6165
        %6252 = vmatprep.subr.mxu0 0.0
        %6253 = vmatpush2.msra.mxu0 %v6163
        %6254 = vmatprep.subr.mxu0 0.0
        %6255 = vmatpush2.msra.mxu0 %v6161
        %6256 = vmatprep.subr.mxu0 0.0
        %6257 = vmatpush2.msra.mxu0 %v6159
        %6258 = vmatprep.subr.mxu0 0.0
        %6259 = vmatpush2.msra.mxu0 %v6157
        %6260 = vmatprep.subr.mxu0 0.0
        %6261 = vmatpush2.msra.mxu0 %v6155
        %6262 = vmatprep.subr.mxu0 0.0
        %6263 = vmatpush2.msra.mxu0 %v6153
        %6264 = vmatprep.subr.mxu0 0.0
        %6265 = vmatpush2.msra.mxu0 %v6151
        %6266 = vmatprep.subr.mxu0 0.0
        %6267 = vmatpush2.msra.mxu0 %v6149
        %6268 = vmatprep.subr.mxu0 0.0
        %6269 = vmatpush2.msra.mxu0 %v6147
        %6270 = vmatprep.subr.mxu0 0.0
        %6271 = vmatpush2.msra.mxu0 %v6145
        %6272 = vmatprep.mubr.f32.mxu0 %v5891
        %6273 = vmatmul.mubr.f32.gmra.mxu0 %v5889
        %v6274 = vpop.f32.mrf.mxu0
        %v6275 = vadd.f32 0.0, %v6274
        %v6276 = vpop.f32.mrf.mxu0
        %6277 = vmatprep.mubr.f32.mxu0 %v5895
        %6278 = vmatmul.mubr.f32.gmra.mxu0 %v5893
        %v6279 = vpop.f32.mrf.mxu0
        %v6280 = vadd.f32 0.0, %v6279
        %v6281 = vpop.f32.mrf.mxu0
        %6282 = vmatprep.mubr.f32.mxu0 %v5899
        %6283 = vmatmul.mubr.f32.gmra.mxu0 %v5897
        %v6284 = vpop.f32.mrf.mxu0
        %v6285 = vadd.f32 0.0, %v6284
        %v6286 = vpop.f32.mrf.mxu0
        %6287 = vmatprep.mubr.f32.mxu0 %v5903
        %6288 = vmatmul.mubr.f32.gmra.mxu0 %v5901
        %v6289 = vpop.f32.mrf.mxu0
        %v6290 = vadd.f32 0.0, %v6289
        %v6291 = vpop.f32.mrf.mxu0
        %6292 = vmatprep.mubr.f32.mxu0 %v5907
        %6293 = vmatmul.mubr.f32.gmra.mxu0 %v5905
        %v6294 = vpop.f32.mrf.mxu0
        %v6295 = vadd.f32 0.0, %v6294
        %v6296 = vpop.f32.mrf.mxu0
        %6297 = vmatprep.mubr.f32.mxu0 %v5911
        %6298 = vmatmul.mubr.f32.gmra.mxu0 %v5909
        %v6299 = vpop.f32.mrf.mxu0
        %v6300 = vadd.f32 0.0, %v6299
        %v6301 = vpop.f32.mrf.mxu0
        %6302 = vmatprep.mubr.f32.mxu0 %v5915
        %6303 = vmatmul.mubr.f32.gmra.mxu0 %v5913
        %v6304 = vpop.f32.mrf.mxu0
        %v6305 = vadd.f32 0.0, %v6304
        %v6306 = vpop.f32.mrf.mxu0
        %6307 = vmatprep.mubr.f32.mxu0 %v5919
        %6308 = vmatmul.mubr.f32.gmra.mxu0 %v5917
        %v6309 = vpop.f32.mrf.mxu0
        %v6310 = vadd.f32 0.0, %v6309
        %v6311 = vpop.f32.mrf.mxu0
        %6312 = vmatprep.mubr.f32.mxu0 %v5923
        %6313 = vmatmul.mubr.f32.gmra.mxu0 %v5921
        %v6314 = vpop.f32.mrf.mxu0
        %v6315 = vadd.f32 0.0, %v6314
        %v6316 = vpop.f32.mrf.mxu0
        %6317 = vmatprep.mubr.f32.mxu0 %v5927
        %6318 = vmatmul.mubr.f32.gmra.mxu0 %v5925
        %v6319 = vpop.f32.mrf.mxu0
        %v6320 = vadd.f32 0.0, %v6319
        %v6321 = vpop.f32.mrf.mxu0
        %6322 = vmatprep.mubr.f32.mxu0 %v5931
        %6323 = vmatmul.mubr.f32.gmra.mxu0 %v5929
        %v6324 = vpop.f32.mrf.mxu0
        %v6325 = vadd.f32 0.0, %v6324
        %v6326 = vpop.f32.mrf.mxu0
        %6327 = vmatprep.mubr.f32.mxu0 %v5935
        %6328 = vmatmul.mubr.f32.gmra.mxu0 %v5933
        %v6329 = vpop.f32.mrf.mxu0
        %v6330 = vadd.f32 0.0, %v6329
        %v6331 = vpop.f32.mrf.mxu0
        %6332 = vmatprep.mubr.f32.mxu0 %v5939
        %6333 = vmatmul.mubr.f32.gmra.mxu0 %v5937
        %v6334 = vpop.f32.mrf.mxu0
        %v6335 = vadd.f32 0.0, %v6334
        %v6336 = vpop.f32.mrf.mxu0
        %6337 = vmatprep.mubr.f32.mxu0 %v5943
        %6338 = vmatmul.mubr.f32.gmra.mxu0 %v5941
        %v6339 = vpop.f32.mrf.mxu0
        %v6340 = vadd.f32 0.0, %v6339
        %v6341 = vpop.f32.mrf.mxu0
        %6342 = vmatprep.mubr.f32.mxu0 %v5947
        %6343 = vmatmul.mubr.f32.gmra.mxu0 %v5945
        %v6344 = vpop.f32.mrf.mxu0
        %v6345 = vadd.f32 0.0, %v6344
        %v6346 = vpop.f32.mrf.mxu0
        %6347 = vmatprep.mubr.f32.mxu0 %v5951
        %6348 = vmatmul.mubr.f32.gmra.mxu0 %v5949
        %v6349 = vpop.f32.mrf.mxu0
        %v6350 = vadd.f32 0.0, %v6349
        %v6351 = vpop.f32.mrf.mxu0
        %6352 = vmatprep.mubr.f32.mxu0 %v5955
        %6353 = vmatmul.mubr.f32.gmra.mxu0 %v5953
        %v6354 = vpop.f32.mrf.mxu0
        %v6355 = vadd.f32 0.0, %v6354
        %v6356 = vpop.f32.mrf.mxu0
        %6357 = vmatprep.mubr.f32.mxu0 %v5959
        %6358 = vmatmul.mubr.f32.gmra.mxu0 %v5957
        %v6359 = vpop.f32.mrf.mxu0
        %v6360 = vadd.f32 0.0, %v6359
        %v6361 = vpop.f32.mrf.mxu0
        %6362 = vmatprep.mubr.f32.mxu0 %v5963
        %6363 = vmatmul.mubr.f32.gmra.mxu0 %v5961
        %v6364 = vpop.f32.mrf.mxu0
        %v6365 = vadd.f32 0.0, %v6364
        %v6366 = vpop.f32.mrf.mxu0
        %6367 = vmatprep.mubr.f32.mxu0 %v5967
        %6368 = vmatmul.mubr.f32.gmra.mxu0 %v5965
        %v6369 = vpop.f32.mrf.mxu0
        %v6370 = vadd.f32 0.0, %v6369
        %v6371 = vpop.f32.mrf.mxu0
        %6372 = vmatprep.mubr.f32.mxu0 %v5971
        %6373 = vmatmul.mubr.f32.gmra.mxu0 %v5969
        %v6374 = vpop.f32.mrf.mxu0
        %v6375 = vadd.f32 0.0, %v6374
        %v6376 = vpop.f32.mrf.mxu0
        %6377 = vmatprep.mubr.f32.mxu0 %v5975
        %6378 = vmatmul.mubr.f32.gmra.mxu0 %v5973
        %v6379 = vpop.f32.mrf.mxu0
        %v6380 = vadd.f32 0.0, %v6379
        %v6381 = vpop.f32.mrf.mxu0
        %6382 = vmatprep.mubr.f32.mxu0 %v5979
        %6383 = vmatmul.mubr.f32.gmra.mxu0 %v5977
        %v6384 = vpop.f32.mrf.mxu0
        %v6385 = vadd.f32 0.0, %v6384
        %v6386 = vpop.f32.mrf.mxu0
        %6387 = vmatprep.mubr.f32.mxu0 %v5983
        %6388 = vmatmul.mubr.f32.gmra.mxu0 %v5981
        %v6389 = vpop.f32.mrf.mxu0
        %v6390 = vadd.f32 0.0, %v6389
        %v6391 = vpop.f32.mrf.mxu0
        %6392 = vmatprep.mubr.f32.mxu0 %v5987
        %6393 = vmatmul.mubr.f32.gmra.mxu0 %v5985
        %v6394 = vpop.f32.mrf.mxu0
        %v6395 = vadd.f32 0.0, %v6394
        %v6396 = vpop.f32.mrf.mxu0
        %6397 = vmatprep.mubr.f32.mxu0 %v5991
        %6398 = vmatmul.mubr.f32.gmra.mxu0 %v5989
        %v6399 = vpop.f32.mrf.mxu0
        %v6400 = vadd.f32 0.0, %v6399
        %v6401 = vpop.f32.mrf.mxu0
        %6402 = vmatprep.mubr.f32.mxu0 %v5995
        %6403 = vmatmul.mubr.f32.gmra.mxu0 %v5993
        %v6404 = vpop.f32.mrf.mxu0
        %v6405 = vadd.f32 0.0, %v6404
        %v6406 = vpop.f32.mrf.mxu0
        %6407 = vmatprep.mubr.f32.mxu0 %v5999
        %6408 = vmatmul.mubr.f32.gmra.mxu0 %v5997
        %v6409 = vpop.f32.mrf.mxu0
        %v6410 = vadd.f32 0.0, %v6409
        %v6411 = vpop.f32.mrf.mxu0
        %6412 = vmatprep.mubr.f32.mxu0 %v6003
        %6413 = vmatmul.mubr.f32.gmra.mxu0 %v6001
        %v6414 = vpop.f32.mrf.mxu0
        %v6415 = vadd.f32 0.0, %v6414
        %v6416 = vpop.f32.mrf.mxu0
        %6417 = vmatprep.mubr.f32.mxu0 %v6007
        %6418 = vmatmul.mubr.f32.gmra.mxu0 %v6005
        %v6419 = vpop.f32.mrf.mxu0
        %v6420 = vadd.f32 0.0, %v6419
        %v6421 = vpop.f32.mrf.mxu0
        %6422 = vmatprep.mubr.f32.mxu0 %v6011
        %6423 = vmatmul.mubr.f32.gmra.mxu0 %v6009
        %v6424 = vpop.f32.mrf.mxu0
        %v6425 = vadd.f32 0.0, %v6424
        %v6426 = vpop.f32.mrf.mxu0
        %6427 = vmatprep.mubr.f32.mxu0 %v6015
        %6428 = vmatmul.mubr.f32.gmra.mxu0 %v6013
        %v6429 = vpop.f32.mrf.mxu0
        %v6430 = vadd.f32 0.0, %v6429
        %v6431 = vpop.f32.mrf.mxu0
        %6432 = vdwg.mxu0
        %v6433 = vrcp.pop %v6018
        %v6434 = vrcp.pop %v6021
        %v6435 = vrcp.pop %v6024
        %v6436 = vrcp.pop %v6027
        %v6437 = vrcp.pop %v6030
        %v6438 = vrcp.pop %v6033
        %v6439 = vrcp.pop %v6036
        %v6440 = vrcp.pop %v6039
        %v6441 = vrcp.pop %v6042
        %v6442 = vrcp.pop %v6045
        %v6443 = vrcp.pop %v6048
        %v6444 = vrcp.pop %v6051
        %v6445 = vrcp.pop %v6054
        %v6446 = vrcp.pop %v6057
        %v6447 = vrcp.pop %v6060
        %v6448 = vrcp.pop %v6063
        %v6449 = vrcp.pop %v6066
        %v6450 = vrcp.pop %v6069
        %v6451 = vrcp.pop %v6072
        %v6452 = vrcp.pop %v6075
        %v6453 = vrcp.pop %v6078
        %v6454 = vrcp.pop %v6081
        %v6455 = vrcp.pop %v6084
        %v6456 = vrcp.pop %v6087
        %v6457 = vrcp.pop %v6090
        %v6458 = vrcp.pop %v6093
        %v6459 = vrcp.pop %v6096
        %v6460 = vrcp.pop %v6099
        %v6461 = vrcp.pop %v6102
        %v6462 = vrcp.pop %v6105
        %v6463 = vrcp.pop %v6108
        %v6464 = vrcp.pop %v6111
        %v6465 = vmul.f32 %v6275, %v6433
        %v6466 = vmul.f32 %v6280, %v6434
        %v6467 = vmul.f32 %v6285, %v6435
        %v6468 = vmul.f32 %v6290, %v6436
        %v6469 = vmul.f32 %v6295, %v6437
        %v6470 = vmul.f32 %v6300, %v6438
        %v6471 = vmul.f32 %v6305, %v6439
        %v6472 = vmul.f32 %v6310, %v6440
        %v6473 = vmul.f32 %v6315, %v6441
        %v6474 = vmul.f32 %v6320, %v6442
        %v6475 = vmul.f32 %v6325, %v6443
        %v6476 = vmul.f32 %v6330, %v6444
        %v6477 = vmul.f32 %v6335, %v6445
        %v6478 = vmul.f32 %v6340, %v6446
        %v6479 = vmul.f32 %v6345, %v6447
        %v6480 = vmul.f32 %v6350, %v6448
        %v6481 = vmul.f32 %v6355, %v6449
        %v6482 = vmul.f32 %v6360, %v6450
        %v6483 = vmul.f32 %v6365, %v6451
        %v6484 = vmul.f32 %v6370, %v6452
        %v6485 = vmul.f32 %v6375, %v6453
        %v6486 = vmul.f32 %v6380, %v6454
        %v6487 = vmul.f32 %v6385, %v6455
        %v6488 = vmul.f32 %v6390, %v6456
        %v6489 = vmul.f32 %v6395, %v6457
        %v6490 = vmul.f32 %v6400, %v6458
        %v6491 = vmul.f32 %v6405, %v6459
        %v6492 = vmul.f32 %v6410, %v6460
        %v6493 = vmul.f32 %v6415, %v6461
        %v6494 = vmul.f32 %v6420, %v6462
        %v6495 = vmul.f32 %v6425, %v6463
        %v6496 = vmul.f32 %v6430, %v6464
        %6529 = vrot.lane.b32.xlu0 %v3517, 32
        %v6530 = vpop.permute.xlu0 %6529
        %6531 = vrot.lane.b32.xlu0 %v3518, 32
        %v6532 = vpop.permute.xlu0 %6531
        %6533 = vrot.lane.b32.xlu0 %v3519, 32
        %v6534 = vpop.permute.xlu0 %6533
        %6535 = vrot.lane.b32.xlu0 %v3520, 32
        %v6536 = vpop.permute.xlu0 %6535
        %6537 = vrot.lane.b32.xlu0 %v3521, 32
        %v6538 = vpop.permute.xlu0 %6537
        %6539 = vrot.lane.b32.xlu0 %v3522, 32
        %v6540 = vpop.permute.xlu0 %6539
        %6541 = vrot.lane.b32.xlu0 %v3523, 32
        %v6542 = vpop.permute.xlu0 %6541
        %6543 = vrot.lane.b32.xlu0 %v3524, 32
        %v6544 = vpop.permute.xlu0 %6543
        %6545 = vrot.lane.b32.xlu0 %v3525, 32
        %v6546 = vpop.permute.xlu0 %6545
        %6547 = vrot.lane.b32.xlu0 %v3526, 32
        %v6548 = vpop.permute.xlu0 %6547
        %6549 = vrot.lane.b32.xlu0 %v3527, 32
        %v6550 = vpop.permute.xlu0 %6549
        %6551 = vrot.lane.b32.xlu0 %v3528, 32
        %v6552 = vpop.permute.xlu0 %6551
        %6553 = vrot.lane.b32.xlu0 %v3529, 32
        %v6554 = vpop.permute.xlu0 %6553
        %6555 = vrot.lane.b32.xlu0 %v3530, 32
        %v6556 = vpop.permute.xlu0 %6555
        %6557 = vrot.lane.b32.xlu0 %v3531, 32
        %v6558 = vpop.permute.xlu0 %6557
        %6559 = vrot.lane.b32.xlu0 %v3532, 32
        %v6560 = vpop.permute.xlu0 %6559
        %6561 = vrot.lane.b32.xlu0 %v3533, 32
        %v6562 = vpop.permute.xlu0 %6561
        %6563 = vrot.lane.b32.xlu0 %v3534, 32
        %v6564 = vpop.permute.xlu0 %6563
        %6565 = vrot.lane.b32.xlu0 %v3535, 32
        %v6566 = vpop.permute.xlu0 %6565
        %6567 = vrot.lane.b32.xlu0 %v3536, 32
        %v6568 = vpop.permute.xlu0 %6567
        %6569 = vrot.lane.b32.xlu0 %v3537, 32
        %v6570 = vpop.permute.xlu0 %6569
        %6571 = vrot.lane.b32.xlu0 %v3538, 32
        %v6572 = vpop.permute.xlu0 %6571
        %6573 = vrot.lane.b32.xlu0 %v3539, 32
        %v6574 = vpop.permute.xlu0 %6573
        %6575 = vrot.lane.b32.xlu0 %v3540, 32
        %v6576 = vpop.permute.xlu0 %6575
        %6577 = vrot.lane.b32.xlu0 %v3541, 32
        %v6578 = vpop.permute.xlu0 %6577
        %6579 = vrot.lane.b32.xlu0 %v3542, 32
        %v6580 = vpop.permute.xlu0 %6579
        %6581 = vrot.lane.b32.xlu0 %v3543, 32
        %v6582 = vpop.permute.xlu0 %6581
        %6583 = vrot.lane.b32.xlu0 %v3544, 32
        %v6584 = vpop.permute.xlu0 %6583
        %6585 = vrot.lane.b32.xlu0 %v3545, 32
        %v6586 = vpop.permute.xlu0 %6585
        %6587 = vrot.lane.b32.xlu0 %v3546, 32
        %v6588 = vpop.permute.xlu0 %6587
        %6589 = vrot.lane.b32.xlu0 %v3547, 32
        %v6590 = vpop.permute.xlu0 %6589
        %6591 = vrot.lane.b32.xlu0 %v3548, 32
        %v6592 = vpop.permute.xlu0 %6591
        %6657 = vrot.lane.b32.xlu0 %v4991, 64
        %v6658 = vpop.permute.xlu0 %6657
        %6659 = vrot.lane.b32.xlu0 %v4992, 64
        %v6660 = vpop.permute.xlu0 %6659
        %6661 = vrot.lane.b32.xlu0 %v4993, 64
        %v6662 = vpop.permute.xlu0 %6661
        %6663 = vrot.lane.b32.xlu0 %v4994, 64
        %v6664 = vpop.permute.xlu0 %6663
        %6665 = vrot.lane.b32.xlu0 %v4995, 64
        %v6666 = vpop.permute.xlu0 %6665
        %6667 = vrot.lane.b32.xlu0 %v4996, 64
        %v6668 = vpop.permute.xlu0 %6667
        %6669 = vrot.lane.b32.xlu0 %v4997, 64
        %v6670 = vpop.permute.xlu0 %6669
        %6671 = vrot.lane.b32.xlu0 %v4998, 64
        %v6672 = vpop.permute.xlu0 %6671
        %6673 = vrot.lane.b32.xlu0 %v4999, 64
        %v6674 = vpop.permute.xlu0 %6673
        %6675 = vrot.lane.b32.xlu0 %v5000, 64
        %v6676 = vpop.permute.xlu0 %6675
        %6677 = vrot.lane.b32.xlu0 %v5001, 64
        %v6678 = vpop.permute.xlu0 %6677
        %6679 = vrot.lane.b32.xlu0 %v5002, 64
        %v6680 = vpop.permute.xlu0 %6679
        %6681 = vrot.lane.b32.xlu0 %v5003, 64
        %v6682 = vpop.permute.xlu0 %6681
        %6683 = vrot.lane.b32.xlu0 %v5004, 64
        %v6684 = vpop.permute.xlu0 %6683
        %6685 = vrot.lane.b32.xlu0 %v5005, 64
        %v6686 = vpop.permute.xlu0 %6685
        %6687 = vrot.lane.b32.xlu0 %v5006, 64
        %v6688 = vpop.permute.xlu0 %6687
        %6689 = vrot.lane.b32.xlu0 %v5007, 64
        %v6690 = vpop.permute.xlu0 %6689
        %6691 = vrot.lane.b32.xlu0 %v5008, 64
        %v6692 = vpop.permute.xlu0 %6691
        %6693 = vrot.lane.b32.xlu0 %v5009, 64
        %v6694 = vpop.permute.xlu0 %6693
        %6695 = vrot.lane.b32.xlu0 %v5010, 64
        %v6696 = vpop.permute.xlu0 %6695
        %6697 = vrot.lane.b32.xlu0 %v5011, 64
        %v6698 = vpop.permute.xlu0 %6697
        %6699 = vrot.lane.b32.xlu0 %v5012, 64
        %v6700 = vpop.permute.xlu0 %6699
        %6701 = vrot.lane.b32.xlu0 %v5013, 64
        %v6702 = vpop.permute.xlu0 %6701
        %6703 = vrot.lane.b32.xlu0 %v5014, 64
        %v6704 = vpop.permute.xlu0 %6703
        %6705 = vrot.lane.b32.xlu0 %v5015, 64
        %v6706 = vpop.permute.xlu0 %6705
        %6707 = vrot.lane.b32.xlu0 %v5016, 64
        %v6708 = vpop.permute.xlu0 %6707
        %6709 = vrot.lane.b32.xlu0 %v5017, 64
        %v6710 = vpop.permute.xlu0 %6709
        %6711 = vrot.lane.b32.xlu0 %v5018, 64
        %v6712 = vpop.permute.xlu0 %6711
        %6713 = vrot.lane.b32.xlu0 %v5019, 64
        %v6714 = vpop.permute.xlu0 %6713
        %6715 = vrot.lane.b32.xlu0 %v5020, 64
        %v6716 = vpop.permute.xlu0 %6715
        %6717 = vrot.lane.b32.xlu0 %v5021, 64
        %v6718 = vpop.permute.xlu0 %6717
        %6719 = vrot.lane.b32.xlu0 %v5022, 64
        %v6720 = vpop.permute.xlu0 %6719
        %6785 = vrot.lane.b32.xlu0 %v6465, 96
        %v6786 = vpop.permute.xlu0 %6785
        %6787 = vrot.lane.b32.xlu0 %v6466, 96
        %v6788 = vpop.permute.xlu0 %6787
        %6789 = vrot.lane.b32.xlu0 %v6467, 96
        %v6790 = vpop.permute.xlu0 %6789
        %6791 = vrot.lane.b32.xlu0 %v6468, 96
        %v6792 = vpop.permute.xlu0 %6791
        %6793 = vrot.lane.b32.xlu0 %v6469, 96
        %v6794 = vpop.permute.xlu0 %6793
        %6795 = vrot.lane.b32.xlu0 %v6470, 96
        %v6796 = vpop.permute.xlu0 %6795
        %6797 = vrot.lane.b32.xlu0 %v6471, 96
        %v6798 = vpop.permute.xlu0 %6797
        %6799 = vrot.lane.b32.xlu0 %v6472, 96
        %v6800 = vpop.permute.xlu0 %6799
        %6801 = vrot.lane.b32.xlu0 %v6473, 96
        %v6802 = vpop.permute.xlu0 %6801
        %6803 = vrot.lane.b32.xlu0 %v6474, 96
        %v6804 = vpop.permute.xlu0 %6803
        %6805 = vrot.lane.b32.xlu0 %v6475, 96
        %v6806 = vpop.permute.xlu0 %6805
        %6807 = vrot.lane.b32.xlu0 %v6476, 96
        %v6808 = vpop.permute.xlu0 %6807
        %6809 = vrot.lane.b32.xlu0 %v6477, 96
        %v6810 = vpop.permute.xlu0 %6809
        %6811 = vrot.lane.b32.xlu0 %v6478, 96
        %v6812 = vpop.permute.xlu0 %6811
        %6813 = vrot.lane.b32.xlu0 %v6479, 96
        %v6814 = vpop.permute.xlu0 %6813
        %6815 = vrot.lane.b32.xlu0 %v6480, 96
        %v6816 = vpop.permute.xlu0 %6815
        %6817 = vrot.lane.b32.xlu0 %v6481, 96
        %v6818 = vpop.permute.xlu0 %6817
        %6819 = vrot.lane.b32.xlu0 %v6482, 96
        %v6820 = vpop.permute.xlu0 %6819
        %6821 = vrot.lane.b32.xlu0 %v6483, 96
        %v6822 = vpop.permute.xlu0 %6821
        %6823 = vrot.lane.b32.xlu0 %v6484, 96
        %v6824 = vpop.permute.xlu0 %6823
        %6825 = vrot.lane.b32.xlu0 %v6485, 96
        %v6826 = vpop.permute.xlu0 %6825
        %6827 = vrot.lane.b32.xlu0 %v6486, 96
        %v6828 = vpop.permute.xlu0 %6827
        %6829 = vrot.lane.b32.xlu0 %v6487, 96
        %v6830 = vpop.permute.xlu0 %6829
        %6831 = vrot.lane.b32.xlu0 %v6488, 96
        %v6832 = vpop.permute.xlu0 %6831
        %6833 = vrot.lane.b32.xlu0 %v6489, 96
        %v6834 = vpop.permute.xlu0 %6833
        %6835 = vrot.lane.b32.xlu0 %v6490, 96
        %v6836 = vpop.permute.xlu0 %6835
        %6837 = vrot.lane.b32.xlu0 %v6491, 96
        %v6838 = vpop.permute.xlu0 %6837
        %6839 = vrot.lane.b32.xlu0 %v6492, 96
        %v6840 = vpop.permute.xlu0 %6839
        %6841 = vrot.lane.b32.xlu0 %v6493, 96
        %v6842 = vpop.permute.xlu0 %6841
        %6843 = vrot.lane.b32.xlu0 %v6494, 96
        %v6844 = vpop.permute.xlu0 %6843
        %6845 = vrot.lane.b32.xlu0 %v6495, 96
        %v6846 = vpop.permute.xlu0 %6845
        %6847 = vrot.lane.b32.xlu0 %v6496, 96
        %v6848 = vpop.permute.xlu0 %6847
        %v6881 = vsel %vm888, %v1979, %v6530
        %v6882 = vsel %vm888, %v1980, %v6532
        %v6883 = vsel %vm888, %v1981, %v6534
        %v6884 = vsel %vm888, %v1982, %v6536
        %v6885 = vsel %vm888, %v1983, %v6538
        %v6886 = vsel %vm888, %v1984, %v6540
        %v6887 = vsel %vm888, %v1985, %v6542
        %v6888 = vsel %vm888, %v1986, %v6544
        %v6889 = vsel %vm888, %v1987, %v6546
        %v6890 = vsel %vm888, %v1988, %v6548
        %v6891 = vsel %vm888, %v1989, %v6550
        %v6892 = vsel %vm888, %v1990, %v6552
        %v6893 = vsel %vm888, %v1991, %v6554
        %v6894 = vsel %vm888, %v1992, %v6556
        %v6895 = vsel %vm888, %v1993, %v6558
        %v6896 = vsel %vm888, %v1994, %v6560
        %v6897 = vsel %vm888, %v1995, %v6562
        %v6898 = vsel %vm888, %v1996, %v6564
        %v6899 = vsel %vm888, %v1997, %v6566
        %v6900 = vsel %vm888, %v1998, %v6568
        %v6901 = vsel %vm888, %v1999, %v6570
        %v6902 = vsel %vm888, %v2000, %v6572
        %v6903 = vsel %vm888, %v2001, %v6574
        %v6904 = vsel %vm888, %v2002, %v6576
        %v6905 = vsel %vm888, %v2003, %v6578
        %v6906 = vsel %vm888, %v2004, %v6580
        %v6907 = vsel %vm888, %v2005, %v6582
        %v6908 = vsel %vm888, %v2006, %v6584
        %v6909 = vsel %vm888, %v2007, %v6586
        %v6910 = vsel %vm888, %v2008, %v6588
        %v6911 = vsel %vm888, %v2009, %v6590
        %v6912 = vsel %vm888, %v2010, %v6592
        %vm6913 = vcmask 523264
        %v6914 = vsel %vm6913, %v6881, %v6658
        %v6915 = vsel %vm6913, %v6882, %v6660
        %v6916 = vsel %vm6913, %v6883, %v6662
        %v6917 = vsel %vm6913, %v6884, %v6664
        %v6918 = vsel %vm6913, %v6885, %v6666
        %v6919 = vsel %vm6913, %v6886, %v6668
        %v6920 = vsel %vm6913, %v6887, %v6670
        %v6921 = vsel %vm6913, %v6888, %v6672
        %v6922 = vsel %vm6913, %v6889, %v6674
        %v6923 = vsel %vm6913, %v6890, %v6676
        %v6924 = vsel %vm6913, %v6891, %v6678
        %v6925 = vsel %vm6913, %v6892, %v6680
        %v6926 = vsel %vm6913, %v6893, %v6682
        %v6927 = vsel %vm6913, %v6894, %v6684
        %v6928 = vsel %vm6913, %v6895, %v6686
        %v6929 = vsel %vm6913, %v6896, %v6688
        %v6930 = vsel %vm6913, %v6897, %v6690
        %v6931 = vsel %vm6913, %v6898, %v6692
        %v6932 = vsel %vm6913, %v6899, %v6694
        %v6933 = vsel %vm6913, %v6900, %v6696
        %v6934 = vsel %vm6913, %v6901, %v6698
        %v6935 = vsel %vm6913, %v6902, %v6700
        %v6936 = vsel %vm6913, %v6903, %v6702
        %v6937 = vsel %vm6913, %v6904, %v6704
        %v6938 = vsel %vm6913, %v6905, %v6706
        %v6939 = vsel %vm6913, %v6906, %v6708
        %v6940 = vsel %vm6913, %v6907, %v6710
        %v6941 = vsel %vm6913, %v6908, %v6712
        %v6942 = vsel %vm6913, %v6909, %v6714
        %v6943 = vsel %vm6913, %v6910, %v6716
        %v6944 = vsel %vm6913, %v6911, %v6718
        %v6945 = vsel %vm6913, %v6912, %v6720
        %vm6946 = vcmask 785408
        %v6947 = vsel %vm6946, %v6914, %v6786
        %v6948 = vsel %vm6946, %v6915, %v6788
        %v6949 = vsel %vm6946, %v6916, %v6790
        %v6950 = vsel %vm6946, %v6917, %v6792
        %v6951 = vsel %vm6946, %v6918, %v6794
        %v6952 = vsel %vm6946, %v6919, %v6796
        %v6953 = vsel %vm6946, %v6920, %v6798
        %v6954 = vsel %vm6946, %v6921, %v6800
        %v6955 = vsel %vm6946, %v6922, %v6802
        %v6956 = vsel %vm6946, %v6923, %v6804
        %v6957 = vsel %vm6946, %v6924, %v6806
        %v6958 = vsel %vm6946, %v6925, %v6808
        %v6959 = vsel %vm6946, %v6926, %v6810
        %v6960 = vsel %vm6946, %v6927, %v6812
        %v6961 = vsel %vm6946, %v6928, %v6814
        %v6962 = vsel %vm6946, %v6929, %v6816
        %v6963 = vsel %vm6946, %v6930, %v6818
        %v6964 = vsel %vm6946, %v6931, %v6820
        %v6965 = vsel %vm6946, %v6932, %v6822
        %v6966 = vsel %vm6946, %v6933, %v6824
        %v6967 = vsel %vm6946, %v6934, %v6826
        %v6968 = vsel %vm6946, %v6935, %v6828
        %v6969 = vsel %vm6946, %v6936, %v6830
        %v6970 = vsel %vm6946, %v6937, %v6832
        %v6971 = vsel %vm6946, %v6938, %v6834
        %v6972 = vsel %vm6946, %v6939, %v6836
        %v6973 = vsel %vm6946, %v6940, %v6838
        %v6974 = vsel %vm6946, %v6941, %v6840
        %v6975 = vsel %vm6946, %v6942, %v6842
        %v6976 = vsel %vm6946, %v6943, %v6844
        %v6977 = vsel %vm6946, %v6944, %v6846
        %v6978 = vsel %vm6946, %v6945, %v6848
        %6979 = vst [vmem:[%s163] sm:$0xff] %v6947
        %6980 = vst [vmem:[%s163 + $0x8] sm:$0xff] %v6948
        %6981 = vst [vmem:[%s163 + $0x10] sm:$0xff] %v6949
        %6982 = vst [vmem:[%s163 + $0x18] sm:$0xff] %v6950
        %6983 = vst [vmem:[%s163 + $0x20] sm:$0xff] %v6951
        %6984 = vst [vmem:[%s163 + $0x28] sm:$0xff] %v6952
        %6985 = vst [vmem:[%s163 + $0x30] sm:$0xff] %v6953
        %6986 = vst [vmem:[%s163 + $0x38] sm:$0xff] %v6954
        %6987 = vst [vmem:[%s163 + $0x40] sm:$0xff] %v6955
        %6988 = vst [vmem:[%s163 + $0x48] sm:$0xff] %v6956
        %6989 = vst [vmem:[%s163 + $0x50] sm:$0xff] %v6957
        %6990 = vst [vmem:[%s163 + $0x58] sm:$0xff] %v6958
        %6991 = vst [vmem:[%s163 + $0x60] sm:$0xff] %v6959
        %6992 = vst [vmem:[%s163 + $0x68] sm:$0xff] %v6960
        %6993 = vst [vmem:[%s163 + $0x70] sm:$0xff] %v6961
        %6994 = vst [vmem:[%s163 + $0x78] sm:$0xff] %v6962
        %6995 = vst [vmem:[%s163 + $0x80] sm:$0xff] %v6963
        %6996 = vst [vmem:[%s163 + $0x88] sm:$0xff] %v6964
        %6997 = vst [vmem:[%s163 + $0x90] sm:$0xff] %v6965
        %6998 = vst [vmem:[%s163 + $0x98] sm:$0xff] %v6966
        %6999 = vst [vmem:[%s163 + $0xa0] sm:$0xff] %v6967
        %7000 = vst [vmem:[%s163 + $0xa8] sm:$0xff] %v6968
        %7001 = vst [vmem:[%s163 + $0xb0] sm:$0xff] %v6969
        %7002 = vst [vmem:[%s163 + $0xb8] sm:$0xff] %v6970
        %7003 = vst [vmem:[%s163 + $0xc0] sm:$0xff] %v6971
        %7004 = vst [vmem:[%s163 + $0xc8] sm:$0xff] %v6972
        %7005 = vst [vmem:[%s163 + $0xd0] sm:$0xff] %v6973
        %7006 = vst [vmem:[%s163 + $0xd8] sm:$0xff] %v6974
        %7007 = vst [vmem:[%s163 + $0xe0] sm:$0xff] %v6975
        %7008 = vst [vmem:[%s163 + $0xe8] sm:$0xff] %v6976
        %7009 = vst [vmem:[%s163 + $0xf0] sm:$0xff] %v6977
        %7010 = vst [vmem:[%s163 + $0xf8] sm:$0xff] %v6978
        %s7011 = sand.u32 %s93, 1
        %s7012 = scalar_lea.sflag [#allocation3], %s7011
        %s7013 = sand.u32 %s93, 1
        %s7014 = smul.addr %s7013, 256
        %s7015 = scalar_lea.vmem [#allocation2], %s7014
        // Predicated region
        $region33: #{tpu_custom_call.1} parent=31 // pred_check
          %p7016 = pneg %p103
        $region34: #{tpu_custom_call.1} parent=31 // pred_check_branch
          %7018 = sbr.rel (%p7016) target = $region36
        $region35: #{tpu_custom_call.1} parent=31 // pred_region
          %s7020 = ssub.s32 4096, 4096
          %7021 = vsyncadd %s7012, %s7020
          %s7022 = smul.addr %s17, 32
          %s7023 = smul.addr %s7022, 128
          %s7024 = scalar_lea.hbm %s3, %s7023
          %s7025 = sshll.u32 %s7015, 4
          %s7026 = int_to_ptr.vmem [resolvable:$true] %s7025
          %7031 = dma.vmem_to_hbm [thread:$0]  %s7026, 4096, %s7024, %s7012, 128, 128, 8
        $region36: #{tpu_custom_call.1} parent=31 // pred_fallthru
          _
      $region32: #{tpu_custom_call.1} parent=5 // pred_fallthru
        _
      %p7032 = scmp.le.s32.totalorder 2, %s12
      // Predicated region
      $region37: #{tpu_custom_call.1} parent=5 // pred_check
        %p7033 = pneg %p7032
      $region38: #{tpu_custom_call.1} parent=5 // pred_check_branch
        %7035 = sbr.rel (%p7033) target = $region40
      $region39: #{tpu_custom_call.1} parent=5 // pred_region
        %s7036 = ssub.s32 %s12, 2
        // Predicated region
        $region41: #{tpu_custom_call.1} parent=39 // pred_check
          %p7037 = pneg %p109
        $region42: #{tpu_custom_call.1} parent=39 // pred_check_branch
          %7039 = sbr.rel (%p7037) target = $region44
        $region43: #{tpu_custom_call.1} parent=39 // pred_region
          %s7040 = sand.u32 %s94, 1
          %s7041 = scalar_lea.sflag [#allocation3], %s7040
          %s7042 = sand.u32 %s94, 1
          %s7043 = smul.addr %s7042, 256
          %s7044 = scalar_lea.vmem [#allocation2], %s7043
          %7045 = dma.done %s7041, 4096
        $region44: #{tpu_custom_call.1} parent=39 // pred_fallthru
          _
      $region40: #{tpu_custom_call.1} parent=5 // pred_fallthru
        _
    $region6: #{tpu_custom_call.1} parent=1 // loop_footer
      %s16 = sadd.s32 1, %s12
    $region7: #{tpu_custom_call.1} parent=1 // loop_footer_branch
      %11 = sbr.rel target = $region3
    $region8: #{tpu_custom_call.1} parent=1 // loop_exit
      _
    %7046 = vsyncpa [#allocation3], 1
    %s7047 = scalar_lea.sflag [#allocation3], 1
    %7048 = vsyncpa %s7047, 1

</llo_original>
